<compile_context>
chip_gen: v7x
topology: tpu7x:2x2x1
jax: 0.10.0
libtpu: 0.0.40
codegen_flags: <defaults>
</compile_context>

<pallas_src>
import numpy as np
import jax
import jax.numpy as jnp
from jax import lax
from jax.experimental import pallas as pl
from jax.experimental.pallas import tpu as pltpu

FIXED_STEP = 10.0
BLOCK = 8            # DCT block size
MID_U, MID_V = 4, 3  # mid-band coefficient (row, col) inside each 8x8 block


# ----------------------------------------------------------------------------
# in-kernel helper: all 9 zero-padded 3x3 shifts of a plane, sharing the two
# row-rolled bases across the three column offsets (8 rolls per plane).
# Edge zeroing uses cheap (H,1)/(1,W) iota compares instead of stored masks.
# ----------------------------------------------------------------------------
def _taps3x3(x, rix, cix, H, W):
    """taps[(dy,dx)][i,j] == x[i+dy, j+dx] if in bounds else 0."""
    base = {
        -1: jnp.where(rix >= 1,     jnp.roll(x,  1, axis=0), 0.0),   # x[i-1, j]
         0: x,
         1: jnp.where(rix <= H - 2, jnp.roll(x, -1, axis=0), 0.0),   # x[i+1, j]
    }
    taps = {}
    for dy in (-1, 0, 1):
        b = base[dy]
        taps[(dy, -1)] = jnp.where(cix >= 1,     jnp.roll(b,  1, axis=1), 0.0)
        taps[(dy,  0)] = b
        taps[(dy,  1)] = jnp.where(cix <= W - 2, jnp.roll(b, -1, axis=1), 0.0)
    return taps


# ----------------------------------------------------------------------------
# fused kernel: LBP -> spatial attention -> channel attention -> DCT embed
# ----------------------------------------------------------------------------
def _fused_watermark_kernel(frame_ref, wm_ref, conv_ref, ca_ref, wmidx_ref,
                            ah_ref, aw_ref, vh_ref, vw_ref,
                            out_ref, mask_ref):
    H = frame_ref.shape[2]
    W = frame_ref.shape[3]
    L = wm_ref.shape[0]

    r = frame_ref[0, 0]
    g = frame_ref[0, 1]
    b = frame_ref[0, 2]

    rix = lax.broadcasted_iota(jnp.int32, (H, 1), 0)   # row index (sublanes)
    cix = lax.broadcasted_iota(jnp.int32, (1, W), 1)   # col index (lanes)

    # ---- 1) grayscale + uniform LBP (P=8, R=1, integer offsets) -------------
    gray = 0.299 * r + 0.587 * g + 0.114 * b
    gtaps = _taps3x3(gray, rix, cix, H, W)
    lbp_offsets = [(-1, -1), (-1, 0), (-1, 1), (0, 1),
                   (1, 1), (1, 0), (1, -1), (0, -1)]            # circular order
    bits = [(gtaps[o] >= gray).astype(jnp.float32) for o in lbp_offsets]
    pop = bits[0]
    for k in range(1, 8):
        pop = pop + bits[k]
    trans = jnp.zeros_like(pop)
    for k in range(8):
        trans = trans + jnp.abs(bits[k] - bits[(k + 1) % 8])
    lbp = jnp.where(trans <= 2.0, pop, 9.0)                     # uniform -> pop, else P+1
    mx = jnp.max(lbp, axis=(0, 1), keepdims=True)
    lbp_n = lbp / jnp.maximum(mx, 1e-6)                         # guard lbp.max()==0

    # ---- 2) spatial attention: concat(rgb,lbp) -> 3x3 conv (pad=1) -> sigmoid
    offsets9 = [(dy, dx) for dy in (-1, 0, 1) for dx in (-1, 0, 1)]
    wconv = [conv_ref[i] for i in range(37)]                    # hoisted scalars
    acc = jnp.zeros((H, W), jnp.float32)
    for c, chan in enumerate((r, g, b, lbp_n)):                 # per channel so the
        taps = _taps3x3(chan, rix, cix, H, W)                   # 9 taps die quickly
        for t, o in enumerate(offsets9):                        # t == ky*3 + kx
            acc = acc + taps[o] * wconv[c * 9 + t]
    mask = jax.nn.sigmoid(acc + wconv[36])                      # + bias
    mask_ref[0, 0] = mask

    # ---- 3) rgb -> yuv + channel attention (GAP -> 3x3 MLP -> sigmoid scale)
    y = gray                                                    # Y == grayscale coeffs
    u = -0.147 * r - 0.289 * g + 0.436 * b
    v = 0.615 * r - 0.515 * g - 0.1 * b
    m = [jnp.mean(ch, axis=(0, 1), keepdims=True) for ch in (y, u, v)]
    ca = [ca_ref[i] for i in range(24)]                         # hoisted scalars
    h = []
    for j in range(3):
        hj = m[0] * ca[0 * 3 + j] + m[1] * ca[1 * 3 + j] + m[2] * ca[2 * 3 + j] + ca[9 + j]
        h.append(jnp.maximum(hj, 0.0))
    a = []
    for j in range(3):
        aj = (h[0] * ca[12 + 0 * 3 + j] + h[1] * ca[12 + 1 * 3 + j] +
              h[2] * ca[12 + 2 * 3 + j] + ca[21 + j])
        a.append(jax.nn.sigmoid(aj))
    y_w = y * a[0]
    u_w = u * a[1]
    v_w = v * a[2]

    # ---- 4) 8x8 block-DCT watermark embedding on weighted Y (analytic form) --
    # per-block texture-mask means at (H/8, W/8): skinny averaging matmuls
    mean_b = jnp.dot(jnp.dot(ah_ref[...], mask, preferred_element_type=jnp.float32),
                     aw_ref[...], preferred_element_type=jnp.float32)
    # per-block watermark sign via L-way select on the precomputed block index map
    sgn = [2.0 * wm_ref[k].astype(jnp.float32) - 1.0 for k in range(L)]
    wmidx = wmidx_ref[...]
    sign_b = jnp.zeros_like(mean_b)
    for k in range(L):
        sign_b = sign_b + jnp.where(wmidx == k, sgn[k], 0.0)
    amp_b = FIXED_STEP * sign_b * mean_b                        # (H/8, W/8)
    # IDCT of a single (MID_U, MID_V) coefficient per block == separable rank-1
    # pattern:  embed[h,w] = d8[4,h%8] * d8[3,w%8] * amp_b[h//8, w//8]
    embed = jnp.dot(jnp.dot(vh_ref[...], amp_b, preferred_element_type=jnp.float32),
                    vw_ref[...], preferred_element_type=jnp.float32)
    y_m = y_w + embed

    # ---- 5) yuv -> rgb + clamp (chroma keeps attention-weighted u/v, as in the
    #         torch embed_watermark which concatenates weighted_yuv[:,1:3]) ----
    out_ref[0, 0] = jnp.clip(y_m + 1.14 * v_w, 0.0, 1.0)
    out_ref[0, 1] = jnp.clip(y_m - 0.395 * u_w - 0.581 * v_w, 0.0, 1.0)
    out_ref[0, 2] = jnp.clip(y_m + 2.032 * u_w, 0.0, 1.0)


# ----------------------------------------------------------------------------
# wrapper
# ----------------------------------------------------------------------------
def _dct8():
    n = np.arange(BLOCK)
    d = np.sqrt(2.0 / BLOCK) * np.cos(
        np.pi * (2 * n[None, :] + 1) * n[:, None] / (2 * BLOCK))
    d[0, :] = np.sqrt(1.0 / BLOCK)
    return d                                   # orthonormal 8x8 DCT-II


def texture_driven_watermark_forward(frame, watermark, conv_params, ca_params):
    """Mirrors TextureDrivenWatermark.forward: returns (watermarked, mask).

    For lane-dense stores keep W a multiple of 128 (pad + crop outside
    otherwise); H and W must be multiples of 8 (DCT block size).
    """
    B, C, H, W = frame.shape
    assert C == 3 and H % BLOCK == 0 and W % BLOCK == 0
    nbh, nbw = H // BLOCK, W // BLOCK
    L = int(watermark.shape[0])

    d8 = _dct8()
    # skinny block-average reduce matrices (replace the old dense S_h/S_w)
    ah = jnp.asarray(np.kron(np.eye(nbh), np.full((1, BLOCK), 1.0 / BLOCK)),
                     jnp.float32)                                   # (H/8, H)
    aw = jnp.asarray(np.kron(np.eye(nbw), np.full((BLOCK, 1), 1.0 / BLOCK)),
                     jnp.float32)                                   # (W, W/8)
    # "IDCT of one (4,3) coefficient" upsample factors (replace BH/BW entirely)
    vh = jnp.asarray(np.kron(np.eye(nbh), d8[MID_U][:, None]), jnp.float32)  # (H, H/8)
    vw = jnp.asarray(np.kron(np.eye(nbw), d8[MID_V][None, :]), jnp.float32)  # (W/8, W)
    # static per-block watermark-bit index map (avoids in-kernel int div/mod)
    blk = np.arange(nbh)[:, None] * nbw + np.arange(nbw)[None, :]
    wm_idx = jnp.asarray(blk % L, jnp.int32)                        # (H/8, W/8)

    img3 = pl.BlockSpec((1, 3, H, W), lambda b: (b, 0, 0, 0))
    img1 = pl.BlockSpec((1, 1, H, W), lambda b: (b, 0, 0, 0))
    smem = pl.BlockSpec(memory_space=pltpu.MemorySpace.SMEM)
    const = lambda shape: pl.BlockSpec(shape, lambda b: (0, 0))

    watermarked, mask = pl.pallas_call(
        _fused_watermark_kernel,
        out_shape=(jax.ShapeDtypeStruct((B, 3, H, W), jnp.float32),
                   jax.ShapeDtypeStruct((B, 1, H, W), jnp.float32)),
        grid=(B,),
        in_specs=[img3, smem, smem, smem,
                  const((nbh, nbw)),            # wm_idx
                  const((nbh, H)), const((W, nbw)),   # Ah, Aw
                  const((H, nbh)), const((nbw, W))],  # Vh, Vw
        out_specs=[img3, img1],
        compiler_params=pltpu.CompilerParams(
            dimension_semantics=("parallel",)),
    )(frame, watermark, conv_params, ca_params, wm_idx, ah, aw, vh, vw)
    return watermarked, mask


# ----------------------------------------------------------------------------
if __name__ == "__main__":
    key = jax.random.PRNGKey(0)
    k1, k2, k3, k4 = jax.random.split(key, 4)

    B, H, W = 2, 64, 128            # W = 128 -> lane-dense blocks
    frame = jax.random.uniform(k4, (B, 3, H, W), jnp.float32)
    watermark = jnp.array([1, 0, 1, 1, 0, 0, 1, 0], jnp.int32)

    # deterministic parameter init
    conv_w = (jax.random.normal(k1, (1, 4, 3, 3), jnp.float32) * 0.1).reshape(-1)
    conv_params = jnp.concatenate([conv_w, jnp.zeros((1,), jnp.float32)])        # (37,)
    w1 = jax.random.normal(k2, (3, 3), jnp.float32) * 0.5
    w2 = jax.random.normal(k3, (3, 3), jnp.float32) * 0.5
    ca_params = jnp.concatenate([w1.reshape(-1), jnp.zeros((3,), jnp.float32),
                                 w2.reshape(-1), jnp.zeros((3,), jnp.float32)])  # (24,)

    wm_frame, tex_mask = texture_driven_watermark_forward(
        frame, watermark, conv_params, ca_params)
    jax.block_until_ready((wm_frame, tex_mask))

    assert wm_frame.shape == (B, 3, H, W) and wm_frame.dtype == jnp.float32
    assert tex_mask.shape == (B, 1, H, W) and tex_mask.dtype == jnp.float32
    assert bool(jnp.all(jnp.isfinite(wm_frame))) and bool(jnp.all(jnp.isfinite(tex_mask)))
    assert bool(jnp.all((wm_frame >= 0.0) & (wm_frame <= 1.0)))
    assert bool(jnp.all((tex_mask > 0.0) & (tex_mask < 1.0)))
    print("KERNEL_OK")
</pallas_src>

<mosaic_0001>
module attributes {stable_mosaic.version = 11 : i64} {
  func.func @_fused_watermark_kernel(%arg0: i32, %arg1: memref<1x3x64x128xf32, #tpu.memory_space<vmem>>, %arg2: memref<8xi32, #tpu.memory_space<smem>>, %arg3: memref<37xf32, #tpu.memory_space<smem>>, %arg4: memref<24xf32, #tpu.memory_space<smem>>, %arg5: memref<8x16xi32, #tpu.memory_space<vmem>>, %arg6: memref<8x64xf32, #tpu.memory_space<vmem>>, %arg7: memref<128x16xf32, #tpu.memory_space<vmem>>, %arg8: memref<64x8xf32, #tpu.memory_space<vmem>>, %arg9: memref<16x128xf32, #tpu.memory_space<vmem>>, %arg10: memref<1x3x64x128xf32, #tpu.memory_space<vmem>>, %arg11: memref<1x1x64x128xf32, #tpu.memory_space<vmem>>) attributes {dimension_semantics = [#tpu.dimension_semantics<parallel>], iteration_bounds = array<i64: 2>, scalar_prefetch = 0 : i64, scratch_operands = 0 : i64, tpu.core_type = #tpu.core_type<tc>, window_params = [{transform_indices = @transform_0, window_bounds = array<i64: 1, 3, 64, 128>}, {transform_indices = @transform_1, window_bounds = array<i64: 8>}, {transform_indices = @transform_2, window_bounds = array<i64: 37>}, {transform_indices = @transform_3, window_bounds = array<i64: 24>}, {pipeline_mode = #tpu.pipeline_mode<synchronous>, transform_indices = @transform_4, window_bounds = array<i64: 8, 16>}, {pipeline_mode = #tpu.pipeline_mode<synchronous>, transform_indices = @transform_5, window_bounds = array<i64: 8, 64>}, {pipeline_mode = #tpu.pipeline_mode<synchronous>, transform_indices = @transform_6, window_bounds = array<i64: 128, 16>}, {pipeline_mode = #tpu.pipeline_mode<synchronous>, transform_indices = @transform_7, window_bounds = array<i64: 64, 8>}, {pipeline_mode = #tpu.pipeline_mode<synchronous>, transform_indices = @transform_8, window_bounds = array<i64: 16, 128>}, {transform_indices = @transform_9, window_bounds = array<i64: 1, 3, 64, 128>}, {transform_indices = @transform_10, window_bounds = array<i64: 1, 1, 64, 128>}]} {
    %c0 = arith.constant 0 : index
    %c0_0 = arith.constant 0 : index
    %c0_1 = arith.constant 0 : index
    %c0_2 = arith.constant 0 : index
    %0 = vector.load %arg1[%c0, %c0_0, %c0_1, %c0_2] : memref<1x3x64x128xf32, #tpu.memory_space<vmem>>, vector<1x1x64x128xf32>
    %1 = vector.shape_cast %0 : vector<1x1x64x128xf32> to vector<64x128xf32>
    %c0_3 = arith.constant 0 : index
    %c1 = arith.constant 1 : index
    %c0_4 = arith.constant 0 : index
    %c0_5 = arith.constant 0 : index
    %2 = vector.load %arg1[%c0_3, %c1, %c0_4, %c0_5] : memref<1x3x64x128xf32, #tpu.memory_space<vmem>>, vector<1x1x64x128xf32>
    %3 = vector.shape_cast %2 : vector<1x1x64x128xf32> to vector<64x128xf32>
    %c0_6 = arith.constant 0 : index
    %c2 = arith.constant 2 : index
    %c0_7 = arith.constant 0 : index
    %c0_8 = arith.constant 0 : index
    %4 = vector.load %arg1[%c0_6, %c2, %c0_7, %c0_8] : memref<1x3x64x128xf32, #tpu.memory_space<vmem>>, vector<1x1x64x128xf32>
    %5 = vector.shape_cast %4 : vector<1x1x64x128xf32> to vector<64x128xf32>
    %6 = tpu.iota {dimensions = array<i32: 0>} : vector<64x1xi32>
    %7 = tpu.iota {dimensions = array<i32: 1>} : vector<1x128xi32>
    %cst = arith.constant 2.990000e-01 : f32
    %8 = vector.broadcast %cst : f32 to vector<64x128xf32>
    %9 = arith.mulf %8, %1 : vector<64x128xf32>
    %cst_9 = arith.constant 5.870000e-01 : f32
    %10 = vector.broadcast %cst_9 : f32 to vector<64x128xf32>
    %11 = arith.mulf %10, %3 : vector<64x128xf32>
    %12 = arith.addf %9, %11 : vector<64x128xf32>
    %cst_10 = arith.constant 1.140000e-01 : f32
    %13 = vector.broadcast %cst_10 : f32 to vector<64x128xf32>
    %14 = arith.mulf %13, %5 : vector<64x128xf32>
    %15 = arith.addf %12, %14 : vector<64x128xf32>
    %c1_i32 = arith.constant 1 : i32
    %16 = vector.broadcast %c1_i32 : i32 to vector<64x1xi32>
    %17 = arith.cmpi sge, %6, %16 : vector<64x1xi32>
    %18 = vector.extract_strided_slice %15 {offsets = [63, 0], sizes = [1, 128], strides = [1, 1]} : vector<64x128xf32> to vector<1x128xf32>
    %19 = vector.extract_strided_slice %15 {offsets = [0, 0], sizes = [63, 128], strides = [1, 1]} : vector<64x128xf32> to vector<63x128xf32>
    %20 = tpu.concatenate %18, %19 in 0 : vector<1x128xf32>, vector<63x128xf32> -> vector<64x128xf32>
    %cst_11 = arith.constant 0.000000e+00 : f32
    %21 = vector.shape_cast %17 : vector<64x1xi1> to vector<64x1xi1>
    %22 = vector.broadcast %21 : vector<64x1xi1> to vector<64x128xi1>
    %23 = vector.broadcast %cst_11 : f32 to vector<64x128xf32>
    %24 = arith.select %22, %20, %23 : vector<64x128xi1>, vector<64x128xf32>
    %c62_i32 = arith.constant 62 : i32
    %25 = vector.broadcast %c62_i32 : i32 to vector<64x1xi32>
    %26 = arith.cmpi sle, %6, %25 : vector<64x1xi32>
    %27 = vector.extract_strided_slice %15 {offsets = [1, 0], sizes = [63, 128], strides = [1, 1]} : vector<64x128xf32> to vector<63x128xf32>
    %28 = vector.extract_strided_slice %15 {offsets = [0, 0], sizes = [1, 128], strides = [1, 1]} : vector<64x128xf32> to vector<1x128xf32>
    %29 = tpu.concatenate %27, %28 in 0 : vector<63x128xf32>, vector<1x128xf32> -> vector<64x128xf32>
    %cst_12 = arith.constant 0.000000e+00 : f32
    %30 = vector.shape_cast %26 : vector<64x1xi1> to vector<64x1xi1>
    %31 = vector.broadcast %30 : vector<64x1xi1> to vector<64x128xi1>
    %32 = vector.broadcast %cst_12 : f32 to vector<64x128xf32>
    %33 = arith.select %31, %29, %32 : vector<64x128xi1>, vector<64x128xf32>
    %c1_i32_13 = arith.constant 1 : i32
    %34 = vector.broadcast %c1_i32_13 : i32 to vector<1x128xi32>
    %35 = arith.cmpi sge, %7, %34 : vector<1x128xi32>
    %36 = vector.extract_strided_slice %24 {offsets = [0, 127], sizes = [64, 1], strides = [1, 1]} : vector<64x128xf32> to vector<64x1xf32>
    %37 = vector.extract_strided_slice %24 {offsets = [0, 0], sizes = [64, 127], strides = [1, 1]} : vector<64x128xf32> to vector<64x127xf32>
    %38 = tpu.concatenate %36, %37 in 1 : vector<64x1xf32>, vector<64x127xf32> -> vector<64x128xf32>
    %cst_14 = arith.constant 0.000000e+00 : f32
    %39 = vector.shape_cast %35 : vector<1x128xi1> to vector<1x128xi1>
    %40 = vector.broadcast %39 : vector<1x128xi1> to vector<64x128xi1>
    %41 = vector.broadcast %cst_14 : f32 to vector<64x128xf32>
    %42 = arith.select %40, %38, %41 : vector<64x128xi1>, vector<64x128xf32>
    %c126_i32 = arith.constant 126 : i32
    %43 = vector.broadcast %c126_i32 : i32 to vector<1x128xi32>
    %44 = arith.cmpi sle, %7, %43 : vector<1x128xi32>
    %45 = vector.extract_strided_slice %24 {offsets = [0, 1], sizes = [64, 127], strides = [1, 1]} : vector<64x128xf32> to vector<64x127xf32>
    %46 = vector.extract_strided_slice %24 {offsets = [0, 0], sizes = [64, 1], strides = [1, 1]} : vector<64x128xf32> to vector<64x1xf32>
    %47 = tpu.concatenate %45, %46 in 1 : vector<64x127xf32>, vector<64x1xf32> -> vector<64x128xf32>
    %cst_15 = arith.constant 0.000000e+00 : f32
    %48 = vector.shape_cast %44 : vector<1x128xi1> to vector<1x128xi1>
    %49 = vector.broadcast %48 : vector<1x128xi1> to vector<64x128xi1>
    %50 = vector.broadcast %cst_15 : f32 to vector<64x128xf32>
    %51 = arith.select %49, %47, %50 : vector<64x128xi1>, vector<64x128xf32>
    %c1_i32_16 = arith.constant 1 : i32
    %52 = vector.broadcast %c1_i32_16 : i32 to vector<1x128xi32>
    %53 = arith.cmpi sge, %7, %52 : vector<1x128xi32>
    %54 = vector.extract_strided_slice %15 {offsets = [0, 127], sizes = [64, 1], strides = [1, 1]} : vector<64x128xf32> to vector<64x1xf32>
    %55 = vector.extract_strided_slice %15 {offsets = [0, 0], sizes = [64, 127], strides = [1, 1]} : vector<64x128xf32> to vector<64x127xf32>
    %56 = tpu.concatenate %54, %55 in 1 : vector<64x1xf32>, vector<64x127xf32> -> vector<64x128xf32>
    %cst_17 = arith.constant 0.000000e+00 : f32
    %57 = vector.shape_cast %53 : vector<1x128xi1> to vector<1x128xi1>
    %58 = vector.broadcast %57 : vector<1x128xi1> to vector<64x128xi1>
    %59 = vector.broadcast %cst_17 : f32 to vector<64x128xf32>
    %60 = arith.select %58, %56, %59 : vector<64x128xi1>, vector<64x128xf32>
    %c126_i32_18 = arith.constant 126 : i32
    %61 = vector.broadcast %c126_i32_18 : i32 to vector<1x128xi32>
    %62 = arith.cmpi sle, %7, %61 : vector<1x128xi32>
    %63 = vector.extract_strided_slice %15 {offsets = [0, 1], sizes = [64, 127], strides = [1, 1]} : vector<64x128xf32> to vector<64x127xf32>
    %64 = vector.extract_strided_slice %15 {offsets = [0, 0], sizes = [64, 1], strides = [1, 1]} : vector<64x128xf32> to vector<64x1xf32>
    %65 = tpu.concatenate %63, %64 in 1 : vector<64x127xf32>, vector<64x1xf32> -> vector<64x128xf32>
    %cst_19 = arith.constant 0.000000e+00 : f32
    %66 = vector.shape_cast %62 : vector<1x128xi1> to vector<1x128xi1>
    %67 = vector.broadcast %66 : vector<1x128xi1> to vector<64x128xi1>
    %68 = vector.broadcast %cst_19 : f32 to vector<64x128xf32>
    %69 = arith.select %67, %65, %68 : vector<64x128xi1>, vector<64x128xf32>
    %c1_i32_20 = arith.constant 1 : i32
    %70 = vector.broadcast %c1_i32_20 : i32 to vector<1x128xi32>
    %71 = arith.cmpi sge, %7, %70 : vector<1x128xi32>
    %72 = vector.extract_strided_slice %33 {offsets = [0, 127], sizes = [64, 1], strides = [1, 1]} : vector<64x128xf32> to vector<64x1xf32>
    %73 = vector.extract_strided_slice %33 {offsets = [0, 0], sizes = [64, 127], strides = [1, 1]} : vector<64x128xf32> to vector<64x127xf32>
    %74 = tpu.concatenate %72, %73 in 1 : vector<64x1xf32>, vector<64x127xf32> -> vector<64x128xf32>
    %cst_21 = arith.constant 0.000000e+00 : f32
    %75 = vector.shape_cast %71 : vector<1x128xi1> to vector<1x128xi1>
    %76 = vector.broadcast %75 : vector<1x128xi1> to vector<64x128xi1>
    %77 = vector.broadcast %cst_21 : f32 to vector<64x128xf32>
    %78 = arith.select %76, %74, %77 : vector<64x128xi1>, vector<64x128xf32>
    %c126_i32_22 = arith.constant 126 : i32
    %79 = vector.broadcast %c126_i32_22 : i32 to vector<1x128xi32>
    %80 = arith.cmpi sle, %7, %79 : vector<1x128xi32>
    %81 = vector.extract_strided_slice %33 {offsets = [0, 1], sizes = [64, 127], strides = [1, 1]} : vector<64x128xf32> to vector<64x127xf32>
    %82 = vector.extract_strided_slice %33 {offsets = [0, 0], sizes = [64, 1], strides = [1, 1]} : vector<64x128xf32> to vector<64x1xf32>
    %83 = tpu.concatenate %81, %82 in 1 : vector<64x127xf32>, vector<64x1xf32> -> vector<64x128xf32>
    %cst_23 = arith.constant 0.000000e+00 : f32
    %84 = vector.shape_cast %80 : vector<1x128xi1> to vector<1x128xi1>
    %85 = vector.broadcast %84 : vector<1x128xi1> to vector<64x128xi1>
    %86 = vector.broadcast %cst_23 : f32 to vector<64x128xf32>
    %87 = arith.select %85, %83, %86 : vector<64x128xi1>, vector<64x128xf32>
    %88 = arith.cmpf oge, %42, %15 : vector<64x128xf32>
    %89 = arith.extui %88 : vector<64x128xi1> to vector<64x128xi32>
    %90 = arith.sitofp %89 : vector<64x128xi32> to vector<64x128xf32>
    %91 = arith.cmpf oge, %24, %15 : vector<64x128xf32>
    %92 = arith.extui %91 : vector<64x128xi1> to vector<64x128xi32>
    %93 = arith.sitofp %92 : vector<64x128xi32> to vector<64x128xf32>
    %94 = arith.cmpf oge, %51, %15 : vector<64x128xf32>
    %95 = arith.extui %94 : vector<64x128xi1> to vector<64x128xi32>
    %96 = arith.sitofp %95 : vector<64x128xi32> to vector<64x128xf32>
    %97 = arith.cmpf oge, %69, %15 : vector<64x128xf32>
    %98 = arith.extui %97 : vector<64x128xi1> to vector<64x128xi32>
    %99 = arith.sitofp %98 : vector<64x128xi32> to vector<64x128xf32>
    %100 = arith.cmpf oge, %87, %15 : vector<64x128xf32>
    %101 = arith.extui %100 : vector<64x128xi1> to vector<64x128xi32>
    %102 = arith.sitofp %101 : vector<64x128xi32> to vector<64x128xf32>
    %103 = arith.cmpf oge, %33, %15 : vector<64x128xf32>
    %104 = arith.extui %103 : vector<64x128xi1> to vector<64x128xi32>
    %105 = arith.sitofp %104 : vector<64x128xi32> to vector<64x128xf32>
    %106 = arith.cmpf oge, %78, %15 : vector<64x128xf32>
    %107 = arith.extui %106 : vector<64x128xi1> to vector<64x128xi32>
    %108 = arith.sitofp %107 : vector<64x128xi32> to vector<64x128xf32>
    %109 = arith.cmpf oge, %60, %15 : vector<64x128xf32>
    %110 = arith.extui %109 : vector<64x128xi1> to vector<64x128xi32>
    %111 = arith.sitofp %110 : vector<64x128xi32> to vector<64x128xf32>
    %112 = arith.addf %90, %93 : vector<64x128xf32>
    %113 = arith.addf %112, %96 : vector<64x128xf32>
    %114 = arith.addf %113, %99 : vector<64x128xf32>
    %115 = arith.addf %114, %102 : vector<64x128xf32>
    %116 = arith.addf %115, %105 : vector<64x128xf32>
    %117 = arith.addf %116, %108 : vector<64x128xf32>
    %118 = arith.addf %117, %111 : vector<64x128xf32>
    %cst_24 = arith.constant 0.000000e+00 : f32
    %119 = vector.broadcast %cst_24 : f32 to vector<64x128xf32>
    %120 = arith.subf %90, %93 : vector<64x128xf32>
    %121 = math.absf %120 : vector<64x128xf32>
    %122 = arith.addf %119, %121 : vector<64x128xf32>
    %123 = arith.subf %93, %96 : vector<64x128xf32>
    %124 = math.absf %123 : vector<64x128xf32>
    %125 = arith.addf %122, %124 : vector<64x128xf32>
    %126 = arith.subf %96, %99 : vector<64x128xf32>
    %127 = math.absf %126 : vector<64x128xf32>
    %128 = arith.addf %125, %127 : vector<64x128xf32>
    %129 = arith.subf %99, %102 : vector<64x128xf32>
    %130 = math.absf %129 : vector<64x128xf32>
    %131 = arith.addf %128, %130 : vector<64x128xf32>
    %132 = arith.subf %102, %105 : vector<64x128xf32>
    %133 = math.absf %132 : vector<64x128xf32>
    %134 = arith.addf %131, %133 : vector<64x128xf32>
    %135 = arith.subf %105, %108 : vector<64x128xf32>
    %136 = math.absf %135 : vector<64x128xf32>
    %137 = arith.addf %134, %136 : vector<64x128xf32>
    %138 = arith.subf %108, %111 : vector<64x128xf32>
    %139 = math.absf %138 : vector<64x128xf32>
    %140 = arith.addf %137, %139 : vector<64x128xf32>
    %141 = arith.subf %111, %90 : vector<64x128xf32>
    %142 = math.absf %141 : vector<64x128xf32>
    %143 = arith.addf %140, %142 : vector<64x128xf32>
    %cst_25 = arith.constant 2.000000e+00 : f32
    %144 = vector.broadcast %cst_25 : f32 to vector<64x128xf32>
    %145 = arith.cmpf ole, %143, %144 : vector<64x128xf32>
    %cst_26 = arith.constant 9.000000e+00 : f32
    %146 = vector.broadcast %cst_26 : f32 to vector<64x128xf32>
    %147 = arith.select %145, %118, %146 : vector<64x128xi1>, vector<64x128xf32>
    %148 = vector.shape_cast %147 : vector<64x128xf32> to vector<1x64x128xf32>
    %cst_27 = arith.constant dense<0xFF800000> : vector<1xf32>
    %149 = vector.multi_reduction <maximumf>, %148, %cst_27 [1, 2] : vector<1x64x128xf32> to vector<1xf32>
    %150 = vector.shape_cast %149 : vector<1xf32> to vector<1x1x1xf32>
    %151 = vector.extract %150[0, 0, 0] : f32 from vector<1x1x1xf32>
    %152 = vector.broadcast %151 : f32 to vector<1x1xf32>
    %cst_28 = arith.constant 9.99999997E-7 : f32
    %153 = vector.broadcast %cst_28 : f32 to vector<1x1xf32>
    %154 = arith.maximumf %152, %153 : vector<1x1xf32>
    %155 = vector.broadcast %154 : vector<1x1xf32> to vector<64x128xf32>
    %156 = arith.divf %147, %155 : vector<64x128xf32>
    %c0_29 = arith.constant 0 : index
    %157 = memref.load %arg3[%c0_29] : memref<37xf32, #tpu.memory_space<smem>>
    %c1_30 = arith.constant 1 : index
    %158 = memref.load %arg3[%c1_30] : memref<37xf32, #tpu.memory_space<smem>>
    %c2_31 = arith.constant 2 : index
    %159 = memref.load %arg3[%c2_31] : memref<37xf32, #tpu.memory_space<smem>>
    %c3 = arith.constant 3 : index
    %160 = memref.load %arg3[%c3] : memref<37xf32, #tpu.memory_space<smem>>
    %c4 = arith.constant 4 : index
    %161 = memref.load %arg3[%c4] : memref<37xf32, #tpu.memory_space<smem>>
    %c5 = arith.constant 5 : index
    %162 = memref.load %arg3[%c5] : memref<37xf32, #tpu.memory_space<smem>>
    %c6 = arith.constant 6 : index
    %163 = memref.load %arg3[%c6] : memref<37xf32, #tpu.memory_space<smem>>
    %c7 = arith.constant 7 : index
    %164 = memref.load %arg3[%c7] : memref<37xf32, #tpu.memory_space<smem>>
    %c8 = arith.constant 8 : index
    %165 = memref.load %arg3[%c8] : memref<37xf32, #tpu.memory_space<smem>>
    %c9 = arith.constant 9 : index
    %166 = memref.load %arg3[%c9] : memref<37xf32, #tpu.memory_space<smem>>
    %c10 = arith.constant 10 : index
    %167 = memref.load %arg3[%c10] : memref<37xf32, #tpu.memory_space<smem>>
    %c11 = arith.constant 11 : index
    %168 = memref.load %arg3[%c11] : memref<37xf32, #tpu.memory_space<smem>>
    %c12 = arith.constant 12 : index
    %169 = memref.load %arg3[%c12] : memref<37xf32, #tpu.memory_space<smem>>
    %c13 = arith.constant 13 : index
    %170 = memref.load %arg3[%c13] : memref<37xf32, #tpu.memory_space<smem>>
    %c14 = arith.constant 14 : index
    %171 = memref.load %arg3[%c14] : memref<37xf32, #tpu.memory_space<smem>>
    %c15 = arith.constant 15 : index
    %172 = memref.load %arg3[%c15] : memref<37xf32, #tpu.memory_space<smem>>
    %c16 = arith.constant 16 : index
    %173 = memref.load %arg3[%c16] : memref<37xf32, #tpu.memory_space<smem>>
    %c17 = arith.constant 17 : index
    %174 = memref.load %arg3[%c17] : memref<37xf32, #tpu.memory_space<smem>>
    %c18 = arith.constant 18 : index
    %175 = memref.load %arg3[%c18] : memref<37xf32, #tpu.memory_space<smem>>
    %c19 = arith.constant 19 : index
    %176 = memref.load %arg3[%c19] : memref<37xf32, #tpu.memory_space<smem>>
    %c20 = arith.constant 20 : index
    %177 = memref.load %arg3[%c20] : memref<37xf32, #tpu.memory_space<smem>>
    %c21 = arith.constant 21 : index
    %178 = memref.load %arg3[%c21] : memref<37xf32, #tpu.memory_space<smem>>
    %c22 = arith.constant 22 : index
    %179 = memref.load %arg3[%c22] : memref<37xf32, #tpu.memory_space<smem>>
    %c23 = arith.constant 23 : index
    %180 = memref.load %arg3[%c23] : memref<37xf32, #tpu.memory_space<smem>>
    %c24 = arith.constant 24 : index
    %181 = memref.load %arg3[%c24] : memref<37xf32, #tpu.memory_space<smem>>
    %c25 = arith.constant 25 : index
    %182 = memref.load %arg3[%c25] : memref<37xf32, #tpu.memory_space<smem>>
    %c26 = arith.constant 26 : index
    %183 = memref.load %arg3[%c26] : memref<37xf32, #tpu.memory_space<smem>>
    %c27 = arith.constant 27 : index
    %184 = memref.load %arg3[%c27] : memref<37xf32, #tpu.memory_space<smem>>
    %c28 = arith.constant 28 : index
    %185 = memref.load %arg3[%c28] : memref<37xf32, #tpu.memory_space<smem>>
    %c29 = arith.constant 29 : index
    %186 = memref.load %arg3[%c29] : memref<37xf32, #tpu.memory_space<smem>>
    %c30 = arith.constant 30 : index
    %187 = memref.load %arg3[%c30] : memref<37xf32, #tpu.memory_space<smem>>
    %c31 = arith.constant 31 : index
    %188 = memref.load %arg3[%c31] : memref<37xf32, #tpu.memory_space<smem>>
    %c32 = arith.constant 32 : index
    %189 = memref.load %arg3[%c32] : memref<37xf32, #tpu.memory_space<smem>>
    %c33 = arith.constant 33 : index
    %190 = memref.load %arg3[%c33] : memref<37xf32, #tpu.memory_space<smem>>
    %c34 = arith.constant 34 : index
    %191 = memref.load %arg3[%c34] : memref<37xf32, #tpu.memory_space<smem>>
    %c35 = arith.constant 35 : index
    %192 = memref.load %arg3[%c35] : memref<37xf32, #tpu.memory_space<smem>>
    %c36 = arith.constant 36 : index
    %193 = memref.load %arg3[%c36] : memref<37xf32, #tpu.memory_space<smem>>
    %cst_32 = arith.constant 0.000000e+00 : f32
    %194 = vector.broadcast %cst_32 : f32 to vector<64x128xf32>
    %c1_i32_33 = arith.constant 1 : i32
    %195 = vector.broadcast %c1_i32_33 : i32 to vector<64x1xi32>
    %196 = arith.cmpi sge, %6, %195 : vector<64x1xi32>
    %197 = vector.extract_strided_slice %1 {offsets = [63, 0], sizes = [1, 128], strides = [1, 1]} : vector<64x128xf32> to vector<1x128xf32>
    %198 = vector.extract_strided_slice %1 {offsets = [0, 0], sizes = [63, 128], strides = [1, 1]} : vector<64x128xf32> to vector<63x128xf32>
    %199 = tpu.concatenate %197, %198 in 0 : vector<1x128xf32>, vector<63x128xf32> -> vector<64x128xf32>
    %cst_34 = arith.constant 0.000000e+00 : f32
    %200 = vector.shape_cast %196 : vector<64x1xi1> to vector<64x1xi1>
    %201 = vector.broadcast %200 : vector<64x1xi1> to vector<64x128xi1>
    %202 = vector.broadcast %cst_34 : f32 to vector<64x128xf32>
    %203 = arith.select %201, %199, %202 : vector<64x128xi1>, vector<64x128xf32>
    %c62_i32_35 = arith.constant 62 : i32
    %204 = vector.broadcast %c62_i32_35 : i32 to vector<64x1xi32>
    %205 = arith.cmpi sle, %6, %204 : vector<64x1xi32>
    %206 = vector.extract_strided_slice %1 {offsets = [1, 0], sizes = [63, 128], strides = [1, 1]} : vector<64x128xf32> to vector<63x128xf32>
    %207 = vector.extract_strided_slice %1 {offsets = [0, 0], sizes = [1, 128], strides = [1, 1]} : vector<64x128xf32> to vector<1x128xf32>
    %208 = tpu.concatenate %206, %207 in 0 : vector<63x128xf32>, vector<1x128xf32> -> vector<64x128xf32>
    %cst_36 = arith.constant 0.000000e+00 : f32
    %209 = vector.shape_cast %205 : vector<64x1xi1> to vector<64x1xi1>
    %210 = vector.broadcast %209 : vector<64x1xi1> to vector<64x128xi1>
    %211 = vector.broadcast %cst_36 : f32 to vector<64x128xf32>
    %212 = arith.select %210, %208, %211 : vector<64x128xi1>, vector<64x128xf32>
    %c1_i32_37 = arith.constant 1 : i32
    %213 = vector.broadcast %c1_i32_37 : i32 to vector<1x128xi32>
    %214 = arith.cmpi sge, %7, %213 : vector<1x128xi32>
    %215 = vector.extract_strided_slice %203 {offsets = [0, 127], sizes = [64, 1], strides = [1, 1]} : vector<64x128xf32> to vector<64x1xf32>
    %216 = vector.extract_strided_slice %203 {offsets = [0, 0], sizes = [64, 127], strides = [1, 1]} : vector<64x128xf32> to vector<64x127xf32>
    %217 = tpu.concatenate %215, %216 in 1 : vector<64x1xf32>, vector<64x127xf32> -> vector<64x128xf32>
    %cst_38 = arith.constant 0.000000e+00 : f32
    %218 = vector.shape_cast %214 : vector<1x128xi1> to vector<1x128xi1>
    %219 = vector.broadcast %218 : vector<1x128xi1> to vector<64x128xi1>
    %220 = vector.broadcast %cst_38 : f32 to vector<64x128xf32>
    %221 = arith.select %219, %217, %220 : vector<64x128xi1>, vector<64x128xf32>
    %c126_i32_39 = arith.constant 126 : i32
    %222 = vector.broadcast %c126_i32_39 : i32 to vector<1x128xi32>
    %223 = arith.cmpi sle, %7, %222 : vector<1x128xi32>
    %224 = vector.extract_strided_slice %203 {offsets = [0, 1], sizes = [64, 127], strides = [1, 1]} : vector<64x128xf32> to vector<64x127xf32>
    %225 = vector.extract_strided_slice %203 {offsets = [0, 0], sizes = [64, 1], strides = [1, 1]} : vector<64x128xf32> to vector<64x1xf32>
    %226 = tpu.concatenate %224, %225 in 1 : vector<64x127xf32>, vector<64x1xf32> -> vector<64x128xf32>
    %cst_40 = arith.constant 0.000000e+00 : f32
    %227 = vector.shape_cast %223 : vector<1x128xi1> to vector<1x128xi1>
    %228 = vector.broadcast %227 : vector<1x128xi1> to vector<64x128xi1>
    %229 = vector.broadcast %cst_40 : f32 to vector<64x128xf32>
    %230 = arith.select %228, %226, %229 : vector<64x128xi1>, vector<64x128xf32>
    %c1_i32_41 = arith.constant 1 : i32
    %231 = vector.broadcast %c1_i32_41 : i32 to vector<1x128xi32>
    %232 = arith.cmpi sge, %7, %231 : vector<1x128xi32>
    %233 = vector.extract_strided_slice %1 {offsets = [0, 127], sizes = [64, 1], strides = [1, 1]} : vector<64x128xf32> to vector<64x1xf32>
    %234 = vector.extract_strided_slice %1 {offsets = [0, 0], sizes = [64, 127], strides = [1, 1]} : vector<64x128xf32> to vector<64x127xf32>
    %235 = tpu.concatenate %233, %234 in 1 : vector<64x1xf32>, vector<64x127xf32> -> vector<64x128xf32>
    %cst_42 = arith.constant 0.000000e+00 : f32
    %236 = vector.shape_cast %232 : vector<1x128xi1> to vector<1x128xi1>
    %237 = vector.broadcast %236 : vector<1x128xi1> to vector<64x128xi1>
    %238 = vector.broadcast %cst_42 : f32 to vector<64x128xf32>
    %239 = arith.select %237, %235, %238 : vector<64x128xi1>, vector<64x128xf32>
    %c126_i32_43 = arith.constant 126 : i32
    %240 = vector.broadcast %c126_i32_43 : i32 to vector<1x128xi32>
    %241 = arith.cmpi sle, %7, %240 : vector<1x128xi32>
    %242 = vector.extract_strided_slice %1 {offsets = [0, 1], sizes = [64, 127], strides = [1, 1]} : vector<64x128xf32> to vector<64x127xf32>
    %243 = vector.extract_strided_slice %1 {offsets = [0, 0], sizes = [64, 1], strides = [1, 1]} : vector<64x128xf32> to vector<64x1xf32>
    %244 = tpu.concatenate %242, %243 in 1 : vector<64x127xf32>, vector<64x1xf32> -> vector<64x128xf32>
    %cst_44 = arith.constant 0.000000e+00 : f32
    %245 = vector.shape_cast %241 : vector<1x128xi1> to vector<1x128xi1>
    %246 = vector.broadcast %245 : vector<1x128xi1> to vector<64x128xi1>
    %247 = vector.broadcast %cst_44 : f32 to vector<64x128xf32>
    %248 = arith.select %246, %244, %247 : vector<64x128xi1>, vector<64x128xf32>
    %c1_i32_45 = arith.constant 1 : i32
    %249 = vector.broadcast %c1_i32_45 : i32 to vector<1x128xi32>
    %250 = arith.cmpi sge, %7, %249 : vector<1x128xi32>
    %251 = vector.extract_strided_slice %212 {offsets = [0, 127], sizes = [64, 1], strides = [1, 1]} : vector<64x128xf32> to vector<64x1xf32>
    %252 = vector.extract_strided_slice %212 {offsets = [0, 0], sizes = [64, 127], strides = [1, 1]} : vector<64x128xf32> to vector<64x127xf32>
    %253 = tpu.concatenate %251, %252 in 1 : vector<64x1xf32>, vector<64x127xf32> -> vector<64x128xf32>
    %cst_46 = arith.constant 0.000000e+00 : f32
    %254 = vector.shape_cast %250 : vector<1x128xi1> to vector<1x128xi1>
    %255 = vector.broadcast %254 : vector<1x128xi1> to vector<64x128xi1>
    %256 = vector.broadcast %cst_46 : f32 to vector<64x128xf32>
    %257 = arith.select %255, %253, %256 : vector<64x128xi1>, vector<64x128xf32>
    %c126_i32_47 = arith.constant 126 : i32
    %258 = vector.broadcast %c126_i32_47 : i32 to vector<1x128xi32>
    %259 = arith.cmpi sle, %7, %258 : vector<1x128xi32>
    %260 = vector.extract_strided_slice %212 {offsets = [0, 1], sizes = [64, 127], strides = [1, 1]} : vector<64x128xf32> to vector<64x127xf32>
    %261 = vector.extract_strided_slice %212 {offsets = [0, 0], sizes = [64, 1], strides = [1, 1]} : vector<64x128xf32> to vector<64x1xf32>
    %262 = tpu.concatenate %260, %261 in 1 : vector<64x127xf32>, vector<64x1xf32> -> vector<64x128xf32>
    %cst_48 = arith.constant 0.000000e+00 : f32
    %263 = vector.shape_cast %259 : vector<1x128xi1> to vector<1x128xi1>
    %264 = vector.broadcast %263 : vector<1x128xi1> to vector<64x128xi1>
    %265 = vector.broadcast %cst_48 : f32 to vector<64x128xf32>
    %266 = arith.select %264, %262, %265 : vector<64x128xi1>, vector<64x128xf32>
    %267 = vector.broadcast %157 : f32 to vector<64x128xf32>
    %268 = arith.mulf %221, %267 : vector<64x128xf32>
    %269 = arith.addf %194, %268 : vector<64x128xf32>
    %270 = vector.broadcast %158 : f32 to vector<64x128xf32>
    %271 = arith.mulf %203, %270 : vector<64x128xf32>
    %272 = arith.addf %269, %271 : vector<64x128xf32>
    %273 = vector.broadcast %159 : f32 to vector<64x128xf32>
    %274 = arith.mulf %230, %273 : vector<64x128xf32>
    %275 = arith.addf %272, %274 : vector<64x128xf32>
    %276 = vector.broadcast %160 : f32 to vector<64x128xf32>
    %277 = arith.mulf %239, %276 : vector<64x128xf32>
    %278 = arith.addf %275, %277 : vector<64x128xf32>
    %279 = vector.broadcast %161 : f32 to vector<64x128xf32>
    %280 = arith.mulf %1, %279 : vector<64x128xf32>
    %281 = arith.addf %278, %280 : vector<64x128xf32>
    %282 = vector.broadcast %162 : f32 to vector<64x128xf32>
    %283 = arith.mulf %248, %282 : vector<64x128xf32>
    %284 = arith.addf %281, %283 : vector<64x128xf32>
    %285 = vector.broadcast %163 : f32 to vector<64x128xf32>
    %286 = arith.mulf %257, %285 : vector<64x128xf32>
    %287 = arith.addf %284, %286 : vector<64x128xf32>
    %288 = vector.broadcast %164 : f32 to vector<64x128xf32>
    %289 = arith.mulf %212, %288 : vector<64x128xf32>
    %290 = arith.addf %287, %289 : vector<64x128xf32>
    %291 = vector.broadcast %165 : f32 to vector<64x128xf32>
    %292 = arith.mulf %266, %291 : vector<64x128xf32>
    %293 = arith.addf %290, %292 : vector<64x128xf32>
    %c1_i32_49 = arith.constant 1 : i32
    %294 = vector.broadcast %c1_i32_49 : i32 to vector<64x1xi32>
    %295 = arith.cmpi sge, %6, %294 : vector<64x1xi32>
    %296 = vector.extract_strided_slice %3 {offsets = [63, 0], sizes = [1, 128], strides = [1, 1]} : vector<64x128xf32> to vector<1x128xf32>
    %297 = vector.extract_strided_slice %3 {offsets = [0, 0], sizes = [63, 128], strides = [1, 1]} : vector<64x128xf32> to vector<63x128xf32>
    %298 = tpu.concatenate %296, %297 in 0 : vector<1x128xf32>, vector<63x128xf32> -> vector<64x128xf32>
    %cst_50 = arith.constant 0.000000e+00 : f32
    %299 = vector.shape_cast %295 : vector<64x1xi1> to vector<64x1xi1>
    %300 = vector.broadcast %299 : vector<64x1xi1> to vector<64x128xi1>
    %301 = vector.broadcast %cst_50 : f32 to vector<64x128xf32>
    %302 = arith.select %300, %298, %301 : vector<64x128xi1>, vector<64x128xf32>
    %c62_i32_51 = arith.constant 62 : i32
    %303 = vector.broadcast %c62_i32_51 : i32 to vector<64x1xi32>
    %304 = arith.cmpi sle, %6, %303 : vector<64x1xi32>
    %305 = vector.extract_strided_slice %3 {offsets = [1, 0], sizes = [63, 128], strides = [1, 1]} : vector<64x128xf32> to vector<63x128xf32>
    %306 = vector.extract_strided_slice %3 {offsets = [0, 0], sizes = [1, 128], strides = [1, 1]} : vector<64x128xf32> to vector<1x128xf32>
    %307 = tpu.concatenate %305, %306 in 0 : vector<63x128xf32>, vector<1x128xf32> -> vector<64x128xf32>
    %cst_52 = arith.constant 0.000000e+00 : f32
    %308 = vector.shape_cast %304 : vector<64x1xi1> to vector<64x1xi1>
    %309 = vector.broadcast %308 : vector<64x1xi1> to vector<64x128xi1>
    %310 = vector.broadcast %cst_52 : f32 to vector<64x128xf32>
    %311 = arith.select %309, %307, %310 : vector<64x128xi1>, vector<64x128xf32>
    %c1_i32_53 = arith.constant 1 : i32
    %312 = vector.broadcast %c1_i32_53 : i32 to vector<1x128xi32>
    %313 = arith.cmpi sge, %7, %312 : vector<1x128xi32>
    %314 = vector.extract_strided_slice %302 {offsets = [0, 127], sizes = [64, 1], strides = [1, 1]} : vector<64x128xf32> to vector<64x1xf32>
    %315 = vector.extract_strided_slice %302 {offsets = [0, 0], sizes = [64, 127], strides = [1, 1]} : vector<64x128xf32> to vector<64x127xf32>
    %316 = tpu.concatenate %314, %315 in 1 : vector<64x1xf32>, vector<64x127xf32> -> vector<64x128xf32>
    %cst_54 = arith.constant 0.000000e+00 : f32
    %317 = vector.shape_cast %313 : vector<1x128xi1> to vector<1x128xi1>
    %318 = vector.broadcast %317 : vector<1x128xi1> to vector<64x128xi1>
    %319 = vector.broadcast %cst_54 : f32 to vector<64x128xf32>
    %320 = arith.select %318, %316, %319 : vector<64x128xi1>, vector<64x128xf32>
    %c126_i32_55 = arith.constant 126 : i32
    %321 = vector.broadcast %c126_i32_55 : i32 to vector<1x128xi32>
    %322 = arith.cmpi sle, %7, %321 : vector<1x128xi32>
    %323 = vector.extract_strided_slice %302 {offsets = [0, 1], sizes = [64, 127], strides = [1, 1]} : vector<64x128xf32> to vector<64x127xf32>
    %324 = vector.extract_strided_slice %302 {offsets = [0, 0], sizes = [64, 1], strides = [1, 1]} : vector<64x128xf32> to vector<64x1xf32>
    %325 = tpu.concatenate %323, %324 in 1 : vector<64x127xf32>, vector<64x1xf32> -> vector<64x128xf32>
    %cst_56 = arith.constant 0.000000e+00 : f32
    %326 = vector.shape_cast %322 : vector<1x128xi1> to vector<1x128xi1>
    %327 = vector.broadcast %326 : vector<1x128xi1> to vector<64x128xi1>
    %328 = vector.broadcast %cst_56 : f32 to vector<64x128xf32>
    %329 = arith.select %327, %325, %328 : vector<64x128xi1>, vector<64x128xf32>
    %c1_i32_57 = arith.constant 1 : i32
    %330 = vector.broadcast %c1_i32_57 : i32 to vector<1x128xi32>
    %331 = arith.cmpi sge, %7, %330 : vector<1x128xi32>
    %332 = vector.extract_strided_slice %3 {offsets = [0, 127], sizes = [64, 1], strides = [1, 1]} : vector<64x128xf32> to vector<64x1xf32>
    %333 = vector.extract_strided_slice %3 {offsets = [0, 0], sizes = [64, 127], strides = [1, 1]} : vector<64x128xf32> to vector<64x127xf32>
    %334 = tpu.concatenate %332, %333 in 1 : vector<64x1xf32>, vector<64x127xf32> -> vector<64x128xf32>
    %cst_58 = arith.constant 0.000000e+00 : f32
    %335 = vector.shape_cast %331 : vector<1x128xi1> to vector<1x128xi1>
    %336 = vector.broadcast %335 : vector<1x128xi1> to vector<64x128xi1>
    %337 = vector.broadcast %cst_58 : f32 to vector<64x128xf32>
    %338 = arith.select %336, %334, %337 : vector<64x128xi1>, vector<64x128xf32>
    %c126_i32_59 = arith.constant 126 : i32
    %339 = vector.broadcast %c126_i32_59 : i32 to vector<1x128xi32>
    %340 = arith.cmpi sle, %7, %339 : vector<1x128xi32>
    %341 = vector.extract_strided_slice %3 {offsets = [0, 1], sizes = [64, 127], strides = [1, 1]} : vector<64x128xf32> to vector<64x127xf32>
    %342 = vector.extract_strided_slice %3 {offsets = [0, 0], sizes = [64, 1], strides = [1, 1]} : vector<64x128xf32> to vector<64x1xf32>
    %343 = tpu.concatenate %341, %342 in 1 : vector<64x127xf32>, vector<64x1xf32> -> vector<64x128xf32>
    %cst_60 = arith.constant 0.000000e+00 : f32
    %344 = vector.shape_cast %340 : vector<1x128xi1> to vector<1x128xi1>
    %345 = vector.broadcast %344 : vector<1x128xi1> to vector<64x128xi1>
    %346 = vector.broadcast %cst_60 : f32 to vector<64x128xf32>
    %347 = arith.select %345, %343, %346 : vector<64x128xi1>, vector<64x128xf32>
    %c1_i32_61 = arith.constant 1 : i32
    %348 = vector.broadcast %c1_i32_61 : i32 to vector<1x128xi32>
    %349 = arith.cmpi sge, %7, %348 : vector<1x128xi32>
    %350 = vector.extract_strided_slice %311 {offsets = [0, 127], sizes = [64, 1], strides = [1, 1]} : vector<64x128xf32> to vector<64x1xf32>
    %351 = vector.extract_strided_slice %311 {offsets = [0, 0], sizes = [64, 127], strides = [1, 1]} : vector<64x128xf32> to vector<64x127xf32>
    %352 = tpu.concatenate %350, %351 in 1 : vector<64x1xf32>, vector<64x127xf32> -> vector<64x128xf32>
    %cst_62 = arith.constant 0.000000e+00 : f32
    %353 = vector.shape_cast %349 : vector<1x128xi1> to vector<1x128xi1>
    %354 = vector.broadcast %353 : vector<1x128xi1> to vector<64x128xi1>
    %355 = vector.broadcast %cst_62 : f32 to vector<64x128xf32>
    %356 = arith.select %354, %352, %355 : vector<64x128xi1>, vector<64x128xf32>
    %c126_i32_63 = arith.constant 126 : i32
    %357 = vector.broadcast %c126_i32_63 : i32 to vector<1x128xi32>
    %358 = arith.cmpi sle, %7, %357 : vector<1x128xi32>
    %359 = vector.extract_strided_slice %311 {offsets = [0, 1], sizes = [64, 127], strides = [1, 1]} : vector<64x128xf32> to vector<64x127xf32>
    %360 = vector.extract_strided_slice %311 {offsets = [0, 0], sizes = [64, 1], strides = [1, 1]} : vector<64x128xf32> to vector<64x1xf32>
    %361 = tpu.concatenate %359, %360 in 1 : vector<64x127xf32>, vector<64x1xf32> -> vector<64x128xf32>
    %cst_64 = arith.constant 0.000000e+00 : f32
    %362 = vector.shape_cast %358 : vector<1x128xi1> to vector<1x128xi1>
    %363 = vector.broadcast %362 : vector<1x128xi1> to vector<64x128xi1>
    %364 = vector.broadcast %cst_64 : f32 to vector<64x128xf32>
    %365 = arith.select %363, %361, %364 : vector<64x128xi1>, vector<64x128xf32>
    %366 = vector.broadcast %166 : f32 to vector<64x128xf32>
    %367 = arith.mulf %320, %366 : vector<64x128xf32>
    %368 = arith.addf %293, %367 : vector<64x128xf32>
    %369 = vector.broadcast %167 : f32 to vector<64x128xf32>
    %370 = arith.mulf %302, %369 : vector<64x128xf32>
    %371 = arith.addf %368, %370 : vector<64x128xf32>
    %372 = vector.broadcast %168 : f32 to vector<64x128xf32>
    %373 = arith.mulf %329, %372 : vector<64x128xf32>
    %374 = arith.addf %371, %373 : vector<64x128xf32>
    %375 = vector.broadcast %169 : f32 to vector<64x128xf32>
    %376 = arith.mulf %338, %375 : vector<64x128xf32>
    %377 = arith.addf %374, %376 : vector<64x128xf32>
    %378 = vector.broadcast %170 : f32 to vector<64x128xf32>
    %379 = arith.mulf %3, %378 : vector<64x128xf32>
    %380 = arith.addf %377, %379 : vector<64x128xf32>
    %381 = vector.broadcast %171 : f32 to vector<64x128xf32>
    %382 = arith.mulf %347, %381 : vector<64x128xf32>
    %383 = arith.addf %380, %382 : vector<64x128xf32>
    %384 = vector.broadcast %172 : f32 to vector<64x128xf32>
    %385 = arith.mulf %356, %384 : vector<64x128xf32>
    %386 = arith.addf %383, %385 : vector<64x128xf32>
    %387 = vector.broadcast %173 : f32 to vector<64x128xf32>
    %388 = arith.mulf %311, %387 : vector<64x128xf32>
    %389 = arith.addf %386, %388 : vector<64x128xf32>
    %390 = vector.broadcast %174 : f32 to vector<64x128xf32>
    %391 = arith.mulf %365, %390 : vector<64x128xf32>
    %392 = arith.addf %389, %391 : vector<64x128xf32>
    %c1_i32_65 = arith.constant 1 : i32
    %393 = vector.broadcast %c1_i32_65 : i32 to vector<64x1xi32>
    %394 = arith.cmpi sge, %6, %393 : vector<64x1xi32>
    %395 = vector.extract_strided_slice %5 {offsets = [63, 0], sizes = [1, 128], strides = [1, 1]} : vector<64x128xf32> to vector<1x128xf32>
    %396 = vector.extract_strided_slice %5 {offsets = [0, 0], sizes = [63, 128], strides = [1, 1]} : vector<64x128xf32> to vector<63x128xf32>
    %397 = tpu.concatenate %395, %396 in 0 : vector<1x128xf32>, vector<63x128xf32> -> vector<64x128xf32>
    %cst_66 = arith.constant 0.000000e+00 : f32
    %398 = vector.shape_cast %394 : vector<64x1xi1> to vector<64x1xi1>
    %399 = vector.broadcast %398 : vector<64x1xi1> to vector<64x128xi1>
    %400 = vector.broadcast %cst_66 : f32 to vector<64x128xf32>
    %401 = arith.select %399, %397, %400 : vector<64x128xi1>, vector<64x128xf32>
    %c62_i32_67 = arith.constant 62 : i32
    %402 = vector.broadcast %c62_i32_67 : i32 to vector<64x1xi32>
    %403 = arith.cmpi sle, %6, %402 : vector<64x1xi32>
    %404 = vector.extract_strided_slice %5 {offsets = [1, 0], sizes = [63, 128], strides = [1, 1]} : vector<64x128xf32> to vector<63x128xf32>
    %405 = vector.extract_strided_slice %5 {offsets = [0, 0], sizes = [1, 128], strides = [1, 1]} : vector<64x128xf32> to vector<1x128xf32>
    %406 = tpu.concatenate %404, %405 in 0 : vector<63x128xf32>, vector<1x128xf32> -> vector<64x128xf32>
    %cst_68 = arith.constant 0.000000e+00 : f32
    %407 = vector.shape_cast %403 : vector<64x1xi1> to vector<64x1xi1>
    %408 = vector.broadcast %407 : vector<64x1xi1> to vector<64x128xi1>
    %409 = vector.broadcast %cst_68 : f32 to vector<64x128xf32>
    %410 = arith.select %408, %406, %409 : vector<64x128xi1>, vector<64x128xf32>
    %c1_i32_69 = arith.constant 1 : i32
    %411 = vector.broadcast %c1_i32_69 : i32 to vector<1x128xi32>
    %412 = arith.cmpi sge, %7, %411 : vector<1x128xi32>
    %413 = vector.extract_strided_slice %401 {offsets = [0, 127], sizes = [64, 1], strides = [1, 1]} : vector<64x128xf32> to vector<64x1xf32>
    %414 = vector.extract_strided_slice %401 {offsets = [0, 0], sizes = [64, 127], strides = [1, 1]} : vector<64x128xf32> to vector<64x127xf32>
    %415 = tpu.concatenate %413, %414 in 1 : vector<64x1xf32>, vector<64x127xf32> -> vector<64x128xf32>
    %cst_70 = arith.constant 0.000000e+00 : f32
    %416 = vector.shape_cast %412 : vector<1x128xi1> to vector<1x128xi1>
    %417 = vector.broadcast %416 : vector<1x128xi1> to vector<64x128xi1>
    %418 = vector.broadcast %cst_70 : f32 to vector<64x128xf32>
    %419 = arith.select %417, %415, %418 : vector<64x128xi1>, vector<64x128xf32>
    %c126_i32_71 = arith.constant 126 : i32
    %420 = vector.broadcast %c126_i32_71 : i32 to vector<1x128xi32>
    %421 = arith.cmpi sle, %7, %420 : vector<1x128xi32>
    %422 = vector.extract_strided_slice %401 {offsets = [0, 1], sizes = [64, 127], strides = [1, 1]} : vector<64x128xf32> to vector<64x127xf32>
    %423 = vector.extract_strided_slice %401 {offsets = [0, 0], sizes = [64, 1], strides = [1, 1]} : vector<64x128xf32> to vector<64x1xf32>
    %424 = tpu.concatenate %422, %423 in 1 : vector<64x127xf32>, vector<64x1xf32> -> vector<64x128xf32>
    %cst_72 = arith.constant 0.000000e+00 : f32
    %425 = vector.shape_cast %421 : vector<1x128xi1> to vector<1x128xi1>
    %426 = vector.broadcast %425 : vector<1x128xi1> to vector<64x128xi1>
    %427 = vector.broadcast %cst_72 : f32 to vector<64x128xf32>
    %428 = arith.select %426, %424, %427 : vector<64x128xi1>, vector<64x128xf32>
    %c1_i32_73 = arith.constant 1 : i32
    %429 = vector.broadcast %c1_i32_73 : i32 to vector<1x128xi32>
    %430 = arith.cmpi sge, %7, %429 : vector<1x128xi32>
    %431 = vector.extract_strided_slice %5 {offsets = [0, 127], sizes = [64, 1], strides = [1, 1]} : vector<64x128xf32> to vector<64x1xf32>
    %432 = vector.extract_strided_slice %5 {offsets = [0, 0], sizes = [64, 127], strides = [1, 1]} : vector<64x128xf32> to vector<64x127xf32>
    %433 = tpu.concatenate %431, %432 in 1 : vector<64x1xf32>, vector<64x127xf32> -> vector<64x128xf32>
    %cst_74 = arith.constant 0.000000e+00 : f32
    %434 = vector.shape_cast %430 : vector<1x128xi1> to vector<1x128xi1>
    %435 = vector.broadcast %434 : vector<1x128xi1> to vector<64x128xi1>
    %436 = vector.broadcast %cst_74 : f32 to vector<64x128xf32>
    %437 = arith.select %435, %433, %436 : vector<64x128xi1>, vector<64x128xf32>
    %c126_i32_75 = arith.constant 126 : i32
    %438 = vector.broadcast %c126_i32_75 : i32 to vector<1x128xi32>
    %439 = arith.cmpi sle, %7, %438 : vector<1x128xi32>
    %440 = vector.extract_strided_slice %5 {offsets = [0, 1], sizes = [64, 127], strides = [1, 1]} : vector<64x128xf32> to vector<64x127xf32>
    %441 = vector.extract_strided_slice %5 {offsets = [0, 0], sizes = [64, 1], strides = [1, 1]} : vector<64x128xf32> to vector<64x1xf32>
    %442 = tpu.concatenate %440, %441 in 1 : vector<64x127xf32>, vector<64x1xf32> -> vector<64x128xf32>
    %cst_76 = arith.constant 0.000000e+00 : f32
    %443 = vector.shape_cast %439 : vector<1x128xi1> to vector<1x128xi1>
    %444 = vector.broadcast %443 : vector<1x128xi1> to vector<64x128xi1>
    %445 = vector.broadcast %cst_76 : f32 to vector<64x128xf32>
    %446 = arith.select %444, %442, %445 : vector<64x128xi1>, vector<64x128xf32>
    %c1_i32_77 = arith.constant 1 : i32
    %447 = vector.broadcast %c1_i32_77 : i32 to vector<1x128xi32>
    %448 = arith.cmpi sge, %7, %447 : vector<1x128xi32>
    %449 = vector.extract_strided_slice %410 {offsets = [0, 127], sizes = [64, 1], strides = [1, 1]} : vector<64x128xf32> to vector<64x1xf32>
    %450 = vector.extract_strided_slice %410 {offsets = [0, 0], sizes = [64, 127], strides = [1, 1]} : vector<64x128xf32> to vector<64x127xf32>
    %451 = tpu.concatenate %449, %450 in 1 : vector<64x1xf32>, vector<64x127xf32> -> vector<64x128xf32>
    %cst_78 = arith.constant 0.000000e+00 : f32
    %452 = vector.shape_cast %448 : vector<1x128xi1> to vector<1x128xi1>
    %453 = vector.broadcast %452 : vector<1x128xi1> to vector<64x128xi1>
    %454 = vector.broadcast %cst_78 : f32 to vector<64x128xf32>
    %455 = arith.select %453, %451, %454 : vector<64x128xi1>, vector<64x128xf32>
    %c126_i32_79 = arith.constant 126 : i32
    %456 = vector.broadcast %c126_i32_79 : i32 to vector<1x128xi32>
    %457 = arith.cmpi sle, %7, %456 : vector<1x128xi32>
    %458 = vector.extract_strided_slice %410 {offsets = [0, 1], sizes = [64, 127], strides = [1, 1]} : vector<64x128xf32> to vector<64x127xf32>
    %459 = vector.extract_strided_slice %410 {offsets = [0, 0], sizes = [64, 1], strides = [1, 1]} : vector<64x128xf32> to vector<64x1xf32>
    %460 = tpu.concatenate %458, %459 in 1 : vector<64x127xf32>, vector<64x1xf32> -> vector<64x128xf32>
    %cst_80 = arith.constant 0.000000e+00 : f32
    %461 = vector.shape_cast %457 : vector<1x128xi1> to vector<1x128xi1>
    %462 = vector.broadcast %461 : vector<1x128xi1> to vector<64x128xi1>
    %463 = vector.broadcast %cst_80 : f32 to vector<64x128xf32>
    %464 = arith.select %462, %460, %463 : vector<64x128xi1>, vector<64x128xf32>
    %465 = vector.broadcast %175 : f32 to vector<64x128xf32>
    %466 = arith.mulf %419, %465 : vector<64x128xf32>
    %467 = arith.addf %392, %466 : vector<64x128xf32>
    %468 = vector.broadcast %176 : f32 to vector<64x128xf32>
    %469 = arith.mulf %401, %468 : vector<64x128xf32>
    %470 = arith.addf %467, %469 : vector<64x128xf32>
    %471 = vector.broadcast %177 : f32 to vector<64x128xf32>
    %472 = arith.mulf %428, %471 : vector<64x128xf32>
    %473 = arith.addf %470, %472 : vector<64x128xf32>
    %474 = vector.broadcast %178 : f32 to vector<64x128xf32>
    %475 = arith.mulf %437, %474 : vector<64x128xf32>
    %476 = arith.addf %473, %475 : vector<64x128xf32>
    %477 = vector.broadcast %179 : f32 to vector<64x128xf32>
    %478 = arith.mulf %5, %477 : vector<64x128xf32>
    %479 = arith.addf %476, %478 : vector<64x128xf32>
    %480 = vector.broadcast %180 : f32 to vector<64x128xf32>
    %481 = arith.mulf %446, %480 : vector<64x128xf32>
    %482 = arith.addf %479, %481 : vector<64x128xf32>
    %483 = vector.broadcast %181 : f32 to vector<64x128xf32>
    %484 = arith.mulf %455, %483 : vector<64x128xf32>
    %485 = arith.addf %482, %484 : vector<64x128xf32>
    %486 = vector.broadcast %182 : f32 to vector<64x128xf32>
    %487 = arith.mulf %410, %486 : vector<64x128xf32>
    %488 = arith.addf %485, %487 : vector<64x128xf32>
    %489 = vector.broadcast %183 : f32 to vector<64x128xf32>
    %490 = arith.mulf %464, %489 : vector<64x128xf32>
    %491 = arith.addf %488, %490 : vector<64x128xf32>
    %c1_i32_81 = arith.constant 1 : i32
    %492 = vector.broadcast %c1_i32_81 : i32 to vector<64x1xi32>
    %493 = arith.cmpi sge, %6, %492 : vector<64x1xi32>
    %494 = vector.extract_strided_slice %156 {offsets = [63, 0], sizes = [1, 128], strides = [1, 1]} : vector<64x128xf32> to vector<1x128xf32>
    %495 = vector.extract_strided_slice %156 {offsets = [0, 0], sizes = [63, 128], strides = [1, 1]} : vector<64x128xf32> to vector<63x128xf32>
    %496 = tpu.concatenate %494, %495 in 0 : vector<1x128xf32>, vector<63x128xf32> -> vector<64x128xf32>
    %cst_82 = arith.constant 0.000000e+00 : f32
    %497 = vector.shape_cast %493 : vector<64x1xi1> to vector<64x1xi1>
    %498 = vector.broadcast %497 : vector<64x1xi1> to vector<64x128xi1>
    %499 = vector.broadcast %cst_82 : f32 to vector<64x128xf32>
    %500 = arith.select %498, %496, %499 : vector<64x128xi1>, vector<64x128xf32>
    %c62_i32_83 = arith.constant 62 : i32
    %501 = vector.broadcast %c62_i32_83 : i32 to vector<64x1xi32>
    %502 = arith.cmpi sle, %6, %501 : vector<64x1xi32>
    %503 = vector.extract_strided_slice %156 {offsets = [1, 0], sizes = [63, 128], strides = [1, 1]} : vector<64x128xf32> to vector<63x128xf32>
    %504 = vector.extract_strided_slice %156 {offsets = [0, 0], sizes = [1, 128], strides = [1, 1]} : vector<64x128xf32> to vector<1x128xf32>
    %505 = tpu.concatenate %503, %504 in 0 : vector<63x128xf32>, vector<1x128xf32> -> vector<64x128xf32>
    %cst_84 = arith.constant 0.000000e+00 : f32
    %506 = vector.shape_cast %502 : vector<64x1xi1> to vector<64x1xi1>
    %507 = vector.broadcast %506 : vector<64x1xi1> to vector<64x128xi1>
    %508 = vector.broadcast %cst_84 : f32 to vector<64x128xf32>
    %509 = arith.select %507, %505, %508 : vector<64x128xi1>, vector<64x128xf32>
    %c1_i32_85 = arith.constant 1 : i32
    %510 = vector.broadcast %c1_i32_85 : i32 to vector<1x128xi32>
    %511 = arith.cmpi sge, %7, %510 : vector<1x128xi32>
    %512 = vector.extract_strided_slice %500 {offsets = [0, 127], sizes = [64, 1], strides = [1, 1]} : vector<64x128xf32> to vector<64x1xf32>
    %513 = vector.extract_strided_slice %500 {offsets = [0, 0], sizes = [64, 127], strides = [1, 1]} : vector<64x128xf32> to vector<64x127xf32>
    %514 = tpu.concatenate %512, %513 in 1 : vector<64x1xf32>, vector<64x127xf32> -> vector<64x128xf32>
    %cst_86 = arith.constant 0.000000e+00 : f32
    %515 = vector.shape_cast %511 : vector<1x128xi1> to vector<1x128xi1>
    %516 = vector.broadcast %515 : vector<1x128xi1> to vector<64x128xi1>
    %517 = vector.broadcast %cst_86 : f32 to vector<64x128xf32>
    %518 = arith.select %516, %514, %517 : vector<64x128xi1>, vector<64x128xf32>
    %c126_i32_87 = arith.constant 126 : i32
    %519 = vector.broadcast %c126_i32_87 : i32 to vector<1x128xi32>
    %520 = arith.cmpi sle, %7, %519 : vector<1x128xi32>
    %521 = vector.extract_strided_slice %500 {offsets = [0, 1], sizes = [64, 127], strides = [1, 1]} : vector<64x128xf32> to vector<64x127xf32>
    %522 = vector.extract_strided_slice %500 {offsets = [0, 0], sizes = [64, 1], strides = [1, 1]} : vector<64x128xf32> to vector<64x1xf32>
    %523 = tpu.concatenate %521, %522 in 1 : vector<64x127xf32>, vector<64x1xf32> -> vector<64x128xf32>
    %cst_88 = arith.constant 0.000000e+00 : f32
    %524 = vector.shape_cast %520 : vector<1x128xi1> to vector<1x128xi1>
    %525 = vector.broadcast %524 : vector<1x128xi1> to vector<64x128xi1>
    %526 = vector.broadcast %cst_88 : f32 to vector<64x128xf32>
    %527 = arith.select %525, %523, %526 : vector<64x128xi1>, vector<64x128xf32>
    %c1_i32_89 = arith.constant 1 : i32
    %528 = vector.broadcast %c1_i32_89 : i32 to vector<1x128xi32>
    %529 = arith.cmpi sge, %7, %528 : vector<1x128xi32>
    %530 = vector.extract_strided_slice %156 {offsets = [0, 127], sizes = [64, 1], strides = [1, 1]} : vector<64x128xf32> to vector<64x1xf32>
    %531 = vector.extract_strided_slice %156 {offsets = [0, 0], sizes = [64, 127], strides = [1, 1]} : vector<64x128xf32> to vector<64x127xf32>
    %532 = tpu.concatenate %530, %531 in 1 : vector<64x1xf32>, vector<64x127xf32> -> vector<64x128xf32>
    %cst_90 = arith.constant 0.000000e+00 : f32
    %533 = vector.shape_cast %529 : vector<1x128xi1> to vector<1x128xi1>
    %534 = vector.broadcast %533 : vector<1x128xi1> to vector<64x128xi1>
    %535 = vector.broadcast %cst_90 : f32 to vector<64x128xf32>
    %536 = arith.select %534, %532, %535 : vector<64x128xi1>, vector<64x128xf32>
    %c126_i32_91 = arith.constant 126 : i32
    %537 = vector.broadcast %c126_i32_91 : i32 to vector<1x128xi32>
    %538 = arith.cmpi sle, %7, %537 : vector<1x128xi32>
    %539 = vector.extract_strided_slice %156 {offsets = [0, 1], sizes = [64, 127], strides = [1, 1]} : vector<64x128xf32> to vector<64x127xf32>
    %540 = vector.extract_strided_slice %156 {offsets = [0, 0], sizes = [64, 1], strides = [1, 1]} : vector<64x128xf32> to vector<64x1xf32>
    %541 = tpu.concatenate %539, %540 in 1 : vector<64x127xf32>, vector<64x1xf32> -> vector<64x128xf32>
    %cst_92 = arith.constant 0.000000e+00 : f32
    %542 = vector.shape_cast %538 : vector<1x128xi1> to vector<1x128xi1>
    %543 = vector.broadcast %542 : vector<1x128xi1> to vector<64x128xi1>
    %544 = vector.broadcast %cst_92 : f32 to vector<64x128xf32>
    %545 = arith.select %543, %541, %544 : vector<64x128xi1>, vector<64x128xf32>
    %c1_i32_93 = arith.constant 1 : i32
    %546 = vector.broadcast %c1_i32_93 : i32 to vector<1x128xi32>
    %547 = arith.cmpi sge, %7, %546 : vector<1x128xi32>
    %548 = vector.extract_strided_slice %509 {offsets = [0, 127], sizes = [64, 1], strides = [1, 1]} : vector<64x128xf32> to vector<64x1xf32>
    %549 = vector.extract_strided_slice %509 {offsets = [0, 0], sizes = [64, 127], strides = [1, 1]} : vector<64x128xf32> to vector<64x127xf32>
    %550 = tpu.concatenate %548, %549 in 1 : vector<64x1xf32>, vector<64x127xf32> -> vector<64x128xf32>
    %cst_94 = arith.constant 0.000000e+00 : f32
    %551 = vector.shape_cast %547 : vector<1x128xi1> to vector<1x128xi1>
    %552 = vector.broadcast %551 : vector<1x128xi1> to vector<64x128xi1>
    %553 = vector.broadcast %cst_94 : f32 to vector<64x128xf32>
    %554 = arith.select %552, %550, %553 : vector<64x128xi1>, vector<64x128xf32>
    %c126_i32_95 = arith.constant 126 : i32
    %555 = vector.broadcast %c126_i32_95 : i32 to vector<1x128xi32>
    %556 = arith.cmpi sle, %7, %555 : vector<1x128xi32>
    %557 = vector.extract_strided_slice %509 {offsets = [0, 1], sizes = [64, 127], strides = [1, 1]} : vector<64x128xf32> to vector<64x127xf32>
    %558 = vector.extract_strided_slice %509 {offsets = [0, 0], sizes = [64, 1], strides = [1, 1]} : vector<64x128xf32> to vector<64x1xf32>
    %559 = tpu.concatenate %557, %558 in 1 : vector<64x127xf32>, vector<64x1xf32> -> vector<64x128xf32>
    %cst_96 = arith.constant 0.000000e+00 : f32
    %560 = vector.shape_cast %556 : vector<1x128xi1> to vector<1x128xi1>
    %561 = vector.broadcast %560 : vector<1x128xi1> to vector<64x128xi1>
    %562 = vector.broadcast %cst_96 : f32 to vector<64x128xf32>
    %563 = arith.select %561, %559, %562 : vector<64x128xi1>, vector<64x128xf32>
    %564 = vector.broadcast %184 : f32 to vector<64x128xf32>
    %565 = arith.mulf %518, %564 : vector<64x128xf32>
    %566 = arith.addf %491, %565 : vector<64x128xf32>
    %567 = vector.broadcast %185 : f32 to vector<64x128xf32>
    %568 = arith.mulf %500, %567 : vector<64x128xf32>
    %569 = arith.addf %566, %568 : vector<64x128xf32>
    %570 = vector.broadcast %186 : f32 to vector<64x128xf32>
    %571 = arith.mulf %527, %570 : vector<64x128xf32>
    %572 = arith.addf %569, %571 : vector<64x128xf32>
    %573 = vector.broadcast %187 : f32 to vector<64x128xf32>
    %574 = arith.mulf %536, %573 : vector<64x128xf32>
    %575 = arith.addf %572, %574 : vector<64x128xf32>
    %576 = vector.broadcast %188 : f32 to vector<64x128xf32>
    %577 = arith.mulf %156, %576 : vector<64x128xf32>
    %578 = arith.addf %575, %577 : vector<64x128xf32>
    %579 = vector.broadcast %189 : f32 to vector<64x128xf32>
    %580 = arith.mulf %545, %579 : vector<64x128xf32>
    %581 = arith.addf %578, %580 : vector<64x128xf32>
    %582 = vector.broadcast %190 : f32 to vector<64x128xf32>
    %583 = arith.mulf %554, %582 : vector<64x128xf32>
    %584 = arith.addf %581, %583 : vector<64x128xf32>
    %585 = vector.broadcast %191 : f32 to vector<64x128xf32>
    %586 = arith.mulf %509, %585 : vector<64x128xf32>
    %587 = arith.addf %584, %586 : vector<64x128xf32>
    %588 = vector.broadcast %192 : f32 to vector<64x128xf32>
    %589 = arith.mulf %563, %588 : vector<64x128xf32>
    %590 = arith.addf %587, %589 : vector<64x128xf32>
    %591 = vector.broadcast %193 : f32 to vector<64x128xf32>
    %592 = arith.addf %590, %591 : vector<64x128xf32>
    %593 = arith.negf %592 : vector<64x128xf32>
    %594 = math.exp %593 : vector<64x128xf32>
    %cst_97 = arith.constant 1.000000e+00 : f32
    %595 = vector.broadcast %cst_97 : f32 to vector<64x128xf32>
    %596 = arith.addf %595, %594 : vector<64x128xf32>
    %597 = arith.divf %595, %596 : vector<64x128xf32>
    %c0_98 = arith.constant 0 : index
    %c0_99 = arith.constant 0 : index
    %c0_100 = arith.constant 0 : index
    %c0_101 = arith.constant 0 : index
    %598 = vector.load %arg11[%c0_98, %c0_99, %c0_100, %c0_101] : memref<1x1x64x128xf32, #tpu.memory_space<vmem>>, vector<1x1x64x128xf32>
    %599 = vector.shape_cast %598 : vector<1x1x64x128xf32> to vector<64x128xf32>
    %600 = vector.shape_cast %597 : vector<64x128xf32> to vector<1x1x64x128xf32>
    tpu.vector_store %arg11[%c0_98, %c0_99, %c0_100, %c0_101], %600 {strides = array<i32>} : memref<1x1x64x128xf32, #tpu.memory_space<vmem>>, vector<1x1x64x128xf32>,
    %cst_102 = arith.constant -1.470000e-01 : f32
    %601 = vector.broadcast %cst_102 : f32 to vector<64x128xf32>
    %602 = arith.mulf %601, %1 : vector<64x128xf32>
    %cst_103 = arith.constant 2.890000e-01 : f32
    %603 = vector.broadcast %cst_103 : f32 to vector<64x128xf32>
    %604 = arith.mulf %603, %3 : vector<64x128xf32>
    %605 = arith.subf %602, %604 : vector<64x128xf32>
    %cst_104 = arith.constant 4.360000e-01 : f32
    %606 = vector.broadcast %cst_104 : f32 to vector<64x128xf32>
    %607 = arith.mulf %606, %5 : vector<64x128xf32>
    %608 = arith.addf %605, %607 : vector<64x128xf32>
    %cst_105 = arith.constant 6.150000e-01 : f32
    %609 = vector.broadcast %cst_105 : f32 to vector<64x128xf32>
    %610 = arith.mulf %609, %1 : vector<64x128xf32>
    %cst_106 = arith.constant 5.150000e-01 : f32
    %611 = vector.broadcast %cst_106 : f32 to vector<64x128xf32>
    %612 = arith.mulf %611, %3 : vector<64x128xf32>
    %613 = arith.subf %610, %612 : vector<64x128xf32>
    %cst_107 = arith.constant 1.000000e-01 : f32
    %614 = vector.broadcast %cst_107 : f32 to vector<64x128xf32>
    %615 = arith.mulf %614, %5 : vector<64x128xf32>
    %616 = arith.subf %613, %615 : vector<64x128xf32>
    %617 = vector.shape_cast %15 : vector<64x128xf32> to vector<1x64x128xf32>
    %cst_108 = arith.constant dense<0.000000e+00> : vector<1xf32>
    %618 = vector.multi_reduction <add>, %617, %cst_108 [1, 2] : vector<1x64x128xf32> to vector<1xf32>
    %619 = vector.shape_cast %618 : vector<1xf32> to vector<1x1x1xf32>
    %620 = vector.extract %619[0, 0, 0] : f32 from vector<1x1x1xf32>
    %621 = vector.broadcast %620 : f32 to vector<1x1xf32>
    %cst_109 = arith.constant 8.192000e+03 : f32
    %622 = vector.broadcast %cst_109 : f32 to vector<1x1xf32>
    %623 = arith.divf %621, %622 : vector<1x1xf32>
    %624 = vector.shape_cast %608 : vector<64x128xf32> to vector<1x64x128xf32>
    %cst_110 = arith.constant dense<0.000000e+00> : vector<1xf32>
    %625 = vector.multi_reduction <add>, %624, %cst_110 [1, 2] : vector<1x64x128xf32> to vector<1xf32>
    %626 = vector.shape_cast %625 : vector<1xf32> to vector<1x1x1xf32>
    %627 = vector.extract %626[0, 0, 0] : f32 from vector<1x1x1xf32>
    %628 = vector.broadcast %627 : f32 to vector<1x1xf32>
    %cst_111 = arith.constant 8.192000e+03 : f32
    %629 = vector.broadcast %cst_111 : f32 to vector<1x1xf32>
    %630 = arith.divf %628, %629 : vector<1x1xf32>
    %631 = vector.shape_cast %616 : vector<64x128xf32> to vector<1x64x128xf32>
    %cst_112 = arith.constant dense<0.000000e+00> : vector<1xf32>
    %632 = vector.multi_reduction <add>, %631, %cst_112 [1, 2] : vector<1x64x128xf32> to vector<1xf32>
    %633 = vector.shape_cast %632 : vector<1xf32> to vector<1x1x1xf32>
    %634 = vector.extract %633[0, 0, 0] : f32 from vector<1x1x1xf32>
    %635 = vector.broadcast %634 : f32 to vector<1x1xf32>
    %cst_113 = arith.constant 8.192000e+03 : f32
    %636 = vector.broadcast %cst_113 : f32 to vector<1x1xf32>
    %637 = arith.divf %635, %636 : vector<1x1xf32>
    %c0_114 = arith.constant 0 : index
    %638 = memref.load %arg4[%c0_114] : memref<24xf32, #tpu.memory_space<smem>>
    %c1_115 = arith.constant 1 : index
    %639 = memref.load %arg4[%c1_115] : memref<24xf32, #tpu.memory_space<smem>>
    %c2_116 = arith.constant 2 : index
    %640 = memref.load %arg4[%c2_116] : memref<24xf32, #tpu.memory_space<smem>>
    %c3_117 = arith.constant 3 : index
    %641 = memref.load %arg4[%c3_117] : memref<24xf32, #tpu.memory_space<smem>>
    %c4_118 = arith.constant 4 : index
    %642 = memref.load %arg4[%c4_118] : memref<24xf32, #tpu.memory_space<smem>>
    %c5_119 = arith.constant 5 : index
    %643 = memref.load %arg4[%c5_119] : memref<24xf32, #tpu.memory_space<smem>>
    %c6_120 = arith.constant 6 : index
    %644 = memref.load %arg4[%c6_120] : memref<24xf32, #tpu.memory_space<smem>>
    %c7_121 = arith.constant 7 : index
    %645 = memref.load %arg4[%c7_121] : memref<24xf32, #tpu.memory_space<smem>>
    %c8_122 = arith.constant 8 : index
    %646 = memref.load %arg4[%c8_122] : memref<24xf32, #tpu.memory_space<smem>>
    %c9_123 = arith.constant 9 : index
    %647 = memref.load %arg4[%c9_123] : memref<24xf32, #tpu.memory_space<smem>>
    %c10_124 = arith.constant 10 : index
    %648 = memref.load %arg4[%c10_124] : memref<24xf32, #tpu.memory_space<smem>>
    %c11_125 = arith.constant 11 : index
    %649 = memref.load %arg4[%c11_125] : memref<24xf32, #tpu.memory_space<smem>>
    %c12_126 = arith.constant 12 : index
    %650 = memref.load %arg4[%c12_126] : memref<24xf32, #tpu.memory_space<smem>>
    %c13_127 = arith.constant 13 : index
    %651 = memref.load %arg4[%c13_127] : memref<24xf32, #tpu.memory_space<smem>>
    %c14_128 = arith.constant 14 : index
    %652 = memref.load %arg4[%c14_128] : memref<24xf32, #tpu.memory_space<smem>>
    %c15_129 = arith.constant 15 : index
    %653 = memref.load %arg4[%c15_129] : memref<24xf32, #tpu.memory_space<smem>>
    %c16_130 = arith.constant 16 : index
    %654 = memref.load %arg4[%c16_130] : memref<24xf32, #tpu.memory_space<smem>>
    %c17_131 = arith.constant 17 : index
    %655 = memref.load %arg4[%c17_131] : memref<24xf32, #tpu.memory_space<smem>>
    %c18_132 = arith.constant 18 : index
    %656 = memref.load %arg4[%c18_132] : memref<24xf32, #tpu.memory_space<smem>>
    %c19_133 = arith.constant 19 : index
    %657 = memref.load %arg4[%c19_133] : memref<24xf32, #tpu.memory_space<smem>>
    %c20_134 = arith.constant 20 : index
    %658 = memref.load %arg4[%c20_134] : memref<24xf32, #tpu.memory_space<smem>>
    %c21_135 = arith.constant 21 : index
    %659 = memref.load %arg4[%c21_135] : memref<24xf32, #tpu.memory_space<smem>>
    %c22_136 = arith.constant 22 : index
    %660 = memref.load %arg4[%c22_136] : memref<24xf32, #tpu.memory_space<smem>>
    %c23_137 = arith.constant 23 : index
    %661 = memref.load %arg4[%c23_137] : memref<24xf32, #tpu.memory_space<smem>>
    %662 = vector.broadcast %638 : f32 to vector<1x1xf32>
    %663 = arith.mulf %623, %662 : vector<1x1xf32>
    %664 = vector.broadcast %641 : f32 to vector<1x1xf32>
    %665 = arith.mulf %630, %664 : vector<1x1xf32>
    %666 = arith.addf %663, %665 : vector<1x1xf32>
    %667 = vector.broadcast %644 : f32 to vector<1x1xf32>
    %668 = arith.mulf %637, %667 : vector<1x1xf32>
    %669 = arith.addf %666, %668 : vector<1x1xf32>
    %670 = vector.broadcast %647 : f32 to vector<1x1xf32>
    %671 = arith.addf %669, %670 : vector<1x1xf32>
    %cst_138 = arith.constant 0.000000e+00 : f32
    %672 = vector.broadcast %cst_138 : f32 to vector<1x1xf32>
    %673 = arith.maximumf %671, %672 : vector<1x1xf32>
    %674 = vector.broadcast %639 : f32 to vector<1x1xf32>
    %675 = arith.mulf %623, %674 : vector<1x1xf32>
    %676 = vector.broadcast %642 : f32 to vector<1x1xf32>
    %677 = arith.mulf %630, %676 : vector<1x1xf32>
    %678 = arith.addf %675, %677 : vector<1x1xf32>
    %679 = vector.broadcast %645 : f32 to vector<1x1xf32>
    %680 = arith.mulf %637, %679 : vector<1x1xf32>
    %681 = arith.addf %678, %680 : vector<1x1xf32>
    %682 = vector.broadcast %648 : f32 to vector<1x1xf32>
    %683 = arith.addf %681, %682 : vector<1x1xf32>
    %cst_139 = arith.constant 0.000000e+00 : f32
    %684 = vector.broadcast %cst_139 : f32 to vector<1x1xf32>
    %685 = arith.maximumf %683, %684 : vector<1x1xf32>
    %686 = vector.broadcast %640 : f32 to vector<1x1xf32>
    %687 = arith.mulf %623, %686 : vector<1x1xf32>
    %688 = vector.broadcast %643 : f32 to vector<1x1xf32>
    %689 = arith.mulf %630, %688 : vector<1x1xf32>
    %690 = arith.addf %687, %689 : vector<1x1xf32>
    %691 = vector.broadcast %646 : f32 to vector<1x1xf32>
    %692 = arith.mulf %637, %691 : vector<1x1xf32>
    %693 = arith.addf %690, %692 : vector<1x1xf32>
    %694 = vector.broadcast %649 : f32 to vector<1x1xf32>
    %695 = arith.addf %693, %694 : vector<1x1xf32>
    %cst_140 = arith.constant 0.000000e+00 : f32
    %696 = vector.broadcast %cst_140 : f32 to vector<1x1xf32>
    %697 = arith.maximumf %695, %696 : vector<1x1xf32>
    %698 = vector.broadcast %650 : f32 to vector<1x1xf32>
    %699 = arith.mulf %673, %698 : vector<1x1xf32>
    %700 = vector.broadcast %653 : f32 to vector<1x1xf32>
    %701 = arith.mulf %685, %700 : vector<1x1xf32>
    %702 = arith.addf %699, %701 : vector<1x1xf32>
    %703 = vector.broadcast %656 : f32 to vector<1x1xf32>
    %704 = arith.mulf %697, %703 : vector<1x1xf32>
    %705 = arith.addf %702, %704 : vector<1x1xf32>
    %706 = vector.broadcast %659 : f32 to vector<1x1xf32>
    %707 = arith.addf %705, %706 : vector<1x1xf32>
    %708 = arith.negf %707 : vector<1x1xf32>
    %709 = math.exp %708 : vector<1x1xf32>
    %cst_141 = arith.constant 1.000000e+00 : f32
    %710 = vector.broadcast %cst_141 : f32 to vector<1x1xf32>
    %711 = arith.addf %710, %709 : vector<1x1xf32>
    %712 = arith.divf %710, %711 : vector<1x1xf32>
    %713 = vector.broadcast %651 : f32 to vector<1x1xf32>
    %714 = arith.mulf %673, %713 : vector<1x1xf32>
    %715 = vector.broadcast %654 : f32 to vector<1x1xf32>
    %716 = arith.mulf %685, %715 : vector<1x1xf32>
    %717 = arith.addf %714, %716 : vector<1x1xf32>
    %718 = vector.broadcast %657 : f32 to vector<1x1xf32>
    %719 = arith.mulf %697, %718 : vector<1x1xf32>
    %720 = arith.addf %717, %719 : vector<1x1xf32>
    %721 = vector.broadcast %660 : f32 to vector<1x1xf32>
    %722 = arith.addf %720, %721 : vector<1x1xf32>
    %723 = arith.negf %722 : vector<1x1xf32>
    %724 = math.exp %723 : vector<1x1xf32>
    %cst_142 = arith.constant 1.000000e+00 : f32
    %725 = vector.broadcast %cst_142 : f32 to vector<1x1xf32>
    %726 = arith.addf %725, %724 : vector<1x1xf32>
    %727 = arith.divf %725, %726 : vector<1x1xf32>
    %728 = vector.broadcast %652 : f32 to vector<1x1xf32>
    %729 = arith.mulf %673, %728 : vector<1x1xf32>
    %730 = vector.broadcast %655 : f32 to vector<1x1xf32>
    %731 = arith.mulf %685, %730 : vector<1x1xf32>
    %732 = arith.addf %729, %731 : vector<1x1xf32>
    %733 = vector.broadcast %658 : f32 to vector<1x1xf32>
    %734 = arith.mulf %697, %733 : vector<1x1xf32>
    %735 = arith.addf %732, %734 : vector<1x1xf32>
    %736 = vector.broadcast %661 : f32 to vector<1x1xf32>
    %737 = arith.addf %735, %736 : vector<1x1xf32>
    %738 = arith.negf %737 : vector<1x1xf32>
    %739 = math.exp %738 : vector<1x1xf32>
    %cst_143 = arith.constant 1.000000e+00 : f32
    %740 = vector.broadcast %cst_143 : f32 to vector<1x1xf32>
    %741 = arith.addf %740, %739 : vector<1x1xf32>
    %742 = arith.divf %740, %741 : vector<1x1xf32>
    %743 = vector.broadcast %712 : vector<1x1xf32> to vector<64x128xf32>
    %744 = arith.mulf %15, %743 : vector<64x128xf32>
    %745 = vector.broadcast %727 : vector<1x1xf32> to vector<64x128xf32>
    %746 = arith.mulf %608, %745 : vector<64x128xf32>
    %747 = vector.broadcast %742 : vector<1x1xf32> to vector<64x128xf32>
    %748 = arith.mulf %616, %747 : vector<64x128xf32>
    %c0_144 = arith.constant 0 : index
    %c0_145 = arith.constant 0 : index
    %749 = vector.load %arg6[%c0_144, %c0_145] : memref<8x64xf32, #tpu.memory_space<vmem>>, vector<8x64xf32>
    %cst_146 = arith.constant dense<0.000000e+00> : vector<8x128xf32>
    %750 = tpu.matmul %749, %597, %cst_146 {dimension_numbers = #tpu.dot_dimension_numbers<[1], [0], [0], [1], [0, 0, 1, 1], [], []>} : vector<8x64xf32>, vector<64x128xf32>, vector<8x128xf32> -> vector<8x128xf32>
    %c0_147 = arith.constant 0 : index
    %c0_148 = arith.constant 0 : index
    %751 = vector.load %arg7[%c0_147, %c0_148] : memref<128x16xf32, #tpu.memory_space<vmem>>, vector<128x16xf32>
    %cst_149 = arith.constant dense<0.000000e+00> : vector<8x16xf32>
    %752 = tpu.matmul %750, %751, %cst_149 {dimension_numbers = #tpu.dot_dimension_numbers<[1], [0], [0], [1], [0, 0, 1, 1], [], []>} : vector<8x128xf32>, vector<128x16xf32>, vector<8x16xf32> -> vector<8x16xf32>
    %c0_150 = arith.constant 0 : index
    %753 = memref.load %arg2[%c0_150] : memref<8xi32, #tpu.memory_space<smem>>
    %754 = arith.sitofp %753 : i32 to f32
    %cst_151 = arith.constant 2.000000e+00 : f32
    %755 = arith.mulf %cst_151, %754 : f32
    %cst_152 = arith.constant 1.000000e+00 : f32
    %756 = arith.subf %755, %cst_152 : f32
    %c1_153 = arith.constant 1 : index
    %757 = memref.load %arg2[%c1_153] : memref<8xi32, #tpu.memory_space<smem>>
    %758 = arith.sitofp %757 : i32 to f32
    %cst_154 = arith.constant 2.000000e+00 : f32
    %759 = arith.mulf %cst_154, %758 : f32
    %cst_155 = arith.constant 1.000000e+00 : f32
    %760 = arith.subf %759, %cst_155 : f32
    %c2_156 = arith.constant 2 : index
    %761 = memref.load %arg2[%c2_156] : memref<8xi32, #tpu.memory_space<smem>>
    %762 = arith.sitofp %761 : i32 to f32
    %cst_157 = arith.constant 2.000000e+00 : f32
    %763 = arith.mulf %cst_157, %762 : f32
    %cst_158 = arith.constant 1.000000e+00 : f32
    %764 = arith.subf %763, %cst_158 : f32
    %c3_159 = arith.constant 3 : index
    %765 = memref.load %arg2[%c3_159] : memref<8xi32, #tpu.memory_space<smem>>
    %766 = arith.sitofp %765 : i32 to f32
    %cst_160 = arith.constant 2.000000e+00 : f32
    %767 = arith.mulf %cst_160, %766 : f32
    %cst_161 = arith.constant 1.000000e+00 : f32
    %768 = arith.subf %767, %cst_161 : f32
    %c4_162 = arith.constant 4 : index
    %769 = memref.load %arg2[%c4_162] : memref<8xi32, #tpu.memory_space<smem>>
    %770 = arith.sitofp %769 : i32 to f32
    %cst_163 = arith.constant 2.000000e+00 : f32
    %771 = arith.mulf %cst_163, %770 : f32
    %cst_164 = arith.constant 1.000000e+00 : f32
    %772 = arith.subf %771, %cst_164 : f32
    %c5_165 = arith.constant 5 : index
    %773 = memref.load %arg2[%c5_165] : memref<8xi32, #tpu.memory_space<smem>>
    %774 = arith.sitofp %773 : i32 to f32
    %cst_166 = arith.constant 2.000000e+00 : f32
    %775 = arith.mulf %cst_166, %774 : f32
    %cst_167 = arith.constant 1.000000e+00 : f32
    %776 = arith.subf %775, %cst_167 : f32
    %c6_168 = arith.constant 6 : index
    %777 = memref.load %arg2[%c6_168] : memref<8xi32, #tpu.memory_space<smem>>
    %778 = arith.sitofp %777 : i32 to f32
    %cst_169 = arith.constant 2.000000e+00 : f32
    %779 = arith.mulf %cst_169, %778 : f32
    %cst_170 = arith.constant 1.000000e+00 : f32
    %780 = arith.subf %779, %cst_170 : f32
    %c7_171 = arith.constant 7 : index
    %781 = memref.load %arg2[%c7_171] : memref<8xi32, #tpu.memory_space<smem>>
    %782 = arith.sitofp %781 : i32 to f32
    %cst_172 = arith.constant 2.000000e+00 : f32
    %783 = arith.mulf %cst_172, %782 : f32
    %cst_173 = arith.constant 1.000000e+00 : f32
    %784 = arith.subf %783, %cst_173 : f32
    %c0_174 = arith.constant 0 : index
    %c0_175 = arith.constant 0 : index
    %785 = vector.load %arg5[%c0_174, %c0_175] : memref<8x16xi32, #tpu.memory_space<vmem>>, vector<8x16xi32>
    %cst_176 = arith.constant 0.000000e+00 : f32
    %786 = vector.broadcast %cst_176 : f32 to vector<8x16xf32>
    %c0_i32 = arith.constant 0 : i32
    %787 = vector.broadcast %c0_i32 : i32 to vector<8x16xi32>
    %788 = arith.cmpi eq, %785, %787 : vector<8x16xi32>
    %cst_177 = arith.constant 0.000000e+00 : f32
    %789 = vector.broadcast %756 : f32 to vector<8x16xf32>
    %790 = vector.broadcast %cst_177 : f32 to vector<8x16xf32>
    %791 = arith.select %788, %789, %790 : vector<8x16xi1>, vector<8x16xf32>
    %792 = arith.addf %786, %791 : vector<8x16xf32>
    %c1_i32_178 = arith.constant 1 : i32
    %793 = vector.broadcast %c1_i32_178 : i32 to vector<8x16xi32>
    %794 = arith.cmpi eq, %785, %793 : vector<8x16xi32>
    %cst_179 = arith.constant 0.000000e+00 : f32
    %795 = vector.broadcast %760 : f32 to vector<8x16xf32>
    %796 = vector.broadcast %cst_179 : f32 to vector<8x16xf32>
    %797 = arith.select %794, %795, %796 : vector<8x16xi1>, vector<8x16xf32>
    %798 = arith.addf %792, %797 : vector<8x16xf32>
    %c2_i32 = arith.constant 2 : i32
    %799 = vector.broadcast %c2_i32 : i32 to vector<8x16xi32>
    %800 = arith.cmpi eq, %785, %799 : vector<8x16xi32>
    %cst_180 = arith.constant 0.000000e+00 : f32
    %801 = vector.broadcast %764 : f32 to vector<8x16xf32>
    %802 = vector.broadcast %cst_180 : f32 to vector<8x16xf32>
    %803 = arith.select %800, %801, %802 : vector<8x16xi1>, vector<8x16xf32>
    %804 = arith.addf %798, %803 : vector<8x16xf32>
    %c3_i32 = arith.constant 3 : i32
    %805 = vector.broadcast %c3_i32 : i32 to vector<8x16xi32>
    %806 = arith.cmpi eq, %785, %805 : vector<8x16xi32>
    %cst_181 = arith.constant 0.000000e+00 : f32
    %807 = vector.broadcast %768 : f32 to vector<8x16xf32>
    %808 = vector.broadcast %cst_181 : f32 to vector<8x16xf32>
    %809 = arith.select %806, %807, %808 : vector<8x16xi1>, vector<8x16xf32>
    %810 = arith.addf %804, %809 : vector<8x16xf32>
    %c4_i32 = arith.constant 4 : i32
    %811 = vector.broadcast %c4_i32 : i32 to vector<8x16xi32>
    %812 = arith.cmpi eq, %785, %811 : vector<8x16xi32>
    %cst_182 = arith.constant 0.000000e+00 : f32
    %813 = vector.broadcast %772 : f32 to vector<8x16xf32>
    %814 = vector.broadcast %cst_182 : f32 to vector<8x16xf32>
    %815 = arith.select %812, %813, %814 : vector<8x16xi1>, vector<8x16xf32>
    %816 = arith.addf %810, %815 : vector<8x16xf32>
    %c5_i32 = arith.constant 5 : i32
    %817 = vector.broadcast %c5_i32 : i32 to vector<8x16xi32>
    %818 = arith.cmpi eq, %785, %817 : vector<8x16xi32>
    %cst_183 = arith.constant 0.000000e+00 : f32
    %819 = vector.broadcast %776 : f32 to vector<8x16xf32>
    %820 = vector.broadcast %cst_183 : f32 to vector<8x16xf32>
    %821 = arith.select %818, %819, %820 : vector<8x16xi1>, vector<8x16xf32>
    %822 = arith.addf %816, %821 : vector<8x16xf32>
    %c6_i32 = arith.constant 6 : i32
    %823 = vector.broadcast %c6_i32 : i32 to vector<8x16xi32>
    %824 = arith.cmpi eq, %785, %823 : vector<8x16xi32>
    %cst_184 = arith.constant 0.000000e+00 : f32
    %825 = vector.broadcast %780 : f32 to vector<8x16xf32>
    %826 = vector.broadcast %cst_184 : f32 to vector<8x16xf32>
    %827 = arith.select %824, %825, %826 : vector<8x16xi1>, vector<8x16xf32>
    %828 = arith.addf %822, %827 : vector<8x16xf32>
    %c7_i32 = arith.constant 7 : i32
    %829 = vector.broadcast %c7_i32 : i32 to vector<8x16xi32>
    %830 = arith.cmpi eq, %785, %829 : vector<8x16xi32>
    %cst_185 = arith.constant 0.000000e+00 : f32
    %831 = vector.broadcast %784 : f32 to vector<8x16xf32>
    %832 = vector.broadcast %cst_185 : f32 to vector<8x16xf32>
    %833 = arith.select %830, %831, %832 : vector<8x16xi1>, vector<8x16xf32>
    %834 = arith.addf %828, %833 : vector<8x16xf32>
    %cst_186 = arith.constant 1.000000e+01 : f32
    %835 = vector.broadcast %cst_186 : f32 to vector<8x16xf32>
    %836 = arith.mulf %835, %834 : vector<8x16xf32>
    %837 = arith.mulf %836, %752 : vector<8x16xf32>
    %c0_187 = arith.constant 0 : index
    %c0_188 = arith.constant 0 : index
    %838 = vector.load %arg8[%c0_187, %c0_188] : memref<64x8xf32, #tpu.memory_space<vmem>>, vector<64x8xf32>
    %cst_189 = arith.constant dense<0.000000e+00> : vector<64x16xf32>
    %839 = tpu.matmul %838, %837, %cst_189 {dimension_numbers = #tpu.dot_dimension_numbers<[1], [0], [0], [1], [0, 0, 1, 1], [], []>} : vector<64x8xf32>, vector<8x16xf32>, vector<64x16xf32> -> vector<64x16xf32>
    %c0_190 = arith.constant 0 : index
    %c0_191 = arith.constant 0 : index
    %840 = vector.load %arg9[%c0_190, %c0_191] : memref<16x128xf32, #tpu.memory_space<vmem>>, vector<16x128xf32>
    %cst_192 = arith.constant dense<0.000000e+00> : vector<64x128xf32>
    %841 = tpu.matmul %839, %840, %cst_192 {dimension_numbers = #tpu.dot_dimension_numbers<[1], [0], [0], [1], [0, 0, 1, 1], [], []>} : vector<64x16xf32>, vector<16x128xf32>, vector<64x128xf32> -> vector<64x128xf32>
    %842 = arith.addf %744, %841 : vector<64x128xf32>
    %cst_193 = arith.constant 1.140000e+00 : f32
    %843 = vector.broadcast %cst_193 : f32 to vector<64x128xf32>
    %844 = arith.mulf %843, %748 : vector<64x128xf32>
    %845 = arith.addf %842, %844 : vector<64x128xf32>
    %cst_194 = arith.constant 0.000000e+00 : f32
    %cst_195 = arith.constant 1.000000e+00 : f32
    %846 = vector.broadcast %cst_194 : f32 to vector<64x128xf32>
    %847 = arith.maximumf %846, %845 : vector<64x128xf32>
    %848 = vector.broadcast %cst_195 : f32 to vector<64x128xf32>
    %849 = arith.minimumf %848, %847 : vector<64x128xf32>
    %c0_196 = arith.constant 0 : index
    %c0_197 = arith.constant 0 : index
    %c0_198 = arith.constant 0 : index
    %c0_199 = arith.constant 0 : index
    %850 = vector.load %arg10[%c0_196, %c0_197, %c0_198, %c0_199] : memref<1x3x64x128xf32, #tpu.memory_space<vmem>>, vector<1x1x64x128xf32>
    %851 = vector.shape_cast %850 : vector<1x1x64x128xf32> to vector<64x128xf32>
    %852 = vector.shape_cast %849 : vector<64x128xf32> to vector<1x1x64x128xf32>
    tpu.vector_store %arg10[%c0_196, %c0_197, %c0_198, %c0_199], %852 {strides = array<i32>} : memref<1x3x64x128xf32, #tpu.memory_space<vmem>>, vector<1x1x64x128xf32>,
    %cst_200 = arith.constant 3.950000e-01 : f32
    %853 = vector.broadcast %cst_200 : f32 to vector<64x128xf32>
    %854 = arith.mulf %853, %746 : vector<64x128xf32>
    %855 = arith.subf %842, %854 : vector<64x128xf32>
    %cst_201 = arith.constant 5.810000e-01 : f32
    %856 = vector.broadcast %cst_201 : f32 to vector<64x128xf32>
    %857 = arith.mulf %856, %748 : vector<64x128xf32>
    %858 = arith.subf %855, %857 : vector<64x128xf32>
    %cst_202 = arith.constant 0.000000e+00 : f32
    %cst_203 = arith.constant 1.000000e+00 : f32
    %859 = vector.broadcast %cst_202 : f32 to vector<64x128xf32>
    %860 = arith.maximumf %859, %858 : vector<64x128xf32>
    %861 = vector.broadcast %cst_203 : f32 to vector<64x128xf32>
    %862 = arith.minimumf %861, %860 : vector<64x128xf32>
    %c0_204 = arith.constant 0 : index
    %c1_205 = arith.constant 1 : index
    %c0_206 = arith.constant 0 : index
    %c0_207 = arith.constant 0 : index
    %863 = vector.load %arg10[%c0_204, %c1_205, %c0_206, %c0_207] : memref<1x3x64x128xf32, #tpu.memory_space<vmem>>, vector<1x1x64x128xf32>
    %864 = vector.shape_cast %863 : vector<1x1x64x128xf32> to vector<64x128xf32>
    %865 = vector.shape_cast %862 : vector<64x128xf32> to vector<1x1x64x128xf32>
    tpu.vector_store %arg10[%c0_204, %c1_205, %c0_206, %c0_207], %865 {strides = array<i32>} : memref<1x3x64x128xf32, #tpu.memory_space<vmem>>, vector<1x1x64x128xf32>,
    %cst_208 = arith.constant 2.032000e+00 : f32
    %866 = vector.broadcast %cst_208 : f32 to vector<64x128xf32>
    %867 = arith.mulf %866, %746 : vector<64x128xf32>
    %868 = arith.addf %842, %867 : vector<64x128xf32>
    %cst_209 = arith.constant 0.000000e+00 : f32
    %cst_210 = arith.constant 1.000000e+00 : f32
    %869 = vector.broadcast %cst_209 : f32 to vector<64x128xf32>
    %870 = arith.maximumf %869, %868 : vector<64x128xf32>
    %871 = vector.broadcast %cst_210 : f32 to vector<64x128xf32>
    %872 = arith.minimumf %871, %870 : vector<64x128xf32>
    %c0_211 = arith.constant 0 : index
    %c2_212 = arith.constant 2 : index
    %c0_213 = arith.constant 0 : index
    %c0_214 = arith.constant 0 : index
    %873 = vector.load %arg10[%c0_211, %c2_212, %c0_213, %c0_214] : memref<1x3x64x128xf32, #tpu.memory_space<vmem>>, vector<1x1x64x128xf32>
    %874 = vector.shape_cast %873 : vector<1x1x64x128xf32> to vector<64x128xf32>
    %875 = vector.shape_cast %872 : vector<64x128xf32> to vector<1x1x64x128xf32>
    tpu.vector_store %arg10[%c0_211, %c2_212, %c0_213, %c0_214], %875 {strides = array<i32>} : memref<1x3x64x128xf32, #tpu.memory_space<vmem>>, vector<1x1x64x128xf32>,
    return
  }
  func.func @transform_0(%arg0: i32) -> (i32, i32, i32, i32) {
    %c0_i32 = arith.constant 0 : i32
    %c0_i32_0 = arith.constant 0 : i32
    %c0_i32_1 = arith.constant 0 : i32
    %c0_i32_2 = arith.constant 0 : i32
    return %arg0, %c0_i32, %c0_i32_0, %c0_i32_1 : i32, i32, i32, i32
  }
  func.func @transform_1(%arg0: i32) -> i32 {
    %c0_i32 = arith.constant 0 : i32
    %c0_i32_0 = arith.constant 0 : i32
    return %c0_i32 : i32
  }
  func.func @transform_2(%arg0: i32) -> i32 {
    %c0_i32 = arith.constant 0 : i32
    %c0_i32_0 = arith.constant 0 : i32
    return %c0_i32 : i32
  }
  func.func @transform_3(%arg0: i32) -> i32 {
    %c0_i32 = arith.constant 0 : i32
    %c0_i32_0 = arith.constant 0 : i32
    return %c0_i32 : i32
  }
  func.func @transform_4(%arg0: i32) -> (i32, i32) {
    %c0_i32 = arith.constant 0 : i32
    %c0_i32_0 = arith.constant 0 : i32
    %c0_i32_1 = arith.constant 0 : i32
    return %c0_i32, %c0_i32_0 : i32, i32
  }
  func.func @transform_5(%arg0: i32) -> (i32, i32) {
    %c0_i32 = arith.constant 0 : i32
    %c0_i32_0 = arith.constant 0 : i32
    %c0_i32_1 = arith.constant 0 : i32
    return %c0_i32, %c0_i32_0 : i32, i32
  }
  func.func @transform_6(%arg0: i32) -> (i32, i32) {
    %c0_i32 = arith.constant 0 : i32
    %c0_i32_0 = arith.constant 0 : i32
    %c0_i32_1 = arith.constant 0 : i32
    return %c0_i32, %c0_i32_0 : i32, i32
  }
  func.func @transform_7(%arg0: i32) -> (i32, i32) {
    %c0_i32 = arith.constant 0 : i32
    %c0_i32_0 = arith.constant 0 : i32
    %c0_i32_1 = arith.constant 0 : i32
    return %c0_i32, %c0_i32_0 : i32, i32
  }
  func.func @transform_8(%arg0: i32) -> (i32, i32) {
    %c0_i32 = arith.constant 0 : i32
    %c0_i32_0 = arith.constant 0 : i32
    %c0_i32_1 = arith.constant 0 : i32
    return %c0_i32, %c0_i32_0 : i32, i32
  }
  func.func @transform_9(%arg0: i32) -> (i32, i32, i32, i32) {
    %c0_i32 = arith.constant 0 : i32
    %c0_i32_0 = arith.constant 0 : i32
    %c0_i32_1 = arith.constant 0 : i32
    %c0_i32_2 = arith.constant 0 : i32
    return %arg0, %c0_i32, %c0_i32_0, %c0_i32_1 : i32, i32, i32, i32
  }
  func.func @transform_10(%arg0: i32) -> (i32, i32, i32, i32) {
    %c0_i32 = arith.constant 0 : i32
    %c0_i32_0 = arith.constant 0 : i32
    %c0_i32_1 = arith.constant 0 : i32
    %c0_i32_2 = arith.constant 0 : i32
    return %arg0, %c0_i32, %c0_i32_0, %c0_i32_1 : i32, i32, i32, i32
  }
}

</mosaic_0001>

<llo_original>
// kernel: tpu_custom_call.1
$region0: #{tpu_custom_call.1}
  #allocation0 [shape = 'u32[]', space=smem, size = 0x4, offset = 0x4, fixed_abs, tag = 'smem constant byte address 0x4 - core index']
  #allocation1 [shape = 'u32[144,128]{1,0:T(1,128)}', space=vmem, size = 0x12000, scoped, tag = 'internal scratch']
  %s0 = inlined_call_operand.hbm [shape: f32[2,3,64,128], index: 0, kind: input, shape index: {}]
  %s1 = inlined_call_operand.vmem [shape: s32[8], index: 1, kind: input, shape index: {}]
  %s2 = inlined_call_operand.vmem [shape: f32[37], index: 2, kind: input, shape index: {}]
  %s3 = inlined_call_operand.vmem [shape: f32[24], index: 3, kind: input, shape index: {}]
  %s4 = inlined_call_operand.vmem [shape: s32[8,16], index: 4, kind: input, shape index: {}]
  %s5 = inlined_call_operand.vmem [shape: f32[8,64], index: 5, kind: input, shape index: {}]
  %s6 = inlined_call_operand.vmem [shape: f32[128,16], index: 6, kind: input, shape index: {}]
  %s7 = inlined_call_operand.vmem [shape: f32[64,8], index: 7, kind: input, shape index: {}]
  %s8 = inlined_call_operand.vmem [shape: f32[16,128], index: 8, kind: input, shape index: {}]
  %s9 = inlined_call_operand.hbm [shape: f32[2,3,64,128], index: 9, kind: output, shape index: {0}]
  %s10 = inlined_call_operand.hbm [shape: f32[2,1,64,128], index: 10, kind: output, shape index: {1}]
  %11 = xla_tuple %s9, %s10
  %s12 = sld [smem:[#allocation0]]
  $region93: #{tpu_custom_call.1} parent=0
    _
  %s14 = ssub.s32 1, %s12
  %s15 = scalar_select 0, %s14, %s12
  $region1: #{tpu_custom_call.1} parent=0
    #allocation2 [shape = 'u8[196608]{0}', space=vmem, size = 0x30000, scoped, tag = 'input window, operand 0']
    #allocation3 [shape = 's32[2]{0}', space=sflag, size = 0x8, scoped, tag = 'scoped memory for tpu_custom_call.1']
    #allocation4 [shape = 's32[2]{0}', space=sflag, size = 0x8, scoped, tag = 'scoped memory for tpu_custom_call.1']
    #allocation5 [shape = 's32[2]{0}', space=sflag, size = 0x8, scoped, tag = 'scoped memory for tpu_custom_call.1']
    #allocation6 [shape = 'u8[512]{0}', space=smem, size = 0x200, scoped, tag = 'input window, operand 1, single buffered']
    #allocation7 [shape = 'u8[512]{0}', space=smem, size = 0x200, scoped, tag = 'input window, operand 2, single buffered']
    #allocation8 [shape = 's32[1]{0}', space=sflag, size = 0x4, scoped, tag = 'scoped memory for tpu_custom_call.1']
    #allocation9 [shape = 'u8[512]{0}', space=smem, size = 0x200, scoped, tag = 'input window, operand 3, single buffered']
    #allocation10 [shape = 'u8[196608]{0}', space=vmem, size = 0x30000, scoped, tag = 'output window, operand 0']
    #allocation11 [shape = 'u8[65536]{0}', space=vmem, size = 0x10000, scoped, tag = 'output window, operand 1']
    #allocation12 [shape = 's32[2]{0}', space=sflag, size = 0x8, scoped, tag = 'scoped memory for tpu_custom_call.1']
    %16 = vsyncpa [#allocation3], 0
    %s17 = scalar_lea.sflag [#allocation3], 1
    %18 = vsyncpa %s17, 0
    %19 = vsyncpa [#allocation5], 0
    %20 = vsyncpa [#allocation8], 0
    %21 = vsyncpa [#allocation4], 0
    %s22 = scalar_lea.sflag [#allocation4], 1
    %23 = vsyncpa %s22, 0
    %24 = vsyncpa [#allocation12], 0
    %s25 = scalar_lea.sflag [#allocation12], 1
    %26 = vsyncpa %s25, 0
    loop: start=0, step=1, limit=4
    $region2: #{tpu_custom_call.1} parent=1 // loop_pre_header
      _
    $region3: #{tpu_custom_call.1} parent=1 // loop_header
      %s28 = sphi 0, %s32
      %p29 = scmp.ge.s32.totalorder %s28, 4
      %s38 = sphi 0, %s40
      %s41 = sphi 0, %s38
      %s42 = sphi 0, %s41
      %s58 = sphi 0, %s42
      %s62 = sphi 0, %s62
      %s64 = sphi 0, %s62
      %s65 = sphi 0, %s64
      %s79 = sphi 0, %s65
      %s83 = sphi 0, %s83
      %s85 = sphi 0, %s83
      %s86 = sphi 0, %s85
      %s100 = sphi 0, %s86
      %s104 = sphi 0, %s104
      %s106 = sphi 0, %s104
      %s107 = sphi 0, %s106
      %s121 = sphi 0, %s107
      %s125 = sphi 0, %s125
      %s127 = sphi 0, %s125
      %s128 = sphi 0, %s127
      %s142 = sphi 0, %s128
      %s146 = sphi 0, %s146
      %s148 = sphi 0, %s146
      %s149 = sphi 0, %s148
      %s163 = sphi 0, %s149
      %s167 = sphi 0, %s167
      %s169 = sphi 0, %s167
      %s170 = sphi 0, %s169
      %s184 = sphi 0, %s170
      %s188 = sphi 0, %s188
      %s190 = sphi 0, %s188
      %s191 = sphi 0, %s190
      %s205 = sphi 0, %s191
      %s209 = sphi 0, %s209
      %s211 = sphi 0, %s209
      %s212 = sphi 0, %s211
      %s226 = sphi 0, %s212
      %s232 = sphi 0, %s234
      %s235 = sphi 0, %s232
      %s236 = sphi 0, %s235
      %s252 = sphi 0, %s236
      %s258 = sphi 0, %s260
      %s261 = sphi 0, %s258
      %s262 = sphi 0, %s261
      %s278 = sphi 0, %s262
    $region4: #{tpu_custom_call.1} parent=1 // loop_header_branch
      %31 = sbr.rel (%p29) target = $region8
    $region5: #{tpu_custom_call.1} parent=1 // loop_body
      %s33 = ssub.s32 %s28, 1
      %s34 = ssub.s32 %s28, 2
      %s35 = sadd.s32 %s28, 1
      %s36 = ssub.s32 %s28, %s35
      %p37 = scmp.eq.s32.totalorder %s36, 0
      %s39 = sadd.s32 %s38, 1
      %s40 = scalar_select %p37, %s38, %s39
      %p43 = pneg %p37
      %p44 = scmp.eq.s32.totalorder %s28, 1
      %p45 = por %p43, %p44
      %p46 = scmp.ne.s32.totalorder %s38, %s41
      %p47 = scmp.eq.s32.totalorder %s28, 0
      %p48 = por %p46, %p47
      %p49 = scmp.ne.s32.totalorder %s38, %s41
      %p50 = scmp.eq.s32.totalorder %s33, 1
      %p51 = por %p49, %p50
      %p52 = scmp.ne.s32.totalorder %s41, %s42
      %p53 = scmp.eq.s32.totalorder %s33, 0
      %p54 = por %p52, %p53
      %p55 = scmp.ne.s32.totalorder %s41, %s42
      %p56 = scmp.eq.s32.totalorder %s34, 1
      %p57 = por %p55, %p56
      %p59 = scmp.ne.s32.totalorder %s42, %s58
      %p60 = scmp.eq.s32.totalorder %s34, 0
      %p61 = por %p59, %p60
      %s63 = sadd.s32 %s62, 1
      %p66 = scmp.eq.s32.totalorder %s28, 1
      %p67 = scmp.ne.s32.totalorder %s62, %s64
      %p68 = scmp.eq.s32.totalorder %s28, 0
      %p69 = por %p67, %p68
      %p70 = scmp.ne.s32.totalorder %s62, %s64
      %p71 = scmp.eq.s32.totalorder %s33, 1
      %p72 = por %p70, %p71
      %p73 = scmp.ne.s32.totalorder %s64, %s65
      %p74 = scmp.eq.s32.totalorder %s33, 0
      %p75 = por %p73, %p74
      %p76 = scmp.ne.s32.totalorder %s64, %s65
      %p77 = scmp.eq.s32.totalorder %s34, 1
      %p78 = por %p76, %p77
      %p80 = scmp.ne.s32.totalorder %s65, %s79
      %p81 = scmp.eq.s32.totalorder %s34, 0
      %p82 = por %p80, %p81
      %s84 = sadd.s32 %s83, 1
      %p87 = scmp.eq.s32.totalorder %s28, 1
      %p88 = scmp.ne.s32.totalorder %s83, %s85
      %p89 = scmp.eq.s32.totalorder %s28, 0
      %p90 = por %p88, %p89
      %p91 = scmp.ne.s32.totalorder %s83, %s85
      %p92 = scmp.eq.s32.totalorder %s33, 1
      %p93 = por %p91, %p92
      %p94 = scmp.ne.s32.totalorder %s85, %s86
      %p95 = scmp.eq.s32.totalorder %s33, 0
      %p96 = por %p94, %p95
      %p97 = scmp.ne.s32.totalorder %s85, %s86
      %p98 = scmp.eq.s32.totalorder %s34, 1
      %p99 = por %p97, %p98
      %p101 = scmp.ne.s32.totalorder %s86, %s100
      %p102 = scmp.eq.s32.totalorder %s34, 0
      %p103 = por %p101, %p102
      %s105 = sadd.s32 %s104, 1
      %p108 = scmp.eq.s32.totalorder %s28, 1
      %p109 = scmp.ne.s32.totalorder %s104, %s106
      %p110 = scmp.eq.s32.totalorder %s28, 0
      %p111 = por %p109, %p110
      %p112 = scmp.ne.s32.totalorder %s104, %s106
      %p113 = scmp.eq.s32.totalorder %s33, 1
      %p114 = por %p112, %p113
      %p115 = scmp.ne.s32.totalorder %s106, %s107
      %p116 = scmp.eq.s32.totalorder %s33, 0
      %p117 = por %p115, %p116
      %p118 = scmp.ne.s32.totalorder %s106, %s107
      %p119 = scmp.eq.s32.totalorder %s34, 1
      %p120 = por %p118, %p119
      %p122 = scmp.ne.s32.totalorder %s107, %s121
      %p123 = scmp.eq.s32.totalorder %s34, 0
      %p124 = por %p122, %p123
      %s126 = sadd.s32 %s125, 1
      %p129 = scmp.eq.s32.totalorder %s28, 1
      %p130 = scmp.ne.s32.totalorder %s125, %s127
      %p131 = scmp.eq.s32.totalorder %s28, 0
      %p132 = por %p130, %p131
      %p133 = scmp.ne.s32.totalorder %s125, %s127
      %p134 = scmp.eq.s32.totalorder %s33, 1
      %p135 = por %p133, %p134
      %p136 = scmp.ne.s32.totalorder %s127, %s128
      %p137 = scmp.eq.s32.totalorder %s33, 0
      %p138 = por %p136, %p137
      %p139 = scmp.ne.s32.totalorder %s127, %s128
      %p140 = scmp.eq.s32.totalorder %s34, 1
      %p141 = por %p139, %p140
      %p143 = scmp.ne.s32.totalorder %s128, %s142
      %p144 = scmp.eq.s32.totalorder %s34, 0
      %p145 = por %p143, %p144
      %s147 = sadd.s32 %s146, 1
      %p150 = scmp.eq.s32.totalorder %s28, 1
      %p151 = scmp.ne.s32.totalorder %s146, %s148
      %p152 = scmp.eq.s32.totalorder %s28, 0
      %p153 = por %p151, %p152
      %p154 = scmp.ne.s32.totalorder %s146, %s148
      %p155 = scmp.eq.s32.totalorder %s33, 1
      %p156 = por %p154, %p155
      %p157 = scmp.ne.s32.totalorder %s148, %s149
      %p158 = scmp.eq.s32.totalorder %s33, 0
      %p159 = por %p157, %p158
      %p160 = scmp.ne.s32.totalorder %s148, %s149
      %p161 = scmp.eq.s32.totalorder %s34, 1
      %p162 = por %p160, %p161
      %p164 = scmp.ne.s32.totalorder %s149, %s163
      %p165 = scmp.eq.s32.totalorder %s34, 0
      %p166 = por %p164, %p165
      %s168 = sadd.s32 %s167, 1
      %p171 = scmp.eq.s32.totalorder %s28, 1
      %p172 = scmp.ne.s32.totalorder %s167, %s169
      %p173 = scmp.eq.s32.totalorder %s28, 0
      %p174 = por %p172, %p173
      %p175 = scmp.ne.s32.totalorder %s167, %s169
      %p176 = scmp.eq.s32.totalorder %s33, 1
      %p177 = por %p175, %p176
      %p178 = scmp.ne.s32.totalorder %s169, %s170
      %p179 = scmp.eq.s32.totalorder %s33, 0
      %p180 = por %p178, %p179
      %p181 = scmp.ne.s32.totalorder %s169, %s170
      %p182 = scmp.eq.s32.totalorder %s34, 1
      %p183 = por %p181, %p182
      %p185 = scmp.ne.s32.totalorder %s170, %s184
      %p186 = scmp.eq.s32.totalorder %s34, 0
      %p187 = por %p185, %p186
      %s189 = sadd.s32 %s188, 1
      %p192 = scmp.eq.s32.totalorder %s28, 1
      %p193 = scmp.ne.s32.totalorder %s188, %s190
      %p194 = scmp.eq.s32.totalorder %s28, 0
      %p195 = por %p193, %p194
      %p196 = scmp.ne.s32.totalorder %s188, %s190
      %p197 = scmp.eq.s32.totalorder %s33, 1
      %p198 = por %p196, %p197
      %p199 = scmp.ne.s32.totalorder %s190, %s191
      %p200 = scmp.eq.s32.totalorder %s33, 0
      %p201 = por %p199, %p200
      %p202 = scmp.ne.s32.totalorder %s190, %s191
      %p203 = scmp.eq.s32.totalorder %s34, 1
      %p204 = por %p202, %p203
      %p206 = scmp.ne.s32.totalorder %s191, %s205
      %p207 = scmp.eq.s32.totalorder %s34, 0
      %p208 = por %p206, %p207
      %s210 = sadd.s32 %s209, 1
      %p213 = scmp.eq.s32.totalorder %s28, 1
      %p214 = scmp.ne.s32.totalorder %s209, %s211
      %p215 = scmp.eq.s32.totalorder %s28, 0
      %p216 = por %p214, %p215
      %p217 = scmp.ne.s32.totalorder %s209, %s211
      %p218 = scmp.eq.s32.totalorder %s33, 1
      %p219 = por %p217, %p218
      %p220 = scmp.ne.s32.totalorder %s211, %s212
      %p221 = scmp.eq.s32.totalorder %s33, 0
      %p222 = por %p220, %p221
      %p223 = scmp.ne.s32.totalorder %s211, %s212
      %p224 = scmp.eq.s32.totalorder %s34, 1
      %p225 = por %p223, %p224
      %p227 = scmp.ne.s32.totalorder %s212, %s226
      %p228 = scmp.eq.s32.totalorder %s34, 0
      %p229 = por %p227, %p228
      %s230 = ssub.s32 %s28, %s35
      %p231 = scmp.eq.s32.totalorder %s230, 0
      %s233 = sadd.s32 %s232, 1
      %s234 = scalar_select %p231, %s232, %s233
      %p237 = pneg %p231
      %p238 = scmp.eq.s32.totalorder %s28, 1
      %p239 = por %p237, %p238
      %p240 = scmp.ne.s32.totalorder %s232, %s235
      %p241 = scmp.eq.s32.totalorder %s28, 0
      %p242 = por %p240, %p241
      %p243 = scmp.ne.s32.totalorder %s232, %s235
      %p244 = scmp.eq.s32.totalorder %s33, 1
      %p245 = por %p243, %p244
      %p246 = scmp.ne.s32.totalorder %s235, %s236
      %p247 = scmp.eq.s32.totalorder %s33, 0
      %p248 = por %p246, %p247
      %p249 = scmp.ne.s32.totalorder %s235, %s236
      %p250 = scmp.eq.s32.totalorder %s34, 1
      %p251 = por %p249, %p250
      %p253 = scmp.ne.s32.totalorder %s236, %s252
      %p254 = scmp.eq.s32.totalorder %s34, 0
      %p255 = por %p253, %p254
      %s256 = ssub.s32 %s28, %s35
      %p257 = scmp.eq.s32.totalorder %s256, 0
      %s259 = sadd.s32 %s258, 1
      %s260 = scalar_select %p257, %s258, %s259
      %p263 = pneg %p257
      %p264 = scmp.eq.s32.totalorder %s28, 1
      %p265 = por %p263, %p264
      %p266 = scmp.ne.s32.totalorder %s258, %s261
      %p267 = scmp.eq.s32.totalorder %s28, 0
      %p268 = por %p266, %p267
      %p269 = scmp.ne.s32.totalorder %s258, %s261
      %p270 = scmp.eq.s32.totalorder %s33, 1
      %p271 = por %p269, %p270
      %p272 = scmp.ne.s32.totalorder %s261, %s262
      %p273 = scmp.eq.s32.totalorder %s33, 0
      %p274 = por %p272, %p273
      %p275 = scmp.ne.s32.totalorder %s261, %s262
      %p276 = scmp.eq.s32.totalorder %s34, 1
      %p277 = por %p275, %p276
      %p279 = scmp.ne.s32.totalorder %s262, %s278
      %p280 = scmp.eq.s32.totalorder %s34, 0
      %p281 = por %p279, %p280
      %p282 = scmp.le.s32.totalorder 1, %s28
      %p283 = scmp.lt.s32.totalorder %s28, 3
      %p284 = pnand %p282, %p283
      %p285 = pneg %p284
      // Predicated region
      $region9: #{tpu_custom_call.1} parent=5 // pred_check
        _
      $region10: #{tpu_custom_call.1} parent=5 // pred_check_branch
        %287 = sbr.rel (%p284) target = $region12
      $region11: #{tpu_custom_call.1} parent=5 // pred_region
        %s288 = ssub.s32 %s28, 1
        // Predicated region
        $region13: #{tpu_custom_call.1} parent=11 // pred_check
          %p289 = pneg %p75
        $region14: #{tpu_custom_call.1} parent=11 // pred_check_branch
          %291 = sbr.rel (%p289) target = $region16
        $region15: #{tpu_custom_call.1} parent=11 // pred_region
          %s293 = ssub.s32 16, 16
          %294 = vsyncadd [#allocation5], %s293
          %s296 = sshll.u32 %s1, 4
          %s297 = int_to_ptr.vmem [resolvable:$true] %s296
          %299 = dma.vmem_to_smem %s297, 16, [#allocation6], [#allocation5]
        $region16: #{tpu_custom_call.1} parent=11 // pred_fallthru
          _
        // Predicated region
        $region17: #{tpu_custom_call.1} parent=11 // pred_check
          %p300 = pneg %p96
        $region18: #{tpu_custom_call.1} parent=11 // pred_check_branch
          %302 = sbr.rel (%p300) target = $region20
        $region19: #{tpu_custom_call.1} parent=11 // pred_region
          %s304 = ssub.s32 16, 16
          %305 = vsyncadd [#allocation8], %s304
          %s307 = sshll.u32 %s2, 4
          %s308 = int_to_ptr.vmem [resolvable:$true] %s307
          %310 = dma.vmem_to_smem %s308, 16, [#allocation7], [#allocation8]
        $region20: #{tpu_custom_call.1} parent=11 // pred_fallthru
          _
        // Predicated region
        $region21: #{tpu_custom_call.1} parent=11 // pred_check
          %p311 = pneg %p117
        $region22: #{tpu_custom_call.1} parent=11 // pred_check_branch
          %313 = sbr.rel (%p311) target = $region24
        $region23: #{tpu_custom_call.1} parent=11 // pred_region
          %s315 = ssub.s32 16, 16
          %316 = vsyncadd [#allocation8], %s315
          %s318 = sshll.u32 %s3, 4
          %s319 = int_to_ptr.vmem [resolvable:$true] %s318
          %321 = dma.vmem_to_smem %s319, 16, [#allocation9], [#allocation8]
        $region24: #{tpu_custom_call.1} parent=11 // pred_fallthru
          _
        // Predicated region
        $region25: #{tpu_custom_call.1} parent=11 // pred_check
          %p322 = pneg %p138
        $region26: #{tpu_custom_call.1} parent=11 // pred_check_branch
          %324 = sbr.rel (%p322) target = $region28
        $region27: #{tpu_custom_call.1} parent=11 // pred_region
          _
        $region28: #{tpu_custom_call.1} parent=11 // pred_fallthru
          _
        // Predicated region
        $region29: #{tpu_custom_call.1} parent=11 // pred_check
          %p325 = pneg %p159
        $region30: #{tpu_custom_call.1} parent=11 // pred_check_branch
          %327 = sbr.rel (%p325) target = $region32
        $region31: #{tpu_custom_call.1} parent=11 // pred_region
          _
        $region32: #{tpu_custom_call.1} parent=11 // pred_fallthru
          _
        // Predicated region
        $region33: #{tpu_custom_call.1} parent=11 // pred_check
          %p328 = pneg %p180
        $region34: #{tpu_custom_call.1} parent=11 // pred_check_branch
          %330 = sbr.rel (%p328) target = $region36
        $region35: #{tpu_custom_call.1} parent=11 // pred_region
          _
        $region36: #{tpu_custom_call.1} parent=11 // pred_fallthru
          _
        // Predicated region
        $region37: #{tpu_custom_call.1} parent=11 // pred_check
          %p331 = pneg %p201
        $region38: #{tpu_custom_call.1} parent=11 // pred_check_branch
          %333 = sbr.rel (%p331) target = $region40
        $region39: #{tpu_custom_call.1} parent=11 // pred_region
          _
        $region40: #{tpu_custom_call.1} parent=11 // pred_fallthru
          _
        // Predicated region
        $region41: #{tpu_custom_call.1} parent=11 // pred_check
          %p334 = pneg %p222
        $region42: #{tpu_custom_call.1} parent=11 // pred_check_branch
          %336 = sbr.rel (%p334) target = $region44
        $region43: #{tpu_custom_call.1} parent=11 // pred_region
          _
        $region44: #{tpu_custom_call.1} parent=11 // pred_fallthru
          _
      $region12: #{tpu_custom_call.1} parent=5 // pred_fallthru
        _
      %p337 = scmp.lt.s32.totalorder %s28, 2
      // Predicated region
      $region45: #{tpu_custom_call.1} parent=5 // pred_check
        %p338 = pneg %p337
      $region46: #{tpu_custom_call.1} parent=5 // pred_check_branch
        %340 = sbr.rel (%p338) target = $region48
      $region47: #{tpu_custom_call.1} parent=5 // pred_region
        // Predicated region
        $region49: #{tpu_custom_call.1} parent=47 // pred_check
          %p341 = pneg %p48
        $region50: #{tpu_custom_call.1} parent=47 // pred_check_branch
          %343 = sbr.rel (%p341) target = $region52
        $region51: #{tpu_custom_call.1} parent=47 // pred_region
          %s344 = sand.u32 %s38, 1
          %s345 = scalar_lea.sflag [#allocation3], %s344
          %s346 = sand.u32 %s38, 1
          %s347 = smul.addr %s346, 192
          %s348 = scalar_lea.vmem [#allocation2], %s347
          %s350 = ssub.s32 3072, 3072
          %351 = vsyncadd %s345, %s350
          %s352 = smul.addr %s28, 24
          %s353 = smul.addr %s352, 128
          %s354 = scalar_lea.hbm %s0, %s353
          %s355 = sshll.u32 %s348, 4
          %s356 = int_to_ptr.vmem [resolvable:$true] %s355
          %361 = dma.hbm_to_vmem [thread:$0]  %s354, 3072, %s356, %s345, 128, 128, 8
        $region52: #{tpu_custom_call.1} parent=47 // pred_fallthru
          _
      $region48: #{tpu_custom_call.1} parent=5 // pred_fallthru
        _
      %p362 = scmp.le.s32.totalorder 1, %s28
      %p363 = scmp.lt.s32.totalorder %s28, 3
      %p364 = pnand %p362, %p363
      %p365 = pneg %p364
      // Predicated region
      $region53: #{tpu_custom_call.1} parent=5 // pred_check
        _
      $region54: #{tpu_custom_call.1} parent=5 // pred_check_branch
        %367 = sbr.rel (%p364) target = $region56
      $region55: #{tpu_custom_call.1} parent=5 // pred_region
        %s368 = ssub.s32 %s28, 1
        %s369 = sand.u32 %s41, 1
        %s370 = scalar_lea.sflag [#allocation3], %s369
        %s371 = sand.u32 %s41, 1
        %s372 = smul.addr %s371, 192
        %s373 = scalar_lea.vmem [#allocation2], %s372
        // Predicated region
        $region57: #{tpu_custom_call.1} parent=55 // pred_check
          %p374 = pneg %p54
        $region58: #{tpu_custom_call.1} parent=55 // pred_check_branch
          %376 = sbr.rel (%p374) target = $region60
        $region59: #{tpu_custom_call.1} parent=55 // pred_region
          %377 = dma.done %s370, 3072
        $region60: #{tpu_custom_call.1} parent=55 // pred_fallthru
          _
        // Predicated region
        $region61: #{tpu_custom_call.1} parent=55 // pred_check
          %p378 = pneg %p75
        $region62: #{tpu_custom_call.1} parent=55 // pred_check_branch
          %380 = sbr.rel (%p378) target = $region64
        $region63: #{tpu_custom_call.1} parent=55 // pred_region
          %381 = dma.done [#allocation5], 16
        $region64: #{tpu_custom_call.1} parent=55 // pred_fallthru
          _
        // Predicated region
        $region65: #{tpu_custom_call.1} parent=55 // pred_check
          %p382 = pneg %p96
        $region66: #{tpu_custom_call.1} parent=55 // pred_check_branch
          %384 = sbr.rel (%p382) target = $region68
        $region67: #{tpu_custom_call.1} parent=55 // pred_region
          %385 = dma.done [#allocation8], 16
        $region68: #{tpu_custom_call.1} parent=55 // pred_fallthru
          _
        // Predicated region
        $region69: #{tpu_custom_call.1} parent=55 // pred_check
          %p386 = pneg %p117
        $region70: #{tpu_custom_call.1} parent=55 // pred_check_branch
          %388 = sbr.rel (%p386) target = $region72
        $region71: #{tpu_custom_call.1} parent=55 // pred_region
          %389 = dma.done [#allocation8], 16
        $region72: #{tpu_custom_call.1} parent=55 // pred_fallthru
          _
        %390 = sfence
        %s391 = sand.u32 %s41, 1
        %s392 = scalar_lea.sflag [#allocation3], %s391
        %s393 = sand.u32 %s41, 1
        %s394 = smul.addr %s393, 192
        %s395 = scalar_lea.vmem [#allocation2], %s394
        %p396 = pneg %p54
        %p397 = pneg %p51
        %p398 = pneg %p75
        %p399 = pneg %p72
        %p400 = pneg %p96
        %p401 = pneg %p93
        %p402 = pneg %p117
        %p403 = pneg %p114
        %p404 = pneg %p138
        %p405 = pneg %p135
        %p406 = pneg %p159
        %p407 = pneg %p156
        %p408 = pneg %p180
        %p409 = pneg %p177
        %p410 = pneg %p201
        %p411 = pneg %p198
        %p412 = pneg %p222
        %p413 = pneg %p219
        %p414 = pneg %p248
        %p415 = pneg %p245
        %s416 = sand.u32 %s235, 1
        %s417 = scalar_lea.sflag [#allocation4], %s416
        %s418 = sand.u32 %s235, 1
        %s419 = smul.addr %s418, 192
        %s420 = scalar_lea.vmem [#allocation10], %s419
        %p421 = pneg %p274
        %p422 = pneg %p271
        %s423 = sand.u32 %s261, 1
        %s424 = scalar_lea.sflag [#allocation12], %s423
        %s425 = sand.u32 %s261, 1
        %s426 = smul.addr %s425, 64
        %s427 = scalar_lea.vmem [#allocation11], %s426
        %v428 = vld [vmem:[%s373] sm:$0xff]
        %v429 = vld [vmem:[%s373 + $0x8] sm:$0xff]
        %v430 = vld [vmem:[%s373 + $0x10] sm:$0xff]
        %v431 = vld [vmem:[%s373 + $0x18] sm:$0xff]
        %v432 = vld [vmem:[%s373 + $0x20] sm:$0xff]
        %v433 = vld [vmem:[%s373 + $0x28] sm:$0xff]
        %v434 = vld [vmem:[%s373 + $0x30] sm:$0xff]
        %v435 = vld [vmem:[%s373 + $0x38] sm:$0xff]
        %s436 = scalar_lea.vmem %s373, 64 [#allocation2]
        %v437 = vld [vmem:[%s436] sm:$0xff]
        %v438 = vld [vmem:[%s436 + $0x8] sm:$0xff]
        %v439 = vld [vmem:[%s436 + $0x10] sm:$0xff]
        %v440 = vld [vmem:[%s436 + $0x18] sm:$0xff]
        %v441 = vld [vmem:[%s436 + $0x20] sm:$0xff]
        %v442 = vld [vmem:[%s436 + $0x28] sm:$0xff]
        %v443 = vld [vmem:[%s436 + $0x30] sm:$0xff]
        %v444 = vld [vmem:[%s436 + $0x38] sm:$0xff]
        %s445 = scalar_lea.vmem %s373, 128 [#allocation2]
        %v446 = vld [vmem:[%s445] sm:$0xff]
        %v447 = vld [vmem:[%s445 + $0x8] sm:$0xff]
        %v448 = vld [vmem:[%s445 + $0x10] sm:$0xff]
        %v449 = vld [vmem:[%s445 + $0x18] sm:$0xff]
        %v450 = vld [vmem:[%s445 + $0x20] sm:$0xff]
        %v451 = vld [vmem:[%s445 + $0x28] sm:$0xff]
        %v452 = vld [vmem:[%s445 + $0x30] sm:$0xff]
        %v453 = vld [vmem:[%s445 + $0x38] sm:$0xff]
        %v454 = vlaneseq
        %v455 = vshrl.u32 %v454, 7
        %v456 = vadd.s32 %v455, 8
        %v457 = vadd.s32 %v455, 16
        %v458 = vadd.s32 %v455, 24
        %v459 = vadd.s32 %v455, 32
        %v460 = vadd.s32 %v455, 40
        %v461 = vadd.s32 %v455, 48
        %v462 = vadd.s32 %v455, 56
        %v463 = vlaneseq
        %v464 = vand.u32 %v463, 127
        %v465 = vmul.f32 %v428, 0.299
        %v466 = vmul.f32 %v429, 0.299
        %v467 = vmul.f32 %v430, 0.299
        %v468 = vmul.f32 %v431, 0.299
        %v469 = vmul.f32 %v432, 0.299
        %v470 = vmul.f32 %v433, 0.299
        %v471 = vmul.f32 %v434, 0.299
        %v472 = vmul.f32 %v435, 0.299
        %v473 = vmul.f32 %v437, 0.587
        %v474 = vmul.f32 %v438, 0.587
        %v475 = vmul.f32 %v439, 0.587
        %v476 = vmul.f32 %v440, 0.587
        %v477 = vmul.f32 %v441, 0.587
        %v478 = vmul.f32 %v442, 0.587
        %v479 = vmul.f32 %v443, 0.587
        %v480 = vmul.f32 %v444, 0.587
        %v481 = vadd.f32 %v465, %v473
        %v482 = vadd.f32 %v466, %v474
        %v483 = vadd.f32 %v467, %v475
        %v484 = vadd.f32 %v468, %v476
        %v485 = vadd.f32 %v469, %v477
        %v486 = vadd.f32 %v470, %v478
        %v487 = vadd.f32 %v471, %v479
        %v488 = vadd.f32 %v472, %v480
        %v489 = vmul.f32 %v446, 0.114
        %v490 = vmul.f32 %v447, 0.114
        %v491 = vmul.f32 %v448, 0.114
        %v492 = vmul.f32 %v449, 0.114
        %v493 = vmul.f32 %v450, 0.114
        %v494 = vmul.f32 %v451, 0.114
        %v495 = vmul.f32 %v452, 0.114
        %v496 = vmul.f32 %v453, 0.114
        %v497 = vadd.f32 %v481, %v489
        %v498 = vadd.f32 %v482, %v490
        %v499 = vadd.f32 %v483, %v491
        %v500 = vadd.f32 %v484, %v492
        %v501 = vadd.f32 %v485, %v493
        %v502 = vadd.f32 %v486, %v494
        %v503 = vadd.f32 %v487, %v495
        %v504 = vadd.f32 %v488, %v496
        %vm505 = vcmp.ge.s32.totalorder %v455, 1
        %vm506 = vcmp.ge.s32.totalorder %v456, 1
        %vm507 = vcmp.ge.s32.totalorder %v457, 1
        %vm508 = vcmp.ge.s32.totalorder %v458, 1
        %vm509 = vcmp.ge.s32.totalorder %v459, 1
        %vm510 = vcmp.ge.s32.totalorder %v460, 1
        %vm511 = vcmp.ge.s32.totalorder %v461, 1
        %vm512 = vcmp.ge.s32.totalorder %v462, 1
        %v514 = vrot.slane %v504, 7
        %vm523 = vcmask 1040384
        %v524 = vrot.slane %v497, 7
        %v525 = vrot.slane %v498, 7
        %v526 = vsel %vm523, %v524, %v525
        %v527 = vrot.slane %v499, 7
        %v528 = vsel %vm523, %v525, %v527
        %v529 = vrot.slane %v500, 7
        %v530 = vsel %vm523, %v527, %v529
        %v531 = vrot.slane %v501, 7
        %v532 = vsel %vm523, %v529, %v531
        %v533 = vrot.slane %v502, 7
        %v534 = vsel %vm523, %v531, %v533
        %v535 = vrot.slane %v503, 7
        %v536 = vsel %vm523, %v533, %v535
        %v537 = vsel %vm523, %v535, %v514
        %v546 = vsel %vm523, %v514, %v524
        %v547 = vsel %vm505, 1, 0
        %v548 = vsel %vm506, 1, 0
        %v549 = vsel %vm507, 1, 0
        %v550 = vsel %vm508, 1, 0
        %v551 = vsel %vm509, 1, 0
        %v552 = vsel %vm510, 1, 0
        %v553 = vsel %vm511, 1, 0
        %v554 = vsel %vm512, 1, 0
        %vm555 = vcmp.eq.s32.totalorder %v547, 1
        %vm556 = vcmp.eq.s32.totalorder %v548, 1
        %vm557 = vcmp.eq.s32.totalorder %v549, 1
        %vm558 = vcmp.eq.s32.totalorder %v550, 1
        %vm559 = vcmp.eq.s32.totalorder %v551, 1
        %vm560 = vcmp.eq.s32.totalorder %v552, 1
        %vm561 = vcmp.eq.s32.totalorder %v553, 1
        %vm562 = vcmp.eq.s32.totalorder %v554, 1
        %v563 = vsel %vm555, %v546, 0.0
        %v564 = vsel %vm556, %v526, 0.0
        %v565 = vsel %vm557, %v528, 0.0
        %v566 = vsel %vm558, %v530, 0.0
        %v567 = vsel %vm559, %v532, 0.0
        %v568 = vsel %vm560, %v534, 0.0
        %v569 = vsel %vm561, %v536, 0.0
        %v570 = vsel %vm562, %v537, 0.0
        %vm571 = vcmp.le.s32.totalorder %v455, 62
        %vm572 = vcmp.le.s32.totalorder %v456, 62
        %vm573 = vcmp.le.s32.totalorder %v457, 62
        %vm574 = vcmp.le.s32.totalorder %v458, 62
        %vm575 = vcmp.le.s32.totalorder %v459, 62
        %vm576 = vcmp.le.s32.totalorder %v460, 62
        %vm577 = vcmp.le.s32.totalorder %v461, 62
        %vm578 = vcmp.le.s32.totalorder %v462, 62
        %vm579 = vcmask 1046528
        %v580 = vrot.slane %v497, 1
        %v581 = vrot.slane %v498, 1
        %v582 = vsel %vm579, %v580, %v581
        %v583 = vrot.slane %v499, 1
        %v584 = vsel %vm579, %v581, %v583
        %v585 = vrot.slane %v500, 1
        %v586 = vsel %vm579, %v583, %v585
        %v587 = vrot.slane %v501, 1
        %v588 = vsel %vm579, %v585, %v587
        %v589 = vrot.slane %v502, 1
        %v590 = vsel %vm579, %v587, %v589
        %v591 = vrot.slane %v503, 1
        %v592 = vsel %vm579, %v589, %v591
        %v593 = vrot.slane %v504, 1
        %v594 = vsel %vm579, %v591, %v593
        %v604 = vsel %vm579, %v593, %v580
        %v605 = vsel %vm571, 1, 0
        %v606 = vsel %vm572, 1, 0
        %v607 = vsel %vm573, 1, 0
        %v608 = vsel %vm574, 1, 0
        %v609 = vsel %vm575, 1, 0
        %v610 = vsel %vm576, 1, 0
        %v611 = vsel %vm577, 1, 0
        %v612 = vsel %vm578, 1, 0
        %vm613 = vcmp.eq.s32.totalorder %v605, 1
        %vm614 = vcmp.eq.s32.totalorder %v606, 1
        %vm615 = vcmp.eq.s32.totalorder %v607, 1
        %vm616 = vcmp.eq.s32.totalorder %v608, 1
        %vm617 = vcmp.eq.s32.totalorder %v609, 1
        %vm618 = vcmp.eq.s32.totalorder %v610, 1
        %vm619 = vcmp.eq.s32.totalorder %v611, 1
        %vm620 = vcmp.eq.s32.totalorder %v612, 1
        %v621 = vsel %vm613, %v582, 0.0
        %v622 = vsel %vm614, %v584, 0.0
        %v623 = vsel %vm615, %v586, 0.0
        %v624 = vsel %vm616, %v588, 0.0
        %v625 = vsel %vm617, %v590, 0.0
        %v626 = vsel %vm618, %v592, 0.0
        %v627 = vsel %vm619, %v594, 0.0
        %v628 = vsel %vm620, %v604, 0.0
        %vm629 = vcmp.ge.s32.totalorder %v464, 1
        %638 = vrot.lane.b32.xlu0 %v563, 1
        %v639 = vpop.permute.xlu0 %638
        %640 = vrot.lane.b32.xlu0 %v564, 1
        %v641 = vpop.permute.xlu0 %640
        %642 = vrot.lane.b32.xlu0 %v565, 1
        %v643 = vpop.permute.xlu0 %642
        %644 = vrot.lane.b32.xlu0 %v566, 1
        %v645 = vpop.permute.xlu0 %644
        %646 = vrot.lane.b32.xlu0 %v567, 1
        %v647 = vpop.permute.xlu0 %646
        %648 = vrot.lane.b32.xlu0 %v568, 1
        %v649 = vpop.permute.xlu0 %648
        %650 = vrot.lane.b32.xlu0 %v569, 1
        %v651 = vpop.permute.xlu0 %650
        %652 = vrot.lane.b32.xlu0 %v570, 1
        %v653 = vpop.permute.xlu0 %652
        %v662 = vsel %vm629, 1, 0
        %vm663 = vcmp.eq.s32.totalorder %v662, 1
        %v664 = vsel %vm663, %v639, 0.0
        %v665 = vsel %vm663, %v641, 0.0
        %v666 = vsel %vm663, %v643, 0.0
        %v667 = vsel %vm663, %v645, 0.0
        %v668 = vsel %vm663, %v647, 0.0
        %v669 = vsel %vm663, %v649, 0.0
        %v670 = vsel %vm663, %v651, 0.0
        %v671 = vsel %vm663, %v653, 0.0
        %vm672 = vcmp.le.s32.totalorder %v464, 126
        %673 = vrot.lane.b32.xlu0 %v563, 127
        %v674 = vpop.permute.xlu0 %673
        %675 = vrot.lane.b32.xlu0 %v564, 127
        %v676 = vpop.permute.xlu0 %675
        %677 = vrot.lane.b32.xlu0 %v565, 127
        %v678 = vpop.permute.xlu0 %677
        %679 = vrot.lane.b32.xlu0 %v566, 127
        %v680 = vpop.permute.xlu0 %679
        %681 = vrot.lane.b32.xlu0 %v567, 127
        %v682 = vpop.permute.xlu0 %681
        %683 = vrot.lane.b32.xlu0 %v568, 127
        %v684 = vpop.permute.xlu0 %683
        %685 = vrot.lane.b32.xlu0 %v569, 127
        %v686 = vpop.permute.xlu0 %685
        %687 = vrot.lane.b32.xlu0 %v570, 127
        %v688 = vpop.permute.xlu0 %687
        %v697 = vsel %vm672, 1, 0
        %vm698 = vcmp.eq.s32.totalorder %v697, 1
        %v699 = vsel %vm698, %v674, 0.0
        %v700 = vsel %vm698, %v676, 0.0
        %v701 = vsel %vm698, %v678, 0.0
        %v702 = vsel %vm698, %v680, 0.0
        %v703 = vsel %vm698, %v682, 0.0
        %v704 = vsel %vm698, %v684, 0.0
        %v705 = vsel %vm698, %v686, 0.0
        %v706 = vsel %vm698, %v688, 0.0
        %707 = vrot.lane.b32.xlu0 %v497, 1
        %v708 = vpop.permute.xlu0 %707
        %709 = vrot.lane.b32.xlu0 %v498, 1
        %v710 = vpop.permute.xlu0 %709
        %711 = vrot.lane.b32.xlu0 %v499, 1
        %v712 = vpop.permute.xlu0 %711
        %713 = vrot.lane.b32.xlu0 %v500, 1
        %v714 = vpop.permute.xlu0 %713
        %715 = vrot.lane.b32.xlu0 %v501, 1
        %v716 = vpop.permute.xlu0 %715
        %717 = vrot.lane.b32.xlu0 %v502, 1
        %v718 = vpop.permute.xlu0 %717
        %719 = vrot.lane.b32.xlu0 %v503, 1
        %v720 = vpop.permute.xlu0 %719
        %721 = vrot.lane.b32.xlu0 %v504, 1
        %v722 = vpop.permute.xlu0 %721
        %v731 = vsel %vm663, %v708, 0.0
        %v732 = vsel %vm663, %v710, 0.0
        %v733 = vsel %vm663, %v712, 0.0
        %v734 = vsel %vm663, %v714, 0.0
        %v735 = vsel %vm663, %v716, 0.0
        %v736 = vsel %vm663, %v718, 0.0
        %v737 = vsel %vm663, %v720, 0.0
        %v738 = vsel %vm663, %v722, 0.0
        %739 = vrot.lane.b32.xlu0 %v497, 127
        %v740 = vpop.permute.xlu0 %739
        %741 = vrot.lane.b32.xlu0 %v498, 127
        %v742 = vpop.permute.xlu0 %741
        %743 = vrot.lane.b32.xlu0 %v499, 127
        %v744 = vpop.permute.xlu0 %743
        %745 = vrot.lane.b32.xlu0 %v500, 127
        %v746 = vpop.permute.xlu0 %745
        %747 = vrot.lane.b32.xlu0 %v501, 127
        %v748 = vpop.permute.xlu0 %747
        %749 = vrot.lane.b32.xlu0 %v502, 127
        %v750 = vpop.permute.xlu0 %749
        %751 = vrot.lane.b32.xlu0 %v503, 127
        %v752 = vpop.permute.xlu0 %751
        %753 = vrot.lane.b32.xlu0 %v504, 127
        %v754 = vpop.permute.xlu0 %753
        %v763 = vsel %vm698, %v740, 0.0
        %v764 = vsel %vm698, %v742, 0.0
        %v765 = vsel %vm698, %v744, 0.0
        %v766 = vsel %vm698, %v746, 0.0
        %v767 = vsel %vm698, %v748, 0.0
        %v768 = vsel %vm698, %v750, 0.0
        %v769 = vsel %vm698, %v752, 0.0
        %v770 = vsel %vm698, %v754, 0.0
        %779 = vrot.lane.b32.xlu0 %v621, 1
        %v780 = vpop.permute.xlu0 %779
        %781 = vrot.lane.b32.xlu0 %v622, 1
        %v782 = vpop.permute.xlu0 %781
        %783 = vrot.lane.b32.xlu0 %v623, 1
        %v784 = vpop.permute.xlu0 %783
        %785 = vrot.lane.b32.xlu0 %v624, 1
        %v786 = vpop.permute.xlu0 %785
        %787 = vrot.lane.b32.xlu0 %v625, 1
        %v788 = vpop.permute.xlu0 %787
        %789 = vrot.lane.b32.xlu0 %v626, 1
        %v790 = vpop.permute.xlu0 %789
        %791 = vrot.lane.b32.xlu0 %v627, 1
        %v792 = vpop.permute.xlu0 %791
        %793 = vrot.lane.b32.xlu0 %v628, 1
        %v794 = vpop.permute.xlu0 %793
        %v803 = vsel %vm663, %v780, 0.0
        %v804 = vsel %vm663, %v782, 0.0
        %v805 = vsel %vm663, %v784, 0.0
        %v806 = vsel %vm663, %v786, 0.0
        %v807 = vsel %vm663, %v788, 0.0
        %v808 = vsel %vm663, %v790, 0.0
        %v809 = vsel %vm663, %v792, 0.0
        %v810 = vsel %vm663, %v794, 0.0
        %811 = vrot.lane.b32.xlu0 %v621, 127
        %v812 = vpop.permute.xlu0 %811
        %813 = vrot.lane.b32.xlu0 %v622, 127
        %v814 = vpop.permute.xlu0 %813
        %815 = vrot.lane.b32.xlu0 %v623, 127
        %v816 = vpop.permute.xlu0 %815
        %817 = vrot.lane.b32.xlu0 %v624, 127
        %v818 = vpop.permute.xlu0 %817
        %819 = vrot.lane.b32.xlu0 %v625, 127
        %v820 = vpop.permute.xlu0 %819
        %821 = vrot.lane.b32.xlu0 %v626, 127
        %v822 = vpop.permute.xlu0 %821
        %823 = vrot.lane.b32.xlu0 %v627, 127
        %v824 = vpop.permute.xlu0 %823
        %825 = vrot.lane.b32.xlu0 %v628, 127
        %v826 = vpop.permute.xlu0 %825
        %v835 = vsel %vm698, %v812, 0.0
        %v836 = vsel %vm698, %v814, 0.0
        %v837 = vsel %vm698, %v816, 0.0
        %v838 = vsel %vm698, %v818, 0.0
        %v839 = vsel %vm698, %v820, 0.0
        %v840 = vsel %vm698, %v822, 0.0
        %v841 = vsel %vm698, %v824, 0.0
        %v842 = vsel %vm698, %v826, 0.0
        %vm843 = vcmp.ge.f32.partialorder %v664, %v497
        %vm844 = vcmp.ge.f32.partialorder %v665, %v498
        %vm845 = vcmp.ge.f32.partialorder %v666, %v499
        %vm846 = vcmp.ge.f32.partialorder %v667, %v500
        %vm847 = vcmp.ge.f32.partialorder %v668, %v501
        %vm848 = vcmp.ge.f32.partialorder %v669, %v502
        %vm849 = vcmp.ge.f32.partialorder %v670, %v503
        %vm850 = vcmp.ge.f32.partialorder %v671, %v504
        %v851 = vsel %vm843, 1, 0
        %v852 = vsel %vm844, 1, 0
        %v853 = vsel %vm845, 1, 0
        %v854 = vsel %vm846, 1, 0
        %v855 = vsel %vm847, 1, 0
        %v856 = vsel %vm848, 1, 0
        %v857 = vsel %vm849, 1, 0
        %v858 = vsel %vm850, 1, 0
        %v859 = vcvt.s32.f32 %v851
        %v860 = vcvt.s32.f32 %v852
        %v861 = vcvt.s32.f32 %v853
        %v862 = vcvt.s32.f32 %v854
        %v863 = vcvt.s32.f32 %v855
        %v864 = vcvt.s32.f32 %v856
        %v865 = vcvt.s32.f32 %v857
        %v866 = vcvt.s32.f32 %v858
        %vm867 = vcmp.ge.f32.partialorder %v563, %v497
        %vm868 = vcmp.ge.f32.partialorder %v564, %v498
        %vm869 = vcmp.ge.f32.partialorder %v565, %v499
        %vm870 = vcmp.ge.f32.partialorder %v566, %v500
        %vm871 = vcmp.ge.f32.partialorder %v567, %v501
        %vm872 = vcmp.ge.f32.partialorder %v568, %v502
        %vm873 = vcmp.ge.f32.partialorder %v569, %v503
        %vm874 = vcmp.ge.f32.partialorder %v570, %v504
        %v875 = vsel %vm867, 1, 0
        %v876 = vsel %vm868, 1, 0
        %v877 = vsel %vm869, 1, 0
        %v878 = vsel %vm870, 1, 0
        %v879 = vsel %vm871, 1, 0
        %v880 = vsel %vm872, 1, 0
        %v881 = vsel %vm873, 1, 0
        %v882 = vsel %vm874, 1, 0
        %v883 = vcvt.s32.f32 %v875
        %v884 = vcvt.s32.f32 %v876
        %v885 = vcvt.s32.f32 %v877
        %v886 = vcvt.s32.f32 %v878
        %v887 = vcvt.s32.f32 %v879
        %v888 = vcvt.s32.f32 %v880
        %v889 = vcvt.s32.f32 %v881
        %v890 = vcvt.s32.f32 %v882
        %vm891 = vcmp.ge.f32.partialorder %v699, %v497
        %vm892 = vcmp.ge.f32.partialorder %v700, %v498
        %vm893 = vcmp.ge.f32.partialorder %v701, %v499
        %vm894 = vcmp.ge.f32.partialorder %v702, %v500
        %vm895 = vcmp.ge.f32.partialorder %v703, %v501
        %vm896 = vcmp.ge.f32.partialorder %v704, %v502
        %vm897 = vcmp.ge.f32.partialorder %v705, %v503
        %vm898 = vcmp.ge.f32.partialorder %v706, %v504
        %v899 = vsel %vm891, 1, 0
        %v900 = vsel %vm892, 1, 0
        %v901 = vsel %vm893, 1, 0
        %v902 = vsel %vm894, 1, 0
        %v903 = vsel %vm895, 1, 0
        %v904 = vsel %vm896, 1, 0
        %v905 = vsel %vm897, 1, 0
        %v906 = vsel %vm898, 1, 0
        %v907 = vcvt.s32.f32 %v899
        %v908 = vcvt.s32.f32 %v900
        %v909 = vcvt.s32.f32 %v901
        %v910 = vcvt.s32.f32 %v902
        %v911 = vcvt.s32.f32 %v903
        %v912 = vcvt.s32.f32 %v904
        %v913 = vcvt.s32.f32 %v905
        %v914 = vcvt.s32.f32 %v906
        %vm915 = vcmp.ge.f32.partialorder %v763, %v497
        %vm916 = vcmp.ge.f32.partialorder %v764, %v498
        %vm917 = vcmp.ge.f32.partialorder %v765, %v499
        %vm918 = vcmp.ge.f32.partialorder %v766, %v500
        %vm919 = vcmp.ge.f32.partialorder %v767, %v501
        %vm920 = vcmp.ge.f32.partialorder %v768, %v502
        %vm921 = vcmp.ge.f32.partialorder %v769, %v503
        %vm922 = vcmp.ge.f32.partialorder %v770, %v504
        %v923 = vsel %vm915, 1, 0
        %v924 = vsel %vm916, 1, 0
        %v925 = vsel %vm917, 1, 0
        %v926 = vsel %vm918, 1, 0
        %v927 = vsel %vm919, 1, 0
        %v928 = vsel %vm920, 1, 0
        %v929 = vsel %vm921, 1, 0
        %v930 = vsel %vm922, 1, 0
        %v931 = vcvt.s32.f32 %v923
        %v932 = vcvt.s32.f32 %v924
        %v933 = vcvt.s32.f32 %v925
        %v934 = vcvt.s32.f32 %v926
        %v935 = vcvt.s32.f32 %v927
        %v936 = vcvt.s32.f32 %v928
        %v937 = vcvt.s32.f32 %v929
        %v938 = vcvt.s32.f32 %v930
        %vm939 = vcmp.ge.f32.partialorder %v835, %v497
        %vm940 = vcmp.ge.f32.partialorder %v836, %v498
        %vm941 = vcmp.ge.f32.partialorder %v837, %v499
        %vm942 = vcmp.ge.f32.partialorder %v838, %v500
        %vm943 = vcmp.ge.f32.partialorder %v839, %v501
        %vm944 = vcmp.ge.f32.partialorder %v840, %v502
        %vm945 = vcmp.ge.f32.partialorder %v841, %v503
        %vm946 = vcmp.ge.f32.partialorder %v842, %v504
        %v947 = vsel %vm939, 1, 0
        %v948 = vsel %vm940, 1, 0
        %v949 = vsel %vm941, 1, 0
        %v950 = vsel %vm942, 1, 0
        %v951 = vsel %vm943, 1, 0
        %v952 = vsel %vm944, 1, 0
        %v953 = vsel %vm945, 1, 0
        %v954 = vsel %vm946, 1, 0
        %v955 = vcvt.s32.f32 %v947
        %v956 = vcvt.s32.f32 %v948
        %v957 = vcvt.s32.f32 %v949
        %v958 = vcvt.s32.f32 %v950
        %v959 = vcvt.s32.f32 %v951
        %v960 = vcvt.s32.f32 %v952
        %v961 = vcvt.s32.f32 %v953
        %v962 = vcvt.s32.f32 %v954
        %vm963 = vcmp.ge.f32.partialorder %v621, %v497
        %vm964 = vcmp.ge.f32.partialorder %v622, %v498
        %vm965 = vcmp.ge.f32.partialorder %v623, %v499
        %vm966 = vcmp.ge.f32.partialorder %v624, %v500
        %vm967 = vcmp.ge.f32.partialorder %v625, %v501
        %vm968 = vcmp.ge.f32.partialorder %v626, %v502
        %vm969 = vcmp.ge.f32.partialorder %v627, %v503
        %vm970 = vcmp.ge.f32.partialorder %v628, %v504
        %v971 = vsel %vm963, 1, 0
        %v972 = vsel %vm964, 1, 0
        %v973 = vsel %vm965, 1, 0
        %v974 = vsel %vm966, 1, 0
        %v975 = vsel %vm967, 1, 0
        %v976 = vsel %vm968, 1, 0
        %v977 = vsel %vm969, 1, 0
        %v978 = vsel %vm970, 1, 0
        %v979 = vcvt.s32.f32 %v971
        %v980 = vcvt.s32.f32 %v972
        %v981 = vcvt.s32.f32 %v973
        %v982 = vcvt.s32.f32 %v974
        %v983 = vcvt.s32.f32 %v975
        %v984 = vcvt.s32.f32 %v976
        %v985 = vcvt.s32.f32 %v977
        %v986 = vcvt.s32.f32 %v978
        %vm987 = vcmp.ge.f32.partialorder %v803, %v497
        %vm988 = vcmp.ge.f32.partialorder %v804, %v498
        %vm989 = vcmp.ge.f32.partialorder %v805, %v499
        %vm990 = vcmp.ge.f32.partialorder %v806, %v500
        %vm991 = vcmp.ge.f32.partialorder %v807, %v501
        %vm992 = vcmp.ge.f32.partialorder %v808, %v502
        %vm993 = vcmp.ge.f32.partialorder %v809, %v503
        %vm994 = vcmp.ge.f32.partialorder %v810, %v504
        %v995 = vsel %vm987, 1, 0
        %v996 = vsel %vm988, 1, 0
        %v997 = vsel %vm989, 1, 0
        %v998 = vsel %vm990, 1, 0
        %v999 = vsel %vm991, 1, 0
        %v1000 = vsel %vm992, 1, 0
        %v1001 = vsel %vm993, 1, 0
        %v1002 = vsel %vm994, 1, 0
        %v1003 = vcvt.s32.f32 %v995
        %v1004 = vcvt.s32.f32 %v996
        %v1005 = vcvt.s32.f32 %v997
        %v1006 = vcvt.s32.f32 %v998
        %v1007 = vcvt.s32.f32 %v999
        %v1008 = vcvt.s32.f32 %v1000
        %v1009 = vcvt.s32.f32 %v1001
        %v1010 = vcvt.s32.f32 %v1002
        %vm1011 = vcmp.ge.f32.partialorder %v731, %v497
        %vm1012 = vcmp.ge.f32.partialorder %v732, %v498
        %vm1013 = vcmp.ge.f32.partialorder %v733, %v499
        %vm1014 = vcmp.ge.f32.partialorder %v734, %v500
        %vm1015 = vcmp.ge.f32.partialorder %v735, %v501
        %vm1016 = vcmp.ge.f32.partialorder %v736, %v502
        %vm1017 = vcmp.ge.f32.partialorder %v737, %v503
        %vm1018 = vcmp.ge.f32.partialorder %v738, %v504
        %v1019 = vsel %vm1011, 1, 0
        %v1020 = vsel %vm1012, 1, 0
        %v1021 = vsel %vm1013, 1, 0
        %v1022 = vsel %vm1014, 1, 0
        %v1023 = vsel %vm1015, 1, 0
        %v1024 = vsel %vm1016, 1, 0
        %v1025 = vsel %vm1017, 1, 0
        %v1026 = vsel %vm1018, 1, 0
        %v1027 = vcvt.s32.f32 %v1019
        %v1028 = vcvt.s32.f32 %v1020
        %v1029 = vcvt.s32.f32 %v1021
        %v1030 = vcvt.s32.f32 %v1022
        %v1031 = vcvt.s32.f32 %v1023
        %v1032 = vcvt.s32.f32 %v1024
        %v1033 = vcvt.s32.f32 %v1025
        %v1034 = vcvt.s32.f32 %v1026
        %v1035 = vadd.f32 %v859, %v883
        %v1036 = vadd.f32 %v860, %v884
        %v1037 = vadd.f32 %v861, %v885
        %v1038 = vadd.f32 %v862, %v886
        %v1039 = vadd.f32 %v863, %v887
        %v1040 = vadd.f32 %v864, %v888
        %v1041 = vadd.f32 %v865, %v889
        %v1042 = vadd.f32 %v866, %v890
        %v1043 = vadd.f32 %v1035, %v907
        %v1044 = vadd.f32 %v1036, %v908
        %v1045 = vadd.f32 %v1037, %v909
        %v1046 = vadd.f32 %v1038, %v910
        %v1047 = vadd.f32 %v1039, %v911
        %v1048 = vadd.f32 %v1040, %v912
        %v1049 = vadd.f32 %v1041, %v913
        %v1050 = vadd.f32 %v1042, %v914
        %v1051 = vadd.f32 %v1043, %v931
        %v1052 = vadd.f32 %v1044, %v932
        %v1053 = vadd.f32 %v1045, %v933
        %v1054 = vadd.f32 %v1046, %v934
        %v1055 = vadd.f32 %v1047, %v935
        %v1056 = vadd.f32 %v1048, %v936
        %v1057 = vadd.f32 %v1049, %v937
        %v1058 = vadd.f32 %v1050, %v938
        %v1059 = vadd.f32 %v1051, %v955
        %v1060 = vadd.f32 %v1052, %v956
        %v1061 = vadd.f32 %v1053, %v957
        %v1062 = vadd.f32 %v1054, %v958
        %v1063 = vadd.f32 %v1055, %v959
        %v1064 = vadd.f32 %v1056, %v960
        %v1065 = vadd.f32 %v1057, %v961
        %v1066 = vadd.f32 %v1058, %v962
        %v1067 = vadd.f32 %v1059, %v979
        %v1068 = vadd.f32 %v1060, %v980
        %v1069 = vadd.f32 %v1061, %v981
        %v1070 = vadd.f32 %v1062, %v982
        %v1071 = vadd.f32 %v1063, %v983
        %v1072 = vadd.f32 %v1064, %v984
        %v1073 = vadd.f32 %v1065, %v985
        %v1074 = vadd.f32 %v1066, %v986
        %v1075 = vadd.f32 %v1067, %v1003
        %v1076 = vadd.f32 %v1068, %v1004
        %v1077 = vadd.f32 %v1069, %v1005
        %v1078 = vadd.f32 %v1070, %v1006
        %v1079 = vadd.f32 %v1071, %v1007
        %v1080 = vadd.f32 %v1072, %v1008
        %v1081 = vadd.f32 %v1073, %v1009
        %v1082 = vadd.f32 %v1074, %v1010
        %v1083 = vadd.f32 %v1075, %v1027
        %v1084 = vadd.f32 %v1076, %v1028
        %v1085 = vadd.f32 %v1077, %v1029
        %v1086 = vadd.f32 %v1078, %v1030
        %v1087 = vadd.f32 %v1079, %v1031
        %v1088 = vadd.f32 %v1080, %v1032
        %v1089 = vadd.f32 %v1081, %v1033
        %v1090 = vadd.f32 %v1082, %v1034
        %v1091 = vsub.f32 %v859, %v883
        %v1092 = vsub.f32 %v860, %v884
        %v1093 = vsub.f32 %v861, %v885
        %v1094 = vsub.f32 %v862, %v886
        %v1095 = vsub.f32 %v863, %v887
        %v1096 = vsub.f32 %v864, %v888
        %v1097 = vsub.f32 %v865, %v889
        %v1098 = vsub.f32 %v866, %v890
        %v1099 = vand.u32 2147483647, %v1091
        %v1100 = vand.u32 2147483647, %v1092
        %v1101 = vand.u32 2147483647, %v1093
        %v1102 = vand.u32 2147483647, %v1094
        %v1103 = vand.u32 2147483647, %v1095
        %v1104 = vand.u32 2147483647, %v1096
        %v1105 = vand.u32 2147483647, %v1097
        %v1106 = vand.u32 2147483647, %v1098
        %v1107 = vadd.f32 %v1099, 0.0
        %v1108 = vadd.f32 %v1100, 0.0
        %v1109 = vadd.f32 %v1101, 0.0
        %v1110 = vadd.f32 %v1102, 0.0
        %v1111 = vadd.f32 %v1103, 0.0
        %v1112 = vadd.f32 %v1104, 0.0
        %v1113 = vadd.f32 %v1105, 0.0
        %v1114 = vadd.f32 %v1106, 0.0
        %v1115 = vsub.f32 %v883, %v907
        %v1116 = vsub.f32 %v884, %v908
        %v1117 = vsub.f32 %v885, %v909
        %v1118 = vsub.f32 %v886, %v910
        %v1119 = vsub.f32 %v887, %v911
        %v1120 = vsub.f32 %v888, %v912
        %v1121 = vsub.f32 %v889, %v913
        %v1122 = vsub.f32 %v890, %v914
        %v1123 = vand.u32 2147483647, %v1115
        %v1124 = vand.u32 2147483647, %v1116
        %v1125 = vand.u32 2147483647, %v1117
        %v1126 = vand.u32 2147483647, %v1118
        %v1127 = vand.u32 2147483647, %v1119
        %v1128 = vand.u32 2147483647, %v1120
        %v1129 = vand.u32 2147483647, %v1121
        %v1130 = vand.u32 2147483647, %v1122
        %v1131 = vadd.f32 %v1107, %v1123
        %v1132 = vadd.f32 %v1108, %v1124
        %v1133 = vadd.f32 %v1109, %v1125
        %v1134 = vadd.f32 %v1110, %v1126
        %v1135 = vadd.f32 %v1111, %v1127
        %v1136 = vadd.f32 %v1112, %v1128
        %v1137 = vadd.f32 %v1113, %v1129
        %v1138 = vadd.f32 %v1114, %v1130
        %v1139 = vsub.f32 %v907, %v931
        %v1140 = vsub.f32 %v908, %v932
        %v1141 = vsub.f32 %v909, %v933
        %v1142 = vsub.f32 %v910, %v934
        %v1143 = vsub.f32 %v911, %v935
        %v1144 = vsub.f32 %v912, %v936
        %v1145 = vsub.f32 %v913, %v937
        %v1146 = vsub.f32 %v914, %v938
        %v1147 = vand.u32 2147483647, %v1139
        %v1148 = vand.u32 2147483647, %v1140
        %v1149 = vand.u32 2147483647, %v1141
        %v1150 = vand.u32 2147483647, %v1142
        %v1151 = vand.u32 2147483647, %v1143
        %v1152 = vand.u32 2147483647, %v1144
        %v1153 = vand.u32 2147483647, %v1145
        %v1154 = vand.u32 2147483647, %v1146
        %v1155 = vadd.f32 %v1131, %v1147
        %v1156 = vadd.f32 %v1132, %v1148
        %v1157 = vadd.f32 %v1133, %v1149
        %v1158 = vadd.f32 %v1134, %v1150
        %v1159 = vadd.f32 %v1135, %v1151
        %v1160 = vadd.f32 %v1136, %v1152
        %v1161 = vadd.f32 %v1137, %v1153
        %v1162 = vadd.f32 %v1138, %v1154
        %v1163 = vsub.f32 %v931, %v955
        %v1164 = vsub.f32 %v932, %v956
        %v1165 = vsub.f32 %v933, %v957
        %v1166 = vsub.f32 %v934, %v958
        %v1167 = vsub.f32 %v935, %v959
        %v1168 = vsub.f32 %v936, %v960
        %v1169 = vsub.f32 %v937, %v961
        %v1170 = vsub.f32 %v938, %v962
        %v1171 = vand.u32 2147483647, %v1163
        %v1172 = vand.u32 2147483647, %v1164
        %v1173 = vand.u32 2147483647, %v1165
        %v1174 = vand.u32 2147483647, %v1166
        %v1175 = vand.u32 2147483647, %v1167
        %v1176 = vand.u32 2147483647, %v1168
        %v1177 = vand.u32 2147483647, %v1169
        %v1178 = vand.u32 2147483647, %v1170
        %v1179 = vadd.f32 %v1155, %v1171
        %v1180 = vadd.f32 %v1156, %v1172
        %v1181 = vadd.f32 %v1157, %v1173
        %v1182 = vadd.f32 %v1158, %v1174
        %v1183 = vadd.f32 %v1159, %v1175
        %v1184 = vadd.f32 %v1160, %v1176
        %v1185 = vadd.f32 %v1161, %v1177
        %v1186 = vadd.f32 %v1162, %v1178
        %v1187 = vsub.f32 %v955, %v979
        %v1188 = vsub.f32 %v956, %v980
        %v1189 = vsub.f32 %v957, %v981
        %v1190 = vsub.f32 %v958, %v982
        %v1191 = vsub.f32 %v959, %v983
        %v1192 = vsub.f32 %v960, %v984
        %v1193 = vsub.f32 %v961, %v985
        %v1194 = vsub.f32 %v962, %v986
        %v1195 = vand.u32 2147483647, %v1187
        %v1196 = vand.u32 2147483647, %v1188
        %v1197 = vand.u32 2147483647, %v1189
        %v1198 = vand.u32 2147483647, %v1190
        %v1199 = vand.u32 2147483647, %v1191
        %v1200 = vand.u32 2147483647, %v1192
        %v1201 = vand.u32 2147483647, %v1193
        %v1202 = vand.u32 2147483647, %v1194
        %v1203 = vadd.f32 %v1179, %v1195
        %v1204 = vadd.f32 %v1180, %v1196
        %v1205 = vadd.f32 %v1181, %v1197
        %v1206 = vadd.f32 %v1182, %v1198
        %v1207 = vadd.f32 %v1183, %v1199
        %v1208 = vadd.f32 %v1184, %v1200
        %v1209 = vadd.f32 %v1185, %v1201
        %v1210 = vadd.f32 %v1186, %v1202
        %v1211 = vsub.f32 %v979, %v1003
        %v1212 = vsub.f32 %v980, %v1004
        %v1213 = vsub.f32 %v981, %v1005
        %v1214 = vsub.f32 %v982, %v1006
        %v1215 = vsub.f32 %v983, %v1007
        %v1216 = vsub.f32 %v984, %v1008
        %v1217 = vsub.f32 %v985, %v1009
        %v1218 = vsub.f32 %v986, %v1010
        %v1219 = vand.u32 2147483647, %v1211
        %v1220 = vand.u32 2147483647, %v1212
        %v1221 = vand.u32 2147483647, %v1213
        %v1222 = vand.u32 2147483647, %v1214
        %v1223 = vand.u32 2147483647, %v1215
        %v1224 = vand.u32 2147483647, %v1216
        %v1225 = vand.u32 2147483647, %v1217
        %v1226 = vand.u32 2147483647, %v1218
        %v1227 = vadd.f32 %v1203, %v1219
        %v1228 = vadd.f32 %v1204, %v1220
        %v1229 = vadd.f32 %v1205, %v1221
        %v1230 = vadd.f32 %v1206, %v1222
        %v1231 = vadd.f32 %v1207, %v1223
        %v1232 = vadd.f32 %v1208, %v1224
        %v1233 = vadd.f32 %v1209, %v1225
        %v1234 = vadd.f32 %v1210, %v1226
        %v1235 = vsub.f32 %v1003, %v1027
        %v1236 = vsub.f32 %v1004, %v1028
        %v1237 = vsub.f32 %v1005, %v1029
        %v1238 = vsub.f32 %v1006, %v1030
        %v1239 = vsub.f32 %v1007, %v1031
        %v1240 = vsub.f32 %v1008, %v1032
        %v1241 = vsub.f32 %v1009, %v1033
        %v1242 = vsub.f32 %v1010, %v1034
        %v1243 = vand.u32 2147483647, %v1235
        %v1244 = vand.u32 2147483647, %v1236
        %v1245 = vand.u32 2147483647, %v1237
        %v1246 = vand.u32 2147483647, %v1238
        %v1247 = vand.u32 2147483647, %v1239
        %v1248 = vand.u32 2147483647, %v1240
        %v1249 = vand.u32 2147483647, %v1241
        %v1250 = vand.u32 2147483647, %v1242
        %v1251 = vadd.f32 %v1227, %v1243
        %v1252 = vadd.f32 %v1228, %v1244
        %v1253 = vadd.f32 %v1229, %v1245
        %v1254 = vadd.f32 %v1230, %v1246
        %v1255 = vadd.f32 %v1231, %v1247
        %v1256 = vadd.f32 %v1232, %v1248
        %v1257 = vadd.f32 %v1233, %v1249
        %v1258 = vadd.f32 %v1234, %v1250
        %v1259 = vsub.f32 %v1027, %v859
        %v1260 = vsub.f32 %v1028, %v860
        %v1261 = vsub.f32 %v1029, %v861
        %v1262 = vsub.f32 %v1030, %v862
        %v1263 = vsub.f32 %v1031, %v863
        %v1264 = vsub.f32 %v1032, %v864
        %v1265 = vsub.f32 %v1033, %v865
        %v1266 = vsub.f32 %v1034, %v866
        %v1267 = vand.u32 2147483647, %v1259
        %v1268 = vand.u32 2147483647, %v1260
        %v1269 = vand.u32 2147483647, %v1261
        %v1270 = vand.u32 2147483647, %v1262
        %v1271 = vand.u32 2147483647, %v1263
        %v1272 = vand.u32 2147483647, %v1264
        %v1273 = vand.u32 2147483647, %v1265
        %v1274 = vand.u32 2147483647, %v1266
        %v1275 = vadd.f32 %v1251, %v1267
        %v1276 = vadd.f32 %v1252, %v1268
        %v1277 = vadd.f32 %v1253, %v1269
        %v1278 = vadd.f32 %v1254, %v1270
        %v1279 = vadd.f32 %v1255, %v1271
        %v1280 = vadd.f32 %v1256, %v1272
        %v1281 = vadd.f32 %v1257, %v1273
        %v1282 = vadd.f32 %v1258, %v1274
        %vm1283 = vcmp.le.f32.partialorder %v1275, 2.0
        %vm1284 = vcmp.le.f32.partialorder %v1276, 2.0
        %vm1285 = vcmp.le.f32.partialorder %v1277, 2.0
        %vm1286 = vcmp.le.f32.partialorder %v1278, 2.0
        %vm1287 = vcmp.le.f32.partialorder %v1279, 2.0
        %vm1288 = vcmp.le.f32.partialorder %v1280, 2.0
        %vm1289 = vcmp.le.f32.partialorder %v1281, 2.0
        %vm1290 = vcmp.le.f32.partialorder %v1282, 2.0
        %v1291 = vsel %vm1283, %v1083, 9.0
        %v1292 = vsel %vm1284, %v1084, 9.0
        %v1293 = vsel %vm1285, %v1085, 9.0
        %v1294 = vsel %vm1286, %v1086, 9.0
        %v1295 = vsel %vm1287, %v1087, 9.0
        %v1296 = vsel %vm1288, %v1088, 9.0
        %v1297 = vsel %vm1289, %v1089, 9.0
        %v1298 = vsel %vm1290, %v1090, 9.0
        %v1299 = vmax.f32 %v1291, %v1295
        %v1300 = vmax.f32 %v1292, %v1296
        %v1301 = vmax.f32 %v1293, %v1297
        %v1302 = vmax.f32 %v1294, %v1298
        %v1303 = vmax.f32 %v1299, %v1300
        %v1304 = vmax.f32 %v1301, %v1302
        %v1305 = vmax.f32 %v1303, %v1304
        %1306 = vmax.xlane.f32.xlu0 %v1305
        %v1307 = vpop.xlane.xlu0 %1306
        %v1308 = vrot.slane %v1307, 4
        %v1309 = vmax.f32 %v1307, %v1308
        %v1310 = vrot.slane %v1309, 2
        %v1311 = vmax.f32 %v1309, %v1310
        %v1312 = vrot.slane %v1311, 1
        %v1313 = vmax.f32 %v1311, %v1312
        %s1314 = vtos %v1313
        %v1315 = vstv %s1314
        %v1316 = vmax.f32 %v1315, 1e-06
        %v1317 = vrcp.pop %v1316
        %v1318 = vmul.f32 %v1291, %v1317
        %v1319 = vmul.f32 %v1292, %v1317
        %v1320 = vmul.f32 %v1293, %v1317
        %v1321 = vmul.f32 %v1294, %v1317
        %v1322 = vmul.f32 %v1295, %v1317
        %v1323 = vmul.f32 %v1296, %v1317
        %v1324 = vmul.f32 %v1297, %v1317
        %v1325 = vmul.f32 %v1298, %v1317
        %s1326 = sld [smem:[#allocation7]]
        %s1327 = sld [smem:[#allocation7 + $0x1]]
        %s1328 = sld [smem:[#allocation7 + $0x2]]
        %s1329 = sld [smem:[#allocation7 + $0x3]]
        %s1330 = sld [smem:[#allocation7 + $0x4]]
        %s1331 = sld [smem:[#allocation7 + $0x5]]
        %s1332 = sld [smem:[#allocation7 + $0x6]]
        %s1333 = sld [smem:[#allocation7 + $0x7]]
        %s1334 = sld [smem:[#allocation7 + $0x8]]
        %s1335 = sld [smem:[#allocation7 + $0x9]]
        %s1336 = sld [smem:[#allocation7 + $0xa]]
        %s1337 = sld [smem:[#allocation7 + $0xb]]
        %s1338 = sld [smem:[#allocation7 + $0xc]]
        %s1339 = sld [smem:[#allocation7 + $0xd]]
        %s1340 = sld [smem:[#allocation7 + $0xe]]
        %s1341 = sld [smem:[#allocation7 + $0xf]]
        %s1342 = sld [smem:[#allocation7 + $0x10]]
        %s1343 = sld [smem:[#allocation7 + $0x11]]
        %s1344 = sld [smem:[#allocation7 + $0x12]]
        %s1345 = sld [smem:[#allocation7 + $0x13]]
        %s1346 = sld [smem:[#allocation7 + $0x14]]
        %s1347 = sld [smem:[#allocation7 + $0x15]]
        %s1348 = sld [smem:[#allocation7 + $0x16]]
        %s1349 = sld [smem:[#allocation7 + $0x17]]
        %s1350 = sld [smem:[#allocation7 + $0x18]]
        %s1351 = sld [smem:[#allocation7 + $0x19]]
        %s1352 = sld [smem:[#allocation7 + $0x1a]]
        %s1353 = sld [smem:[#allocation7 + $0x1b]]
        %s1354 = sld [smem:[#allocation7 + $0x1c]]
        %s1355 = sld [smem:[#allocation7 + $0x1d]]
        %s1356 = sld [smem:[#allocation7 + $0x1e]]
        %s1357 = sld [smem:[#allocation7 + $0x1f]]
        %s1358 = sld [smem:[#allocation7 + $0x20]]
        %s1359 = sld [smem:[#allocation7 + $0x21]]
        %s1360 = sld [smem:[#allocation7 + $0x22]]
        %s1361 = sld [smem:[#allocation7 + $0x23]]
        %s1362 = sld [smem:[#allocation7 + $0x24]]
        %v1364 = vrot.slane %v435, 7
        %v1373 = vrot.slane %v428, 7
        %v1374 = vrot.slane %v429, 7
        %v1375 = vsel %vm523, %v1373, %v1374
        %v1376 = vrot.slane %v430, 7
        %v1377 = vsel %vm523, %v1374, %v1376
        %v1378 = vrot.slane %v431, 7
        %v1379 = vsel %vm523, %v1376, %v1378
        %v1380 = vrot.slane %v432, 7
        %v1381 = vsel %vm523, %v1378, %v1380
        %v1382 = vrot.slane %v433, 7
        %v1383 = vsel %vm523, %v1380, %v1382
        %v1384 = vrot.slane %v434, 7
        %v1385 = vsel %vm523, %v1382, %v1384
        %v1386 = vsel %vm523, %v1384, %v1364
        %v1395 = vsel %vm523, %v1364, %v1373
        %v1396 = vsel %vm555, %v1395, 0.0
        %v1397 = vsel %vm556, %v1375, 0.0
        %v1398 = vsel %vm557, %v1377, 0.0
        %v1399 = vsel %vm558, %v1379, 0.0
        %v1400 = vsel %vm559, %v1381, 0.0
        %v1401 = vsel %vm560, %v1383, 0.0
        %v1402 = vsel %vm561, %v1385, 0.0
        %v1403 = vsel %vm562, %v1386, 0.0
        %v1404 = vrot.slane %v428, 1
        %v1405 = vrot.slane %v429, 1
        %v1406 = vsel %vm579, %v1404, %v1405
        %v1407 = vrot.slane %v430, 1
        %v1408 = vsel %vm579, %v1405, %v1407
        %v1409 = vrot.slane %v431, 1
        %v1410 = vsel %vm579, %v1407, %v1409
        %v1411 = vrot.slane %v432, 1
        %v1412 = vsel %vm579, %v1409, %v1411
        %v1413 = vrot.slane %v433, 1
        %v1414 = vsel %vm579, %v1411, %v1413
        %v1415 = vrot.slane %v434, 1
        %v1416 = vsel %vm579, %v1413, %v1415
        %v1417 = vrot.slane %v435, 1
        %v1418 = vsel %vm579, %v1415, %v1417
        %v1428 = vsel %vm579, %v1417, %v1404
        %v1429 = vsel %vm613, %v1406, 0.0
        %v1430 = vsel %vm614, %v1408, 0.0
        %v1431 = vsel %vm615, %v1410, 0.0
        %v1432 = vsel %vm616, %v1412, 0.0
        %v1433 = vsel %vm617, %v1414, 0.0
        %v1434 = vsel %vm618, %v1416, 0.0
        %v1435 = vsel %vm619, %v1418, 0.0
        %v1436 = vsel %vm620, %v1428, 0.0
        %1445 = vrot.lane.b32.xlu0 %v1396, 1
        %v1446 = vpop.permute.xlu0 %1445
        %1447 = vrot.lane.b32.xlu0 %v1397, 1
        %v1448 = vpop.permute.xlu0 %1447
        %1449 = vrot.lane.b32.xlu0 %v1398, 1
        %v1450 = vpop.permute.xlu0 %1449
        %1451 = vrot.lane.b32.xlu0 %v1399, 1
        %v1452 = vpop.permute.xlu0 %1451
        %1453 = vrot.lane.b32.xlu0 %v1400, 1
        %v1454 = vpop.permute.xlu0 %1453
        %1455 = vrot.lane.b32.xlu0 %v1401, 1
        %v1456 = vpop.permute.xlu0 %1455
        %1457 = vrot.lane.b32.xlu0 %v1402, 1
        %v1458 = vpop.permute.xlu0 %1457
        %1459 = vrot.lane.b32.xlu0 %v1403, 1
        %v1460 = vpop.permute.xlu0 %1459
        %v1469 = vsel %vm663, %v1446, 0.0
        %v1470 = vsel %vm663, %v1448, 0.0
        %v1471 = vsel %vm663, %v1450, 0.0
        %v1472 = vsel %vm663, %v1452, 0.0
        %v1473 = vsel %vm663, %v1454, 0.0
        %v1474 = vsel %vm663, %v1456, 0.0
        %v1475 = vsel %vm663, %v1458, 0.0
        %v1476 = vsel %vm663, %v1460, 0.0
        %1477 = vrot.lane.b32.xlu0 %v1396, 127
        %v1478 = vpop.permute.xlu0 %1477
        %1479 = vrot.lane.b32.xlu0 %v1397, 127
        %v1480 = vpop.permute.xlu0 %1479
        %1481 = vrot.lane.b32.xlu0 %v1398, 127
        %v1482 = vpop.permute.xlu0 %1481
        %1483 = vrot.lane.b32.xlu0 %v1399, 127
        %v1484 = vpop.permute.xlu0 %1483
        %1485 = vrot.lane.b32.xlu0 %v1400, 127
        %v1486 = vpop.permute.xlu0 %1485
        %1487 = vrot.lane.b32.xlu0 %v1401, 127
        %v1488 = vpop.permute.xlu0 %1487
        %1489 = vrot.lane.b32.xlu0 %v1402, 127
        %v1490 = vpop.permute.xlu0 %1489
        %1491 = vrot.lane.b32.xlu0 %v1403, 127
        %v1492 = vpop.permute.xlu0 %1491
        %v1501 = vsel %vm698, %v1478, 0.0
        %v1502 = vsel %vm698, %v1480, 0.0
        %v1503 = vsel %vm698, %v1482, 0.0
        %v1504 = vsel %vm698, %v1484, 0.0
        %v1505 = vsel %vm698, %v1486, 0.0
        %v1506 = vsel %vm698, %v1488, 0.0
        %v1507 = vsel %vm698, %v1490, 0.0
        %v1508 = vsel %vm698, %v1492, 0.0
        %1509 = vrot.lane.b32.xlu0 %v428, 1
        %v1510 = vpop.permute.xlu0 %1509
        %1511 = vrot.lane.b32.xlu0 %v429, 1
        %v1512 = vpop.permute.xlu0 %1511
        %1513 = vrot.lane.b32.xlu0 %v430, 1
        %v1514 = vpop.permute.xlu0 %1513
        %1515 = vrot.lane.b32.xlu0 %v431, 1
        %v1516 = vpop.permute.xlu0 %1515
        %1517 = vrot.lane.b32.xlu0 %v432, 1
        %v1518 = vpop.permute.xlu0 %1517
        %1519 = vrot.lane.b32.xlu0 %v433, 1
        %v1520 = vpop.permute.xlu0 %1519
        %1521 = vrot.lane.b32.xlu0 %v434, 1
        %v1522 = vpop.permute.xlu0 %1521
        %1523 = vrot.lane.b32.xlu0 %v435, 1
        %v1524 = vpop.permute.xlu0 %1523
        %v1533 = vsel %vm663, %v1510, 0.0
        %v1534 = vsel %vm663, %v1512, 0.0
        %v1535 = vsel %vm663, %v1514, 0.0
        %v1536 = vsel %vm663, %v1516, 0.0
        %v1537 = vsel %vm663, %v1518, 0.0
        %v1538 = vsel %vm663, %v1520, 0.0
        %v1539 = vsel %vm663, %v1522, 0.0
        %v1540 = vsel %vm663, %v1524, 0.0
        %1541 = vrot.lane.b32.xlu0 %v428, 127
        %v1542 = vpop.permute.xlu0 %1541
        %1543 = vrot.lane.b32.xlu0 %v429, 127
        %v1544 = vpop.permute.xlu0 %1543
        %1545 = vrot.lane.b32.xlu0 %v430, 127
        %v1546 = vpop.permute.xlu0 %1545
        %1547 = vrot.lane.b32.xlu0 %v431, 127
        %v1548 = vpop.permute.xlu0 %1547
        %1549 = vrot.lane.b32.xlu0 %v432, 127
        %v1550 = vpop.permute.xlu0 %1549
        %1551 = vrot.lane.b32.xlu0 %v433, 127
        %v1552 = vpop.permute.xlu0 %1551
        %1553 = vrot.lane.b32.xlu0 %v434, 127
        %v1554 = vpop.permute.xlu0 %1553
        %1555 = vrot.lane.b32.xlu0 %v435, 127
        %v1556 = vpop.permute.xlu0 %1555
        %v1565 = vsel %vm698, %v1542, 0.0
        %v1566 = vsel %vm698, %v1544, 0.0
        %v1567 = vsel %vm698, %v1546, 0.0
        %v1568 = vsel %vm698, %v1548, 0.0
        %v1569 = vsel %vm698, %v1550, 0.0
        %v1570 = vsel %vm698, %v1552, 0.0
        %v1571 = vsel %vm698, %v1554, 0.0
        %v1572 = vsel %vm698, %v1556, 0.0
        %1581 = vrot.lane.b32.xlu0 %v1429, 1
        %v1582 = vpop.permute.xlu0 %1581
        %1583 = vrot.lane.b32.xlu0 %v1430, 1
        %v1584 = vpop.permute.xlu0 %1583
        %1585 = vrot.lane.b32.xlu0 %v1431, 1
        %v1586 = vpop.permute.xlu0 %1585
        %1587 = vrot.lane.b32.xlu0 %v1432, 1
        %v1588 = vpop.permute.xlu0 %1587
        %1589 = vrot.lane.b32.xlu0 %v1433, 1
        %v1590 = vpop.permute.xlu0 %1589
        %1591 = vrot.lane.b32.xlu0 %v1434, 1
        %v1592 = vpop.permute.xlu0 %1591
        %1593 = vrot.lane.b32.xlu0 %v1435, 1
        %v1594 = vpop.permute.xlu0 %1593
        %1595 = vrot.lane.b32.xlu0 %v1436, 1
        %v1596 = vpop.permute.xlu0 %1595
        %v1605 = vsel %vm663, %v1582, 0.0
        %v1606 = vsel %vm663, %v1584, 0.0
        %v1607 = vsel %vm663, %v1586, 0.0
        %v1608 = vsel %vm663, %v1588, 0.0
        %v1609 = vsel %vm663, %v1590, 0.0
        %v1610 = vsel %vm663, %v1592, 0.0
        %v1611 = vsel %vm663, %v1594, 0.0
        %v1612 = vsel %vm663, %v1596, 0.0
        %1613 = vrot.lane.b32.xlu0 %v1429, 127
        %v1614 = vpop.permute.xlu0 %1613
        %1615 = vrot.lane.b32.xlu0 %v1430, 127
        %v1616 = vpop.permute.xlu0 %1615
        %1617 = vrot.lane.b32.xlu0 %v1431, 127
        %v1618 = vpop.permute.xlu0 %1617
        %1619 = vrot.lane.b32.xlu0 %v1432, 127
        %v1620 = vpop.permute.xlu0 %1619
        %1621 = vrot.lane.b32.xlu0 %v1433, 127
        %v1622 = vpop.permute.xlu0 %1621
        %1623 = vrot.lane.b32.xlu0 %v1434, 127
        %v1624 = vpop.permute.xlu0 %1623
        %1625 = vrot.lane.b32.xlu0 %v1435, 127
        %v1626 = vpop.permute.xlu0 %1625
        %1627 = vrot.lane.b32.xlu0 %v1436, 127
        %v1628 = vpop.permute.xlu0 %1627
        %v1637 = vsel %vm698, %v1614, 0.0
        %v1638 = vsel %vm698, %v1616, 0.0
        %v1639 = vsel %vm698, %v1618, 0.0
        %v1640 = vsel %vm698, %v1620, 0.0
        %v1641 = vsel %vm698, %v1622, 0.0
        %v1642 = vsel %vm698, %v1624, 0.0
        %v1643 = vsel %vm698, %v1626, 0.0
        %v1644 = vsel %vm698, %v1628, 0.0
        %v1645 = vstv %s1326
        %v1646 = vmul.f32 %v1469, %v1645
        %v1647 = vmul.f32 %v1470, %v1645
        %v1648 = vmul.f32 %v1471, %v1645
        %v1649 = vmul.f32 %v1472, %v1645
        %v1650 = vmul.f32 %v1473, %v1645
        %v1651 = vmul.f32 %v1474, %v1645
        %v1652 = vmul.f32 %v1475, %v1645
        %v1653 = vmul.f32 %v1476, %v1645
        %v1654 = vadd.f32 %v1646, 0.0
        %v1655 = vadd.f32 %v1647, 0.0
        %v1656 = vadd.f32 %v1648, 0.0
        %v1657 = vadd.f32 %v1649, 0.0
        %v1658 = vadd.f32 %v1650, 0.0
        %v1659 = vadd.f32 %v1651, 0.0
        %v1660 = vadd.f32 %v1652, 0.0
        %v1661 = vadd.f32 %v1653, 0.0
        %v1662 = vstv %s1327
        %v1663 = vmul.f32 %v1396, %v1662
        %v1664 = vmul.f32 %v1397, %v1662
        %v1665 = vmul.f32 %v1398, %v1662
        %v1666 = vmul.f32 %v1399, %v1662
        %v1667 = vmul.f32 %v1400, %v1662
        %v1668 = vmul.f32 %v1401, %v1662
        %v1669 = vmul.f32 %v1402, %v1662
        %v1670 = vmul.f32 %v1403, %v1662
        %v1671 = vadd.f32 %v1654, %v1663
        %v1672 = vadd.f32 %v1655, %v1664
        %v1673 = vadd.f32 %v1656, %v1665
        %v1674 = vadd.f32 %v1657, %v1666
        %v1675 = vadd.f32 %v1658, %v1667
        %v1676 = vadd.f32 %v1659, %v1668
        %v1677 = vadd.f32 %v1660, %v1669
        %v1678 = vadd.f32 %v1661, %v1670
        %v1679 = vstv %s1328
        %v1680 = vmul.f32 %v1501, %v1679
        %v1681 = vmul.f32 %v1502, %v1679
        %v1682 = vmul.f32 %v1503, %v1679
        %v1683 = vmul.f32 %v1504, %v1679
        %v1684 = vmul.f32 %v1505, %v1679
        %v1685 = vmul.f32 %v1506, %v1679
        %v1686 = vmul.f32 %v1507, %v1679
        %v1687 = vmul.f32 %v1508, %v1679
        %v1688 = vadd.f32 %v1671, %v1680
        %v1689 = vadd.f32 %v1672, %v1681
        %v1690 = vadd.f32 %v1673, %v1682
        %v1691 = vadd.f32 %v1674, %v1683
        %v1692 = vadd.f32 %v1675, %v1684
        %v1693 = vadd.f32 %v1676, %v1685
        %v1694 = vadd.f32 %v1677, %v1686
        %v1695 = vadd.f32 %v1678, %v1687
        %v1696 = vstv %s1329
        %v1697 = vmul.f32 %v1533, %v1696
        %v1698 = vmul.f32 %v1534, %v1696
        %v1699 = vmul.f32 %v1535, %v1696
        %v1700 = vmul.f32 %v1536, %v1696
        %v1701 = vmul.f32 %v1537, %v1696
        %v1702 = vmul.f32 %v1538, %v1696
        %v1703 = vmul.f32 %v1539, %v1696
        %v1704 = vmul.f32 %v1540, %v1696
        %v1705 = vadd.f32 %v1688, %v1697
        %v1706 = vadd.f32 %v1689, %v1698
        %v1707 = vadd.f32 %v1690, %v1699
        %v1708 = vadd.f32 %v1691, %v1700
        %v1709 = vadd.f32 %v1692, %v1701
        %v1710 = vadd.f32 %v1693, %v1702
        %v1711 = vadd.f32 %v1694, %v1703
        %v1712 = vadd.f32 %v1695, %v1704
        %v1713 = vstv %s1330
        %v1714 = vmul.f32 %v428, %v1713
        %v1715 = vmul.f32 %v429, %v1713
        %v1716 = vmul.f32 %v430, %v1713
        %v1717 = vmul.f32 %v431, %v1713
        %v1718 = vmul.f32 %v432, %v1713
        %v1719 = vmul.f32 %v433, %v1713
        %v1720 = vmul.f32 %v434, %v1713
        %v1721 = vmul.f32 %v435, %v1713
        %v1722 = vadd.f32 %v1705, %v1714
        %v1723 = vadd.f32 %v1706, %v1715
        %v1724 = vadd.f32 %v1707, %v1716
        %v1725 = vadd.f32 %v1708, %v1717
        %v1726 = vadd.f32 %v1709, %v1718
        %v1727 = vadd.f32 %v1710, %v1719
        %v1728 = vadd.f32 %v1711, %v1720
        %v1729 = vadd.f32 %v1712, %v1721
        %v1730 = vstv %s1331
        %v1731 = vmul.f32 %v1565, %v1730
        %v1732 = vmul.f32 %v1566, %v1730
        %v1733 = vmul.f32 %v1567, %v1730
        %v1734 = vmul.f32 %v1568, %v1730
        %v1735 = vmul.f32 %v1569, %v1730
        %v1736 = vmul.f32 %v1570, %v1730
        %v1737 = vmul.f32 %v1571, %v1730
        %v1738 = vmul.f32 %v1572, %v1730
        %v1739 = vadd.f32 %v1722, %v1731
        %v1740 = vadd.f32 %v1723, %v1732
        %v1741 = vadd.f32 %v1724, %v1733
        %v1742 = vadd.f32 %v1725, %v1734
        %v1743 = vadd.f32 %v1726, %v1735
        %v1744 = vadd.f32 %v1727, %v1736
        %v1745 = vadd.f32 %v1728, %v1737
        %v1746 = vadd.f32 %v1729, %v1738
        %v1747 = vstv %s1332
        %v1748 = vmul.f32 %v1605, %v1747
        %v1749 = vmul.f32 %v1606, %v1747
        %v1750 = vmul.f32 %v1607, %v1747
        %v1751 = vmul.f32 %v1608, %v1747
        %v1752 = vmul.f32 %v1609, %v1747
        %v1753 = vmul.f32 %v1610, %v1747
        %v1754 = vmul.f32 %v1611, %v1747
        %v1755 = vmul.f32 %v1612, %v1747
        %v1756 = vadd.f32 %v1739, %v1748
        %v1757 = vadd.f32 %v1740, %v1749
        %v1758 = vadd.f32 %v1741, %v1750
        %v1759 = vadd.f32 %v1742, %v1751
        %v1760 = vadd.f32 %v1743, %v1752
        %v1761 = vadd.f32 %v1744, %v1753
        %v1762 = vadd.f32 %v1745, %v1754
        %v1763 = vadd.f32 %v1746, %v1755
        %v1764 = vstv %s1333
        %v1765 = vmul.f32 %v1429, %v1764
        %v1766 = vmul.f32 %v1430, %v1764
        %v1767 = vmul.f32 %v1431, %v1764
        %v1768 = vmul.f32 %v1432, %v1764
        %v1769 = vmul.f32 %v1433, %v1764
        %v1770 = vmul.f32 %v1434, %v1764
        %v1771 = vmul.f32 %v1435, %v1764
        %v1772 = vmul.f32 %v1436, %v1764
        %v1773 = vadd.f32 %v1756, %v1765
        %v1774 = vadd.f32 %v1757, %v1766
        %v1775 = vadd.f32 %v1758, %v1767
        %v1776 = vadd.f32 %v1759, %v1768
        %v1777 = vadd.f32 %v1760, %v1769
        %v1778 = vadd.f32 %v1761, %v1770
        %v1779 = vadd.f32 %v1762, %v1771
        %v1780 = vadd.f32 %v1763, %v1772
        %v1781 = vstv %s1334
        %v1782 = vmul.f32 %v1637, %v1781
        %v1783 = vmul.f32 %v1638, %v1781
        %v1784 = vmul.f32 %v1639, %v1781
        %v1785 = vmul.f32 %v1640, %v1781
        %v1786 = vmul.f32 %v1641, %v1781
        %v1787 = vmul.f32 %v1642, %v1781
        %v1788 = vmul.f32 %v1643, %v1781
        %v1789 = vmul.f32 %v1644, %v1781
        %v1790 = vadd.f32 %v1773, %v1782
        %v1791 = vadd.f32 %v1774, %v1783
        %v1792 = vadd.f32 %v1775, %v1784
        %v1793 = vadd.f32 %v1776, %v1785
        %v1794 = vadd.f32 %v1777, %v1786
        %v1795 = vadd.f32 %v1778, %v1787
        %v1796 = vadd.f32 %v1779, %v1788
        %v1797 = vadd.f32 %v1780, %v1789
        %v1799 = vrot.slane %v444, 7
        %v1808 = vrot.slane %v437, 7
        %v1809 = vrot.slane %v438, 7
        %v1810 = vsel %vm523, %v1808, %v1809
        %v1811 = vrot.slane %v439, 7
        %v1812 = vsel %vm523, %v1809, %v1811
        %v1813 = vrot.slane %v440, 7
        %v1814 = vsel %vm523, %v1811, %v1813
        %v1815 = vrot.slane %v441, 7
        %v1816 = vsel %vm523, %v1813, %v1815
        %v1817 = vrot.slane %v442, 7
        %v1818 = vsel %vm523, %v1815, %v1817
        %v1819 = vrot.slane %v443, 7
        %v1820 = vsel %vm523, %v1817, %v1819
        %v1821 = vsel %vm523, %v1819, %v1799
        %v1830 = vsel %vm523, %v1799, %v1808
        %v1831 = vsel %vm555, %v1830, 0.0
        %v1832 = vsel %vm556, %v1810, 0.0
        %v1833 = vsel %vm557, %v1812, 0.0
        %v1834 = vsel %vm558, %v1814, 0.0
        %v1835 = vsel %vm559, %v1816, 0.0
        %v1836 = vsel %vm560, %v1818, 0.0
        %v1837 = vsel %vm561, %v1820, 0.0
        %v1838 = vsel %vm562, %v1821, 0.0
        %v1839 = vrot.slane %v437, 1
        %v1840 = vrot.slane %v438, 1
        %v1841 = vsel %vm579, %v1839, %v1840
        %v1842 = vrot.slane %v439, 1
        %v1843 = vsel %vm579, %v1840, %v1842
        %v1844 = vrot.slane %v440, 1
        %v1845 = vsel %vm579, %v1842, %v1844
        %v1846 = vrot.slane %v441, 1
        %v1847 = vsel %vm579, %v1844, %v1846
        %v1848 = vrot.slane %v442, 1
        %v1849 = vsel %vm579, %v1846, %v1848
        %v1850 = vrot.slane %v443, 1
        %v1851 = vsel %vm579, %v1848, %v1850
        %v1852 = vrot.slane %v444, 1
        %v1853 = vsel %vm579, %v1850, %v1852
        %v1863 = vsel %vm579, %v1852, %v1839
        %v1864 = vsel %vm613, %v1841, 0.0
        %v1865 = vsel %vm614, %v1843, 0.0
        %v1866 = vsel %vm615, %v1845, 0.0
        %v1867 = vsel %vm616, %v1847, 0.0
        %v1868 = vsel %vm617, %v1849, 0.0
        %v1869 = vsel %vm618, %v1851, 0.0
        %v1870 = vsel %vm619, %v1853, 0.0
        %v1871 = vsel %vm620, %v1863, 0.0
        %1880 = vrot.lane.b32.xlu0 %v1831, 1
        %v1881 = vpop.permute.xlu0 %1880
        %1882 = vrot.lane.b32.xlu0 %v1832, 1
        %v1883 = vpop.permute.xlu0 %1882
        %1884 = vrot.lane.b32.xlu0 %v1833, 1
        %v1885 = vpop.permute.xlu0 %1884
        %1886 = vrot.lane.b32.xlu0 %v1834, 1
        %v1887 = vpop.permute.xlu0 %1886
        %1888 = vrot.lane.b32.xlu0 %v1835, 1
        %v1889 = vpop.permute.xlu0 %1888
        %1890 = vrot.lane.b32.xlu0 %v1836, 1
        %v1891 = vpop.permute.xlu0 %1890
        %1892 = vrot.lane.b32.xlu0 %v1837, 1
        %v1893 = vpop.permute.xlu0 %1892
        %1894 = vrot.lane.b32.xlu0 %v1838, 1
        %v1895 = vpop.permute.xlu0 %1894
        %v1904 = vsel %vm663, %v1881, 0.0
        %v1905 = vsel %vm663, %v1883, 0.0
        %v1906 = vsel %vm663, %v1885, 0.0
        %v1907 = vsel %vm663, %v1887, 0.0
        %v1908 = vsel %vm663, %v1889, 0.0
        %v1909 = vsel %vm663, %v1891, 0.0
        %v1910 = vsel %vm663, %v1893, 0.0
        %v1911 = vsel %vm663, %v1895, 0.0
        %1912 = vrot.lane.b32.xlu0 %v1831, 127
        %v1913 = vpop.permute.xlu0 %1912
        %1914 = vrot.lane.b32.xlu0 %v1832, 127
        %v1915 = vpop.permute.xlu0 %1914
        %1916 = vrot.lane.b32.xlu0 %v1833, 127
        %v1917 = vpop.permute.xlu0 %1916
        %1918 = vrot.lane.b32.xlu0 %v1834, 127
        %v1919 = vpop.permute.xlu0 %1918
        %1920 = vrot.lane.b32.xlu0 %v1835, 127
        %v1921 = vpop.permute.xlu0 %1920
        %1922 = vrot.lane.b32.xlu0 %v1836, 127
        %v1923 = vpop.permute.xlu0 %1922
        %1924 = vrot.lane.b32.xlu0 %v1837, 127
        %v1925 = vpop.permute.xlu0 %1924
        %1926 = vrot.lane.b32.xlu0 %v1838, 127
        %v1927 = vpop.permute.xlu0 %1926
        %v1936 = vsel %vm698, %v1913, 0.0
        %v1937 = vsel %vm698, %v1915, 0.0
        %v1938 = vsel %vm698, %v1917, 0.0
        %v1939 = vsel %vm698, %v1919, 0.0
        %v1940 = vsel %vm698, %v1921, 0.0
        %v1941 = vsel %vm698, %v1923, 0.0
        %v1942 = vsel %vm698, %v1925, 0.0
        %v1943 = vsel %vm698, %v1927, 0.0
        %1944 = vrot.lane.b32.xlu0 %v437, 1
        %v1945 = vpop.permute.xlu0 %1944
        %1946 = vrot.lane.b32.xlu0 %v438, 1
        %v1947 = vpop.permute.xlu0 %1946
        %1948 = vrot.lane.b32.xlu0 %v439, 1
        %v1949 = vpop.permute.xlu0 %1948
        %1950 = vrot.lane.b32.xlu0 %v440, 1
        %v1951 = vpop.permute.xlu0 %1950
        %1952 = vrot.lane.b32.xlu0 %v441, 1
        %v1953 = vpop.permute.xlu0 %1952
        %1954 = vrot.lane.b32.xlu0 %v442, 1
        %v1955 = vpop.permute.xlu0 %1954
        %1956 = vrot.lane.b32.xlu0 %v443, 1
        %v1957 = vpop.permute.xlu0 %1956
        %1958 = vrot.lane.b32.xlu0 %v444, 1
        %v1959 = vpop.permute.xlu0 %1958
        %v1968 = vsel %vm663, %v1945, 0.0
        %v1969 = vsel %vm663, %v1947, 0.0
        %v1970 = vsel %vm663, %v1949, 0.0
        %v1971 = vsel %vm663, %v1951, 0.0
        %v1972 = vsel %vm663, %v1953, 0.0
        %v1973 = vsel %vm663, %v1955, 0.0
        %v1974 = vsel %vm663, %v1957, 0.0
        %v1975 = vsel %vm663, %v1959, 0.0
        %1976 = vrot.lane.b32.xlu0 %v437, 127
        %v1977 = vpop.permute.xlu0 %1976
        %1978 = vrot.lane.b32.xlu0 %v438, 127
        %v1979 = vpop.permute.xlu0 %1978
        %1980 = vrot.lane.b32.xlu0 %v439, 127
        %v1981 = vpop.permute.xlu0 %1980
        %1982 = vrot.lane.b32.xlu0 %v440, 127
        %v1983 = vpop.permute.xlu0 %1982
        %1984 = vrot.lane.b32.xlu0 %v441, 127
        %v1985 = vpop.permute.xlu0 %1984
        %1986 = vrot.lane.b32.xlu0 %v442, 127
        %v1987 = vpop.permute.xlu0 %1986
        %1988 = vrot.lane.b32.xlu0 %v443, 127
        %v1989 = vpop.permute.xlu0 %1988
        %1990 = vrot.lane.b32.xlu0 %v444, 127
        %v1991 = vpop.permute.xlu0 %1990
        %v2000 = vsel %vm698, %v1977, 0.0
        %v2001 = vsel %vm698, %v1979, 0.0
        %v2002 = vsel %vm698, %v1981, 0.0
        %v2003 = vsel %vm698, %v1983, 0.0
        %v2004 = vsel %vm698, %v1985, 0.0
        %v2005 = vsel %vm698, %v1987, 0.0
        %v2006 = vsel %vm698, %v1989, 0.0
        %v2007 = vsel %vm698, %v1991, 0.0
        %2016 = vrot.lane.b32.xlu0 %v1864, 1
        %v2017 = vpop.permute.xlu0 %2016
        %2018 = vrot.lane.b32.xlu0 %v1865, 1
        %v2019 = vpop.permute.xlu0 %2018
        %2020 = vrot.lane.b32.xlu0 %v1866, 1
        %v2021 = vpop.permute.xlu0 %2020
        %2022 = vrot.lane.b32.xlu0 %v1867, 1
        %v2023 = vpop.permute.xlu0 %2022
        %2024 = vrot.lane.b32.xlu0 %v1868, 1
        %v2025 = vpop.permute.xlu0 %2024
        %2026 = vrot.lane.b32.xlu0 %v1869, 1
        %v2027 = vpop.permute.xlu0 %2026
        %2028 = vrot.lane.b32.xlu0 %v1870, 1
        %v2029 = vpop.permute.xlu0 %2028
        %2030 = vrot.lane.b32.xlu0 %v1871, 1
        %v2031 = vpop.permute.xlu0 %2030
        %v2040 = vsel %vm663, %v2017, 0.0
        %v2041 = vsel %vm663, %v2019, 0.0
        %v2042 = vsel %vm663, %v2021, 0.0
        %v2043 = vsel %vm663, %v2023, 0.0
        %v2044 = vsel %vm663, %v2025, 0.0
        %v2045 = vsel %vm663, %v2027, 0.0
        %v2046 = vsel %vm663, %v2029, 0.0
        %v2047 = vsel %vm663, %v2031, 0.0
        %2048 = vrot.lane.b32.xlu0 %v1864, 127
        %v2049 = vpop.permute.xlu0 %2048
        %2050 = vrot.lane.b32.xlu0 %v1865, 127
        %v2051 = vpop.permute.xlu0 %2050
        %2052 = vrot.lane.b32.xlu0 %v1866, 127
        %v2053 = vpop.permute.xlu0 %2052
        %2054 = vrot.lane.b32.xlu0 %v1867, 127
        %v2055 = vpop.permute.xlu0 %2054
        %2056 = vrot.lane.b32.xlu0 %v1868, 127
        %v2057 = vpop.permute.xlu0 %2056
        %2058 = vrot.lane.b32.xlu0 %v1869, 127
        %v2059 = vpop.permute.xlu0 %2058
        %2060 = vrot.lane.b32.xlu0 %v1870, 127
        %v2061 = vpop.permute.xlu0 %2060
        %2062 = vrot.lane.b32.xlu0 %v1871, 127
        %v2063 = vpop.permute.xlu0 %2062
        %v2072 = vsel %vm698, %v2049, 0.0
        %v2073 = vsel %vm698, %v2051, 0.0
        %v2074 = vsel %vm698, %v2053, 0.0
        %v2075 = vsel %vm698, %v2055, 0.0
        %v2076 = vsel %vm698, %v2057, 0.0
        %v2077 = vsel %vm698, %v2059, 0.0
        %v2078 = vsel %vm698, %v2061, 0.0
        %v2079 = vsel %vm698, %v2063, 0.0
        %v2080 = vstv %s1335
        %v2081 = vmul.f32 %v1904, %v2080
        %v2082 = vmul.f32 %v1905, %v2080
        %v2083 = vmul.f32 %v1906, %v2080
        %v2084 = vmul.f32 %v1907, %v2080
        %v2085 = vmul.f32 %v1908, %v2080
        %v2086 = vmul.f32 %v1909, %v2080
        %v2087 = vmul.f32 %v1910, %v2080
        %v2088 = vmul.f32 %v1911, %v2080
        %v2089 = vadd.f32 %v1790, %v2081
        %v2090 = vadd.f32 %v1791, %v2082
        %v2091 = vadd.f32 %v1792, %v2083
        %v2092 = vadd.f32 %v1793, %v2084
        %v2093 = vadd.f32 %v1794, %v2085
        %v2094 = vadd.f32 %v1795, %v2086
        %v2095 = vadd.f32 %v1796, %v2087
        %v2096 = vadd.f32 %v1797, %v2088
        %v2097 = vstv %s1336
        %v2098 = vmul.f32 %v1831, %v2097
        %v2099 = vmul.f32 %v1832, %v2097
        %v2100 = vmul.f32 %v1833, %v2097
        %v2101 = vmul.f32 %v1834, %v2097
        %v2102 = vmul.f32 %v1835, %v2097
        %v2103 = vmul.f32 %v1836, %v2097
        %v2104 = vmul.f32 %v1837, %v2097
        %v2105 = vmul.f32 %v1838, %v2097
        %v2106 = vadd.f32 %v2089, %v2098
        %v2107 = vadd.f32 %v2090, %v2099
        %v2108 = vadd.f32 %v2091, %v2100
        %v2109 = vadd.f32 %v2092, %v2101
        %v2110 = vadd.f32 %v2093, %v2102
        %v2111 = vadd.f32 %v2094, %v2103
        %v2112 = vadd.f32 %v2095, %v2104
        %v2113 = vadd.f32 %v2096, %v2105
        %v2114 = vstv %s1337
        %v2115 = vmul.f32 %v1936, %v2114
        %v2116 = vmul.f32 %v1937, %v2114
        %v2117 = vmul.f32 %v1938, %v2114
        %v2118 = vmul.f32 %v1939, %v2114
        %v2119 = vmul.f32 %v1940, %v2114
        %v2120 = vmul.f32 %v1941, %v2114
        %v2121 = vmul.f32 %v1942, %v2114
        %v2122 = vmul.f32 %v1943, %v2114
        %v2123 = vadd.f32 %v2106, %v2115
        %v2124 = vadd.f32 %v2107, %v2116
        %v2125 = vadd.f32 %v2108, %v2117
        %v2126 = vadd.f32 %v2109, %v2118
        %v2127 = vadd.f32 %v2110, %v2119
        %v2128 = vadd.f32 %v2111, %v2120
        %v2129 = vadd.f32 %v2112, %v2121
        %v2130 = vadd.f32 %v2113, %v2122
        %v2131 = vstv %s1338
        %v2132 = vmul.f32 %v1968, %v2131
        %v2133 = vmul.f32 %v1969, %v2131
        %v2134 = vmul.f32 %v1970, %v2131
        %v2135 = vmul.f32 %v1971, %v2131
        %v2136 = vmul.f32 %v1972, %v2131
        %v2137 = vmul.f32 %v1973, %v2131
        %v2138 = vmul.f32 %v1974, %v2131
        %v2139 = vmul.f32 %v1975, %v2131
        %v2140 = vadd.f32 %v2123, %v2132
        %v2141 = vadd.f32 %v2124, %v2133
        %v2142 = vadd.f32 %v2125, %v2134
        %v2143 = vadd.f32 %v2126, %v2135
        %v2144 = vadd.f32 %v2127, %v2136
        %v2145 = vadd.f32 %v2128, %v2137
        %v2146 = vadd.f32 %v2129, %v2138
        %v2147 = vadd.f32 %v2130, %v2139
        %v2148 = vstv %s1339
        %v2149 = vmul.f32 %v437, %v2148
        %v2150 = vmul.f32 %v438, %v2148
        %v2151 = vmul.f32 %v439, %v2148
        %v2152 = vmul.f32 %v440, %v2148
        %v2153 = vmul.f32 %v441, %v2148
        %v2154 = vmul.f32 %v442, %v2148
        %v2155 = vmul.f32 %v443, %v2148
        %v2156 = vmul.f32 %v444, %v2148
        %v2157 = vadd.f32 %v2140, %v2149
        %v2158 = vadd.f32 %v2141, %v2150
        %v2159 = vadd.f32 %v2142, %v2151
        %v2160 = vadd.f32 %v2143, %v2152
        %v2161 = vadd.f32 %v2144, %v2153
        %v2162 = vadd.f32 %v2145, %v2154
        %v2163 = vadd.f32 %v2146, %v2155
        %v2164 = vadd.f32 %v2147, %v2156
        %v2165 = vstv %s1340
        %v2166 = vmul.f32 %v2000, %v2165
        %v2167 = vmul.f32 %v2001, %v2165
        %v2168 = vmul.f32 %v2002, %v2165
        %v2169 = vmul.f32 %v2003, %v2165
        %v2170 = vmul.f32 %v2004, %v2165
        %v2171 = vmul.f32 %v2005, %v2165
        %v2172 = vmul.f32 %v2006, %v2165
        %v2173 = vmul.f32 %v2007, %v2165
        %v2174 = vadd.f32 %v2157, %v2166
        %v2175 = vadd.f32 %v2158, %v2167
        %v2176 = vadd.f32 %v2159, %v2168
        %v2177 = vadd.f32 %v2160, %v2169
        %v2178 = vadd.f32 %v2161, %v2170
        %v2179 = vadd.f32 %v2162, %v2171
        %v2180 = vadd.f32 %v2163, %v2172
        %v2181 = vadd.f32 %v2164, %v2173
        %v2182 = vstv %s1341
        %v2183 = vmul.f32 %v2040, %v2182
        %v2184 = vmul.f32 %v2041, %v2182
        %v2185 = vmul.f32 %v2042, %v2182
        %v2186 = vmul.f32 %v2043, %v2182
        %v2187 = vmul.f32 %v2044, %v2182
        %v2188 = vmul.f32 %v2045, %v2182
        %v2189 = vmul.f32 %v2046, %v2182
        %v2190 = vmul.f32 %v2047, %v2182
        %v2191 = vadd.f32 %v2174, %v2183
        %v2192 = vadd.f32 %v2175, %v2184
        %v2193 = vadd.f32 %v2176, %v2185
        %v2194 = vadd.f32 %v2177, %v2186
        %v2195 = vadd.f32 %v2178, %v2187
        %v2196 = vadd.f32 %v2179, %v2188
        %v2197 = vadd.f32 %v2180, %v2189
        %v2198 = vadd.f32 %v2181, %v2190
        %v2199 = vstv %s1342
        %v2200 = vmul.f32 %v1864, %v2199
        %v2201 = vmul.f32 %v1865, %v2199
        %v2202 = vmul.f32 %v1866, %v2199
        %v2203 = vmul.f32 %v1867, %v2199
        %v2204 = vmul.f32 %v1868, %v2199
        %v2205 = vmul.f32 %v1869, %v2199
        %v2206 = vmul.f32 %v1870, %v2199
        %v2207 = vmul.f32 %v1871, %v2199
        %v2208 = vadd.f32 %v2191, %v2200
        %v2209 = vadd.f32 %v2192, %v2201
        %v2210 = vadd.f32 %v2193, %v2202
        %v2211 = vadd.f32 %v2194, %v2203
        %v2212 = vadd.f32 %v2195, %v2204
        %v2213 = vadd.f32 %v2196, %v2205
        %v2214 = vadd.f32 %v2197, %v2206
        %v2215 = vadd.f32 %v2198, %v2207
        %v2216 = vstv %s1343
        %v2217 = vmul.f32 %v2072, %v2216
        %v2218 = vmul.f32 %v2073, %v2216
        %v2219 = vmul.f32 %v2074, %v2216
        %v2220 = vmul.f32 %v2075, %v2216
        %v2221 = vmul.f32 %v2076, %v2216
        %v2222 = vmul.f32 %v2077, %v2216
        %v2223 = vmul.f32 %v2078, %v2216
        %v2224 = vmul.f32 %v2079, %v2216
        %v2225 = vadd.f32 %v2208, %v2217
        %v2226 = vadd.f32 %v2209, %v2218
        %v2227 = vadd.f32 %v2210, %v2219
        %v2228 = vadd.f32 %v2211, %v2220
        %v2229 = vadd.f32 %v2212, %v2221
        %v2230 = vadd.f32 %v2213, %v2222
        %v2231 = vadd.f32 %v2214, %v2223
        %v2232 = vadd.f32 %v2215, %v2224
        %v2234 = vrot.slane %v453, 7
        %v2243 = vrot.slane %v446, 7
        %v2244 = vrot.slane %v447, 7
        %v2245 = vsel %vm523, %v2243, %v2244
        %v2246 = vrot.slane %v448, 7
        %v2247 = vsel %vm523, %v2244, %v2246
        %v2248 = vrot.slane %v449, 7
        %v2249 = vsel %vm523, %v2246, %v2248
        %v2250 = vrot.slane %v450, 7
        %v2251 = vsel %vm523, %v2248, %v2250
        %v2252 = vrot.slane %v451, 7
        %v2253 = vsel %vm523, %v2250, %v2252
        %v2254 = vrot.slane %v452, 7
        %v2255 = vsel %vm523, %v2252, %v2254
        %v2256 = vsel %vm523, %v2254, %v2234
        %v2265 = vsel %vm523, %v2234, %v2243
        %v2266 = vsel %vm555, %v2265, 0.0
        %v2267 = vsel %vm556, %v2245, 0.0
        %v2268 = vsel %vm557, %v2247, 0.0
        %v2269 = vsel %vm558, %v2249, 0.0
        %v2270 = vsel %vm559, %v2251, 0.0
        %v2271 = vsel %vm560, %v2253, 0.0
        %v2272 = vsel %vm561, %v2255, 0.0
        %v2273 = vsel %vm562, %v2256, 0.0
        %v2274 = vrot.slane %v446, 1
        %v2275 = vrot.slane %v447, 1
        %v2276 = vsel %vm579, %v2274, %v2275
        %v2277 = vrot.slane %v448, 1
        %v2278 = vsel %vm579, %v2275, %v2277
        %v2279 = vrot.slane %v449, 1
        %v2280 = vsel %vm579, %v2277, %v2279
        %v2281 = vrot.slane %v450, 1
        %v2282 = vsel %vm579, %v2279, %v2281
        %v2283 = vrot.slane %v451, 1
        %v2284 = vsel %vm579, %v2281, %v2283
        %v2285 = vrot.slane %v452, 1
        %v2286 = vsel %vm579, %v2283, %v2285
        %v2287 = vrot.slane %v453, 1
        %v2288 = vsel %vm579, %v2285, %v2287
        %v2298 = vsel %vm579, %v2287, %v2274
        %v2299 = vsel %vm613, %v2276, 0.0
        %v2300 = vsel %vm614, %v2278, 0.0
        %v2301 = vsel %vm615, %v2280, 0.0
        %v2302 = vsel %vm616, %v2282, 0.0
        %v2303 = vsel %vm617, %v2284, 0.0
        %v2304 = vsel %vm618, %v2286, 0.0
        %v2305 = vsel %vm619, %v2288, 0.0
        %v2306 = vsel %vm620, %v2298, 0.0
        %2315 = vrot.lane.b32.xlu0 %v2266, 1
        %v2316 = vpop.permute.xlu0 %2315
        %2317 = vrot.lane.b32.xlu0 %v2267, 1
        %v2318 = vpop.permute.xlu0 %2317
        %2319 = vrot.lane.b32.xlu0 %v2268, 1
        %v2320 = vpop.permute.xlu0 %2319
        %2321 = vrot.lane.b32.xlu0 %v2269, 1
        %v2322 = vpop.permute.xlu0 %2321
        %2323 = vrot.lane.b32.xlu0 %v2270, 1
        %v2324 = vpop.permute.xlu0 %2323
        %2325 = vrot.lane.b32.xlu0 %v2271, 1
        %v2326 = vpop.permute.xlu0 %2325
        %2327 = vrot.lane.b32.xlu0 %v2272, 1
        %v2328 = vpop.permute.xlu0 %2327
        %2329 = vrot.lane.b32.xlu0 %v2273, 1
        %v2330 = vpop.permute.xlu0 %2329
        %v2339 = vsel %vm663, %v2316, 0.0
        %v2340 = vsel %vm663, %v2318, 0.0
        %v2341 = vsel %vm663, %v2320, 0.0
        %v2342 = vsel %vm663, %v2322, 0.0
        %v2343 = vsel %vm663, %v2324, 0.0
        %v2344 = vsel %vm663, %v2326, 0.0
        %v2345 = vsel %vm663, %v2328, 0.0
        %v2346 = vsel %vm663, %v2330, 0.0
        %2347 = vrot.lane.b32.xlu0 %v2266, 127
        %v2348 = vpop.permute.xlu0 %2347
        %2349 = vrot.lane.b32.xlu0 %v2267, 127
        %v2350 = vpop.permute.xlu0 %2349
        %2351 = vrot.lane.b32.xlu0 %v2268, 127
        %v2352 = vpop.permute.xlu0 %2351
        %2353 = vrot.lane.b32.xlu0 %v2269, 127
        %v2354 = vpop.permute.xlu0 %2353
        %2355 = vrot.lane.b32.xlu0 %v2270, 127
        %v2356 = vpop.permute.xlu0 %2355
        %2357 = vrot.lane.b32.xlu0 %v2271, 127
        %v2358 = vpop.permute.xlu0 %2357
        %2359 = vrot.lane.b32.xlu0 %v2272, 127
        %v2360 = vpop.permute.xlu0 %2359
        %2361 = vrot.lane.b32.xlu0 %v2273, 127
        %v2362 = vpop.permute.xlu0 %2361
        %v2371 = vsel %vm698, %v2348, 0.0
        %v2372 = vsel %vm698, %v2350, 0.0
        %v2373 = vsel %vm698, %v2352, 0.0
        %v2374 = vsel %vm698, %v2354, 0.0
        %v2375 = vsel %vm698, %v2356, 0.0
        %v2376 = vsel %vm698, %v2358, 0.0
        %v2377 = vsel %vm698, %v2360, 0.0
        %v2378 = vsel %vm698, %v2362, 0.0
        %2379 = vrot.lane.b32.xlu0 %v446, 1
        %v2380 = vpop.permute.xlu0 %2379
        %2381 = vrot.lane.b32.xlu0 %v447, 1
        %v2382 = vpop.permute.xlu0 %2381
        %2383 = vrot.lane.b32.xlu0 %v448, 1
        %v2384 = vpop.permute.xlu0 %2383
        %2385 = vrot.lane.b32.xlu0 %v449, 1
        %v2386 = vpop.permute.xlu0 %2385
        %2387 = vrot.lane.b32.xlu0 %v450, 1
        %v2388 = vpop.permute.xlu0 %2387
        %2389 = vrot.lane.b32.xlu0 %v451, 1
        %v2390 = vpop.permute.xlu0 %2389
        %2391 = vrot.lane.b32.xlu0 %v452, 1
        %v2392 = vpop.permute.xlu0 %2391
        %2393 = vrot.lane.b32.xlu0 %v453, 1
        %v2394 = vpop.permute.xlu0 %2393
        %v2403 = vsel %vm663, %v2380, 0.0
        %v2404 = vsel %vm663, %v2382, 0.0
        %v2405 = vsel %vm663, %v2384, 0.0
        %v2406 = vsel %vm663, %v2386, 0.0
        %v2407 = vsel %vm663, %v2388, 0.0
        %v2408 = vsel %vm663, %v2390, 0.0
        %v2409 = vsel %vm663, %v2392, 0.0
        %v2410 = vsel %vm663, %v2394, 0.0
        %2411 = vrot.lane.b32.xlu0 %v446, 127
        %v2412 = vpop.permute.xlu0 %2411
        %2413 = vrot.lane.b32.xlu0 %v447, 127
        %v2414 = vpop.permute.xlu0 %2413
        %2415 = vrot.lane.b32.xlu0 %v448, 127
        %v2416 = vpop.permute.xlu0 %2415
        %2417 = vrot.lane.b32.xlu0 %v449, 127
        %v2418 = vpop.permute.xlu0 %2417
        %2419 = vrot.lane.b32.xlu0 %v450, 127
        %v2420 = vpop.permute.xlu0 %2419
        %2421 = vrot.lane.b32.xlu0 %v451, 127
        %v2422 = vpop.permute.xlu0 %2421
        %2423 = vrot.lane.b32.xlu0 %v452, 127
        %v2424 = vpop.permute.xlu0 %2423
        %2425 = vrot.lane.b32.xlu0 %v453, 127
        %v2426 = vpop.permute.xlu0 %2425
        %v2435 = vsel %vm698, %v2412, 0.0
        %v2436 = vsel %vm698, %v2414, 0.0
        %v2437 = vsel %vm698, %v2416, 0.0
        %v2438 = vsel %vm698, %v2418, 0.0
        %v2439 = vsel %vm698, %v2420, 0.0
        %v2440 = vsel %vm698, %v2422, 0.0
        %v2441 = vsel %vm698, %v2424, 0.0
        %v2442 = vsel %vm698, %v2426, 0.0
        %2451 = vrot.lane.b32.xlu0 %v2299, 1
        %v2452 = vpop.permute.xlu0 %2451
        %2453 = vrot.lane.b32.xlu0 %v2300, 1
        %v2454 = vpop.permute.xlu0 %2453
        %2455 = vrot.lane.b32.xlu0 %v2301, 1
        %v2456 = vpop.permute.xlu0 %2455
        %2457 = vrot.lane.b32.xlu0 %v2302, 1
        %v2458 = vpop.permute.xlu0 %2457
        %2459 = vrot.lane.b32.xlu0 %v2303, 1
        %v2460 = vpop.permute.xlu0 %2459
        %2461 = vrot.lane.b32.xlu0 %v2304, 1
        %v2462 = vpop.permute.xlu0 %2461
        %2463 = vrot.lane.b32.xlu0 %v2305, 1
        %v2464 = vpop.permute.xlu0 %2463
        %2465 = vrot.lane.b32.xlu0 %v2306, 1
        %v2466 = vpop.permute.xlu0 %2465
        %v2475 = vsel %vm663, %v2452, 0.0
        %v2476 = vsel %vm663, %v2454, 0.0
        %v2477 = vsel %vm663, %v2456, 0.0
        %v2478 = vsel %vm663, %v2458, 0.0
        %v2479 = vsel %vm663, %v2460, 0.0
        %v2480 = vsel %vm663, %v2462, 0.0
        %v2481 = vsel %vm663, %v2464, 0.0
        %v2482 = vsel %vm663, %v2466, 0.0
        %2483 = vrot.lane.b32.xlu0 %v2299, 127
        %v2484 = vpop.permute.xlu0 %2483
        %2485 = vrot.lane.b32.xlu0 %v2300, 127
        %v2486 = vpop.permute.xlu0 %2485
        %2487 = vrot.lane.b32.xlu0 %v2301, 127
        %v2488 = vpop.permute.xlu0 %2487
        %2489 = vrot.lane.b32.xlu0 %v2302, 127
        %v2490 = vpop.permute.xlu0 %2489
        %2491 = vrot.lane.b32.xlu0 %v2303, 127
        %v2492 = vpop.permute.xlu0 %2491
        %2493 = vrot.lane.b32.xlu0 %v2304, 127
        %v2494 = vpop.permute.xlu0 %2493
        %2495 = vrot.lane.b32.xlu0 %v2305, 127
        %v2496 = vpop.permute.xlu0 %2495
        %2497 = vrot.lane.b32.xlu0 %v2306, 127
        %v2498 = vpop.permute.xlu0 %2497
        %v2507 = vsel %vm698, %v2484, 0.0
        %v2508 = vsel %vm698, %v2486, 0.0
        %v2509 = vsel %vm698, %v2488, 0.0
        %v2510 = vsel %vm698, %v2490, 0.0
        %v2511 = vsel %vm698, %v2492, 0.0
        %v2512 = vsel %vm698, %v2494, 0.0
        %v2513 = vsel %vm698, %v2496, 0.0
        %v2514 = vsel %vm698, %v2498, 0.0
        %v2515 = vstv %s1344
        %v2516 = vmul.f32 %v2339, %v2515
        %v2517 = vmul.f32 %v2340, %v2515
        %v2518 = vmul.f32 %v2341, %v2515
        %v2519 = vmul.f32 %v2342, %v2515
        %v2520 = vmul.f32 %v2343, %v2515
        %v2521 = vmul.f32 %v2344, %v2515
        %v2522 = vmul.f32 %v2345, %v2515
        %v2523 = vmul.f32 %v2346, %v2515
        %v2524 = vadd.f32 %v2225, %v2516
        %v2525 = vadd.f32 %v2226, %v2517
        %v2526 = vadd.f32 %v2227, %v2518
        %v2527 = vadd.f32 %v2228, %v2519
        %v2528 = vadd.f32 %v2229, %v2520
        %v2529 = vadd.f32 %v2230, %v2521
        %v2530 = vadd.f32 %v2231, %v2522
        %v2531 = vadd.f32 %v2232, %v2523
        %v2532 = vstv %s1345
        %v2533 = vmul.f32 %v2266, %v2532
        %v2534 = vmul.f32 %v2267, %v2532
        %v2535 = vmul.f32 %v2268, %v2532
        %v2536 = vmul.f32 %v2269, %v2532
        %v2537 = vmul.f32 %v2270, %v2532
        %v2538 = vmul.f32 %v2271, %v2532
        %v2539 = vmul.f32 %v2272, %v2532
        %v2540 = vmul.f32 %v2273, %v2532
        %v2541 = vadd.f32 %v2524, %v2533
        %v2542 = vadd.f32 %v2525, %v2534
        %v2543 = vadd.f32 %v2526, %v2535
        %v2544 = vadd.f32 %v2527, %v2536
        %v2545 = vadd.f32 %v2528, %v2537
        %v2546 = vadd.f32 %v2529, %v2538
        %v2547 = vadd.f32 %v2530, %v2539
        %v2548 = vadd.f32 %v2531, %v2540
        %v2549 = vstv %s1346
        %v2550 = vmul.f32 %v2371, %v2549
        %v2551 = vmul.f32 %v2372, %v2549
        %v2552 = vmul.f32 %v2373, %v2549
        %v2553 = vmul.f32 %v2374, %v2549
        %v2554 = vmul.f32 %v2375, %v2549
        %v2555 = vmul.f32 %v2376, %v2549
        %v2556 = vmul.f32 %v2377, %v2549
        %v2557 = vmul.f32 %v2378, %v2549
        %v2558 = vadd.f32 %v2541, %v2550
        %v2559 = vadd.f32 %v2542, %v2551
        %v2560 = vadd.f32 %v2543, %v2552
        %v2561 = vadd.f32 %v2544, %v2553
        %v2562 = vadd.f32 %v2545, %v2554
        %v2563 = vadd.f32 %v2546, %v2555
        %v2564 = vadd.f32 %v2547, %v2556
        %v2565 = vadd.f32 %v2548, %v2557
        %v2566 = vstv %s1347
        %v2567 = vmul.f32 %v2403, %v2566
        %v2568 = vmul.f32 %v2404, %v2566
        %v2569 = vmul.f32 %v2405, %v2566
        %v2570 = vmul.f32 %v2406, %v2566
        %v2571 = vmul.f32 %v2407, %v2566
        %v2572 = vmul.f32 %v2408, %v2566
        %v2573 = vmul.f32 %v2409, %v2566
        %v2574 = vmul.f32 %v2410, %v2566
        %v2575 = vadd.f32 %v2558, %v2567
        %v2576 = vadd.f32 %v2559, %v2568
        %v2577 = vadd.f32 %v2560, %v2569
        %v2578 = vadd.f32 %v2561, %v2570
        %v2579 = vadd.f32 %v2562, %v2571
        %v2580 = vadd.f32 %v2563, %v2572
        %v2581 = vadd.f32 %v2564, %v2573
        %v2582 = vadd.f32 %v2565, %v2574
        %v2583 = vstv %s1348
        %v2584 = vmul.f32 %v446, %v2583
        %v2585 = vmul.f32 %v447, %v2583
        %v2586 = vmul.f32 %v448, %v2583
        %v2587 = vmul.f32 %v449, %v2583
        %v2588 = vmul.f32 %v450, %v2583
        %v2589 = vmul.f32 %v451, %v2583
        %v2590 = vmul.f32 %v452, %v2583
        %v2591 = vmul.f32 %v453, %v2583
        %v2592 = vadd.f32 %v2575, %v2584
        %v2593 = vadd.f32 %v2576, %v2585
        %v2594 = vadd.f32 %v2577, %v2586
        %v2595 = vadd.f32 %v2578, %v2587
        %v2596 = vadd.f32 %v2579, %v2588
        %v2597 = vadd.f32 %v2580, %v2589
        %v2598 = vadd.f32 %v2581, %v2590
        %v2599 = vadd.f32 %v2582, %v2591
        %v2600 = vstv %s1349
        %v2601 = vmul.f32 %v2435, %v2600
        %v2602 = vmul.f32 %v2436, %v2600
        %v2603 = vmul.f32 %v2437, %v2600
        %v2604 = vmul.f32 %v2438, %v2600
        %v2605 = vmul.f32 %v2439, %v2600
        %v2606 = vmul.f32 %v2440, %v2600
        %v2607 = vmul.f32 %v2441, %v2600
        %v2608 = vmul.f32 %v2442, %v2600
        %v2609 = vadd.f32 %v2592, %v2601
        %v2610 = vadd.f32 %v2593, %v2602
        %v2611 = vadd.f32 %v2594, %v2603
        %v2612 = vadd.f32 %v2595, %v2604
        %v2613 = vadd.f32 %v2596, %v2605
        %v2614 = vadd.f32 %v2597, %v2606
        %v2615 = vadd.f32 %v2598, %v2607
        %v2616 = vadd.f32 %v2599, %v2608
        %v2617 = vstv %s1350
        %v2618 = vmul.f32 %v2475, %v2617
        %v2619 = vmul.f32 %v2476, %v2617
        %v2620 = vmul.f32 %v2477, %v2617
        %v2621 = vmul.f32 %v2478, %v2617
        %v2622 = vmul.f32 %v2479, %v2617
        %v2623 = vmul.f32 %v2480, %v2617
        %v2624 = vmul.f32 %v2481, %v2617
        %v2625 = vmul.f32 %v2482, %v2617
        %v2626 = vadd.f32 %v2609, %v2618
        %v2627 = vadd.f32 %v2610, %v2619
        %v2628 = vadd.f32 %v2611, %v2620
        %v2629 = vadd.f32 %v2612, %v2621
        %v2630 = vadd.f32 %v2613, %v2622
        %v2631 = vadd.f32 %v2614, %v2623
        %v2632 = vadd.f32 %v2615, %v2624
        %v2633 = vadd.f32 %v2616, %v2625
        %v2634 = vstv %s1351
        %v2635 = vmul.f32 %v2299, %v2634
        %v2636 = vmul.f32 %v2300, %v2634
        %v2637 = vmul.f32 %v2301, %v2634
        %v2638 = vmul.f32 %v2302, %v2634
        %v2639 = vmul.f32 %v2303, %v2634
        %v2640 = vmul.f32 %v2304, %v2634
        %v2641 = vmul.f32 %v2305, %v2634
        %v2642 = vmul.f32 %v2306, %v2634
        %v2643 = vadd.f32 %v2626, %v2635
        %v2644 = vadd.f32 %v2627, %v2636
        %v2645 = vadd.f32 %v2628, %v2637
        %v2646 = vadd.f32 %v2629, %v2638
        %v2647 = vadd.f32 %v2630, %v2639
        %v2648 = vadd.f32 %v2631, %v2640
        %v2649 = vadd.f32 %v2632, %v2641
        %v2650 = vadd.f32 %v2633, %v2642
        %v2651 = vstv %s1352
        %v2652 = vmul.f32 %v2507, %v2651
        %v2653 = vmul.f32 %v2508, %v2651
        %v2654 = vmul.f32 %v2509, %v2651
        %v2655 = vmul.f32 %v2510, %v2651
        %v2656 = vmul.f32 %v2511, %v2651
        %v2657 = vmul.f32 %v2512, %v2651
        %v2658 = vmul.f32 %v2513, %v2651
        %v2659 = vmul.f32 %v2514, %v2651
        %v2660 = vadd.f32 %v2643, %v2652
        %v2661 = vadd.f32 %v2644, %v2653
        %v2662 = vadd.f32 %v2645, %v2654
        %v2663 = vadd.f32 %v2646, %v2655
        %v2664 = vadd.f32 %v2647, %v2656
        %v2665 = vadd.f32 %v2648, %v2657
        %v2666 = vadd.f32 %v2649, %v2658
        %v2667 = vadd.f32 %v2650, %v2659
        %v2669 = vrot.slane %v1325, 7
        %v2678 = vrot.slane %v1318, 7
        %v2679 = vrot.slane %v1319, 7
        %v2680 = vsel %vm523, %v2678, %v2679
        %v2681 = vrot.slane %v1320, 7
        %v2682 = vsel %vm523, %v2679, %v2681
        %v2683 = vrot.slane %v1321, 7
        %v2684 = vsel %vm523, %v2681, %v2683
        %v2685 = vrot.slane %v1322, 7
        %v2686 = vsel %vm523, %v2683, %v2685
        %v2687 = vrot.slane %v1323, 7
        %v2688 = vsel %vm523, %v2685, %v2687
        %v2689 = vrot.slane %v1324, 7
        %v2690 = vsel %vm523, %v2687, %v2689
        %v2691 = vsel %vm523, %v2689, %v2669
        %v2700 = vsel %vm523, %v2669, %v2678
        %v2701 = vsel %vm555, %v2700, 0.0
        %v2702 = vsel %vm556, %v2680, 0.0
        %v2703 = vsel %vm557, %v2682, 0.0
        %v2704 = vsel %vm558, %v2684, 0.0
        %v2705 = vsel %vm559, %v2686, 0.0
        %v2706 = vsel %vm560, %v2688, 0.0
        %v2707 = vsel %vm561, %v2690, 0.0
        %v2708 = vsel %vm562, %v2691, 0.0
        %v2709 = vrot.slane %v1318, 1
        %v2710 = vrot.slane %v1319, 1
        %v2711 = vsel %vm579, %v2709, %v2710
        %v2712 = vrot.slane %v1320, 1
        %v2713 = vsel %vm579, %v2710, %v2712
        %v2714 = vrot.slane %v1321, 1
        %v2715 = vsel %vm579, %v2712, %v2714
        %v2716 = vrot.slane %v1322, 1
        %v2717 = vsel %vm579, %v2714, %v2716
        %v2718 = vrot.slane %v1323, 1
        %v2719 = vsel %vm579, %v2716, %v2718
        %v2720 = vrot.slane %v1324, 1
        %v2721 = vsel %vm579, %v2718, %v2720
        %v2722 = vrot.slane %v1325, 1
        %v2723 = vsel %vm579, %v2720, %v2722
        %v2733 = vsel %vm579, %v2722, %v2709
        %v2734 = vsel %vm613, %v2711, 0.0
        %v2735 = vsel %vm614, %v2713, 0.0
        %v2736 = vsel %vm615, %v2715, 0.0
        %v2737 = vsel %vm616, %v2717, 0.0
        %v2738 = vsel %vm617, %v2719, 0.0
        %v2739 = vsel %vm618, %v2721, 0.0
        %v2740 = vsel %vm619, %v2723, 0.0
        %v2741 = vsel %vm620, %v2733, 0.0
        %2750 = vrot.lane.b32.xlu0 %v2701, 1
        %v2751 = vpop.permute.xlu0 %2750
        %2752 = vrot.lane.b32.xlu0 %v2702, 1
        %v2753 = vpop.permute.xlu0 %2752
        %2754 = vrot.lane.b32.xlu0 %v2703, 1
        %v2755 = vpop.permute.xlu0 %2754
        %2756 = vrot.lane.b32.xlu0 %v2704, 1
        %v2757 = vpop.permute.xlu0 %2756
        %2758 = vrot.lane.b32.xlu0 %v2705, 1
        %v2759 = vpop.permute.xlu0 %2758
        %2760 = vrot.lane.b32.xlu0 %v2706, 1
        %v2761 = vpop.permute.xlu0 %2760
        %2762 = vrot.lane.b32.xlu0 %v2707, 1
        %v2763 = vpop.permute.xlu0 %2762
        %2764 = vrot.lane.b32.xlu0 %v2708, 1
        %v2765 = vpop.permute.xlu0 %2764
        %v2774 = vsel %vm663, %v2751, 0.0
        %v2775 = vsel %vm663, %v2753, 0.0
        %v2776 = vsel %vm663, %v2755, 0.0
        %v2777 = vsel %vm663, %v2757, 0.0
        %v2778 = vsel %vm663, %v2759, 0.0
        %v2779 = vsel %vm663, %v2761, 0.0
        %v2780 = vsel %vm663, %v2763, 0.0
        %v2781 = vsel %vm663, %v2765, 0.0
        %2782 = vrot.lane.b32.xlu0 %v2701, 127
        %v2783 = vpop.permute.xlu0 %2782
        %2784 = vrot.lane.b32.xlu0 %v2702, 127
        %v2785 = vpop.permute.xlu0 %2784
        %2786 = vrot.lane.b32.xlu0 %v2703, 127
        %v2787 = vpop.permute.xlu0 %2786
        %2788 = vrot.lane.b32.xlu0 %v2704, 127
        %v2789 = vpop.permute.xlu0 %2788
        %2790 = vrot.lane.b32.xlu0 %v2705, 127
        %v2791 = vpop.permute.xlu0 %2790
        %2792 = vrot.lane.b32.xlu0 %v2706, 127
        %v2793 = vpop.permute.xlu0 %2792
        %2794 = vrot.lane.b32.xlu0 %v2707, 127
        %v2795 = vpop.permute.xlu0 %2794
        %2796 = vrot.lane.b32.xlu0 %v2708, 127
        %v2797 = vpop.permute.xlu0 %2796
        %v2806 = vsel %vm698, %v2783, 0.0
        %v2807 = vsel %vm698, %v2785, 0.0
        %v2808 = vsel %vm698, %v2787, 0.0
        %v2809 = vsel %vm698, %v2789, 0.0
        %v2810 = vsel %vm698, %v2791, 0.0
        %v2811 = vsel %vm698, %v2793, 0.0
        %v2812 = vsel %vm698, %v2795, 0.0
        %v2813 = vsel %vm698, %v2797, 0.0
        %2814 = vrot.lane.b32.xlu0 %v1318, 1
        %v2815 = vpop.permute.xlu0 %2814
        %2816 = vrot.lane.b32.xlu0 %v1319, 1
        %v2817 = vpop.permute.xlu0 %2816
        %2818 = vrot.lane.b32.xlu0 %v1320, 1
        %v2819 = vpop.permute.xlu0 %2818
        %2820 = vrot.lane.b32.xlu0 %v1321, 1
        %v2821 = vpop.permute.xlu0 %2820
        %2822 = vrot.lane.b32.xlu0 %v1322, 1
        %v2823 = vpop.permute.xlu0 %2822
        %2824 = vrot.lane.b32.xlu0 %v1323, 1
        %v2825 = vpop.permute.xlu0 %2824
        %2826 = vrot.lane.b32.xlu0 %v1324, 1
        %v2827 = vpop.permute.xlu0 %2826
        %2828 = vrot.lane.b32.xlu0 %v1325, 1
        %v2829 = vpop.permute.xlu0 %2828
        %v2838 = vsel %vm663, %v2815, 0.0
        %v2839 = vsel %vm663, %v2817, 0.0
        %v2840 = vsel %vm663, %v2819, 0.0
        %v2841 = vsel %vm663, %v2821, 0.0
        %v2842 = vsel %vm663, %v2823, 0.0
        %v2843 = vsel %vm663, %v2825, 0.0
        %v2844 = vsel %vm663, %v2827, 0.0
        %v2845 = vsel %vm663, %v2829, 0.0
        %2846 = vrot.lane.b32.xlu0 %v1318, 127
        %v2847 = vpop.permute.xlu0 %2846
        %2848 = vrot.lane.b32.xlu0 %v1319, 127
        %v2849 = vpop.permute.xlu0 %2848
        %2850 = vrot.lane.b32.xlu0 %v1320, 127
        %v2851 = vpop.permute.xlu0 %2850
        %2852 = vrot.lane.b32.xlu0 %v1321, 127
        %v2853 = vpop.permute.xlu0 %2852
        %2854 = vrot.lane.b32.xlu0 %v1322, 127
        %v2855 = vpop.permute.xlu0 %2854
        %2856 = vrot.lane.b32.xlu0 %v1323, 127
        %v2857 = vpop.permute.xlu0 %2856
        %2858 = vrot.lane.b32.xlu0 %v1324, 127
        %v2859 = vpop.permute.xlu0 %2858
        %2860 = vrot.lane.b32.xlu0 %v1325, 127
        %v2861 = vpop.permute.xlu0 %2860
        %v2870 = vsel %vm698, %v2847, 0.0
        %v2871 = vsel %vm698, %v2849, 0.0
        %v2872 = vsel %vm698, %v2851, 0.0
        %v2873 = vsel %vm698, %v2853, 0.0
        %v2874 = vsel %vm698, %v2855, 0.0
        %v2875 = vsel %vm698, %v2857, 0.0
        %v2876 = vsel %vm698, %v2859, 0.0
        %v2877 = vsel %vm698, %v2861, 0.0
        %2886 = vrot.lane.b32.xlu0 %v2734, 1
        %v2887 = vpop.permute.xlu0 %2886
        %2888 = vrot.lane.b32.xlu0 %v2735, 1
        %v2889 = vpop.permute.xlu0 %2888
        %2890 = vrot.lane.b32.xlu0 %v2736, 1
        %v2891 = vpop.permute.xlu0 %2890
        %2892 = vrot.lane.b32.xlu0 %v2737, 1
        %v2893 = vpop.permute.xlu0 %2892
        %2894 = vrot.lane.b32.xlu0 %v2738, 1
        %v2895 = vpop.permute.xlu0 %2894
        %2896 = vrot.lane.b32.xlu0 %v2739, 1
        %v2897 = vpop.permute.xlu0 %2896
        %2898 = vrot.lane.b32.xlu0 %v2740, 1
        %v2899 = vpop.permute.xlu0 %2898
        %2900 = vrot.lane.b32.xlu0 %v2741, 1
        %v2901 = vpop.permute.xlu0 %2900
        %v2910 = vsel %vm663, %v2887, 0.0
        %v2911 = vsel %vm663, %v2889, 0.0
        %v2912 = vsel %vm663, %v2891, 0.0
        %v2913 = vsel %vm663, %v2893, 0.0
        %v2914 = vsel %vm663, %v2895, 0.0
        %v2915 = vsel %vm663, %v2897, 0.0
        %v2916 = vsel %vm663, %v2899, 0.0
        %v2917 = vsel %vm663, %v2901, 0.0
        %2918 = vrot.lane.b32.xlu0 %v2734, 127
        %v2919 = vpop.permute.xlu0 %2918
        %2920 = vrot.lane.b32.xlu0 %v2735, 127
        %v2921 = vpop.permute.xlu0 %2920
        %2922 = vrot.lane.b32.xlu0 %v2736, 127
        %v2923 = vpop.permute.xlu0 %2922
        %2924 = vrot.lane.b32.xlu0 %v2737, 127
        %v2925 = vpop.permute.xlu0 %2924
        %2926 = vrot.lane.b32.xlu0 %v2738, 127
        %v2927 = vpop.permute.xlu0 %2926
        %2928 = vrot.lane.b32.xlu0 %v2739, 127
        %v2929 = vpop.permute.xlu0 %2928
        %2930 = vrot.lane.b32.xlu0 %v2740, 127
        %v2931 = vpop.permute.xlu0 %2930
        %2932 = vrot.lane.b32.xlu0 %v2741, 127
        %v2933 = vpop.permute.xlu0 %2932
        %v2942 = vsel %vm698, %v2919, 0.0
        %v2943 = vsel %vm698, %v2921, 0.0
        %v2944 = vsel %vm698, %v2923, 0.0
        %v2945 = vsel %vm698, %v2925, 0.0
        %v2946 = vsel %vm698, %v2927, 0.0
        %v2947 = vsel %vm698, %v2929, 0.0
        %v2948 = vsel %vm698, %v2931, 0.0
        %v2949 = vsel %vm698, %v2933, 0.0
        %v2950 = vstv %s1353
        %v2951 = vmul.f32 %v2774, %v2950
        %v2952 = vmul.f32 %v2775, %v2950
        %v2953 = vmul.f32 %v2776, %v2950
        %v2954 = vmul.f32 %v2777, %v2950
        %v2955 = vmul.f32 %v2778, %v2950
        %v2956 = vmul.f32 %v2779, %v2950
        %v2957 = vmul.f32 %v2780, %v2950
        %v2958 = vmul.f32 %v2781, %v2950
        %v2959 = vadd.f32 %v2660, %v2951
        %v2960 = vadd.f32 %v2661, %v2952
        %v2961 = vadd.f32 %v2662, %v2953
        %v2962 = vadd.f32 %v2663, %v2954
        %v2963 = vadd.f32 %v2664, %v2955
        %v2964 = vadd.f32 %v2665, %v2956
        %v2965 = vadd.f32 %v2666, %v2957
        %v2966 = vadd.f32 %v2667, %v2958
        %v2967 = vstv %s1354
        %v2968 = vmul.f32 %v2701, %v2967
        %v2969 = vmul.f32 %v2702, %v2967
        %v2970 = vmul.f32 %v2703, %v2967
        %v2971 = vmul.f32 %v2704, %v2967
        %v2972 = vmul.f32 %v2705, %v2967
        %v2973 = vmul.f32 %v2706, %v2967
        %v2974 = vmul.f32 %v2707, %v2967
        %v2975 = vmul.f32 %v2708, %v2967
        %v2976 = vadd.f32 %v2959, %v2968
        %v2977 = vadd.f32 %v2960, %v2969
        %v2978 = vadd.f32 %v2961, %v2970
        %v2979 = vadd.f32 %v2962, %v2971
        %v2980 = vadd.f32 %v2963, %v2972
        %v2981 = vadd.f32 %v2964, %v2973
        %v2982 = vadd.f32 %v2965, %v2974
        %v2983 = vadd.f32 %v2966, %v2975
        %v2984 = vstv %s1355
        %v2985 = vmul.f32 %v2806, %v2984
        %v2986 = vmul.f32 %v2807, %v2984
        %v2987 = vmul.f32 %v2808, %v2984
        %v2988 = vmul.f32 %v2809, %v2984
        %v2989 = vmul.f32 %v2810, %v2984
        %v2990 = vmul.f32 %v2811, %v2984
        %v2991 = vmul.f32 %v2812, %v2984
        %v2992 = vmul.f32 %v2813, %v2984
        %v2993 = vadd.f32 %v2976, %v2985
        %v2994 = vadd.f32 %v2977, %v2986
        %v2995 = vadd.f32 %v2978, %v2987
        %v2996 = vadd.f32 %v2979, %v2988
        %v2997 = vadd.f32 %v2980, %v2989
        %v2998 = vadd.f32 %v2981, %v2990
        %v2999 = vadd.f32 %v2982, %v2991
        %v3000 = vadd.f32 %v2983, %v2992
        %v3001 = vstv %s1356
        %v3002 = vmul.f32 %v2838, %v3001
        %v3003 = vmul.f32 %v2839, %v3001
        %v3004 = vmul.f32 %v2840, %v3001
        %v3005 = vmul.f32 %v2841, %v3001
        %v3006 = vmul.f32 %v2842, %v3001
        %v3007 = vmul.f32 %v2843, %v3001
        %v3008 = vmul.f32 %v2844, %v3001
        %v3009 = vmul.f32 %v2845, %v3001
        %v3010 = vadd.f32 %v2993, %v3002
        %v3011 = vadd.f32 %v2994, %v3003
        %v3012 = vadd.f32 %v2995, %v3004
        %v3013 = vadd.f32 %v2996, %v3005
        %v3014 = vadd.f32 %v2997, %v3006
        %v3015 = vadd.f32 %v2998, %v3007
        %v3016 = vadd.f32 %v2999, %v3008
        %v3017 = vadd.f32 %v3000, %v3009
        %v3018 = vstv %s1357
        %v3019 = vmul.f32 %v1318, %v3018
        %v3020 = vmul.f32 %v1319, %v3018
        %v3021 = vmul.f32 %v1320, %v3018
        %v3022 = vmul.f32 %v1321, %v3018
        %v3023 = vmul.f32 %v1322, %v3018
        %v3024 = vmul.f32 %v1323, %v3018
        %v3025 = vmul.f32 %v1324, %v3018
        %v3026 = vmul.f32 %v1325, %v3018
        %v3027 = vadd.f32 %v3010, %v3019
        %v3028 = vadd.f32 %v3011, %v3020
        %v3029 = vadd.f32 %v3012, %v3021
        %v3030 = vadd.f32 %v3013, %v3022
        %v3031 = vadd.f32 %v3014, %v3023
        %v3032 = vadd.f32 %v3015, %v3024
        %v3033 = vadd.f32 %v3016, %v3025
        %v3034 = vadd.f32 %v3017, %v3026
        %v3035 = vstv %s1358
        %v3036 = vmul.f32 %v2870, %v3035
        %v3037 = vmul.f32 %v2871, %v3035
        %v3038 = vmul.f32 %v2872, %v3035
        %v3039 = vmul.f32 %v2873, %v3035
        %v3040 = vmul.f32 %v2874, %v3035
        %v3041 = vmul.f32 %v2875, %v3035
        %v3042 = vmul.f32 %v2876, %v3035
        %v3043 = vmul.f32 %v2877, %v3035
        %v3044 = vadd.f32 %v3027, %v3036
        %v3045 = vadd.f32 %v3028, %v3037
        %v3046 = vadd.f32 %v3029, %v3038
        %v3047 = vadd.f32 %v3030, %v3039
        %v3048 = vadd.f32 %v3031, %v3040
        %v3049 = vadd.f32 %v3032, %v3041
        %v3050 = vadd.f32 %v3033, %v3042
        %v3051 = vadd.f32 %v3034, %v3043
        %v3052 = vstv %s1359
        %v3053 = vmul.f32 %v2910, %v3052
        %v3054 = vmul.f32 %v2911, %v3052
        %v3055 = vmul.f32 %v2912, %v3052
        %v3056 = vmul.f32 %v2913, %v3052
        %v3057 = vmul.f32 %v2914, %v3052
        %v3058 = vmul.f32 %v2915, %v3052
        %v3059 = vmul.f32 %v2916, %v3052
        %v3060 = vmul.f32 %v2917, %v3052
        %v3061 = vadd.f32 %v3044, %v3053
        %v3062 = vadd.f32 %v3045, %v3054
        %v3063 = vadd.f32 %v3046, %v3055
        %v3064 = vadd.f32 %v3047, %v3056
        %v3065 = vadd.f32 %v3048, %v3057
        %v3066 = vadd.f32 %v3049, %v3058
        %v3067 = vadd.f32 %v3050, %v3059
        %v3068 = vadd.f32 %v3051, %v3060
        %v3069 = vstv %s1360
        %v3070 = vmul.f32 %v2734, %v3069
        %v3071 = vmul.f32 %v2735, %v3069
        %v3072 = vmul.f32 %v2736, %v3069
        %v3073 = vmul.f32 %v2737, %v3069
        %v3074 = vmul.f32 %v2738, %v3069
        %v3075 = vmul.f32 %v2739, %v3069
        %v3076 = vmul.f32 %v2740, %v3069
        %v3077 = vmul.f32 %v2741, %v3069
        %v3078 = vadd.f32 %v3061, %v3070
        %v3079 = vadd.f32 %v3062, %v3071
        %v3080 = vadd.f32 %v3063, %v3072
        %v3081 = vadd.f32 %v3064, %v3073
        %v3082 = vadd.f32 %v3065, %v3074
        %v3083 = vadd.f32 %v3066, %v3075
        %v3084 = vadd.f32 %v3067, %v3076
        %v3085 = vadd.f32 %v3068, %v3077
        %v3086 = vstv %s1361
        %v3087 = vmul.f32 %v2942, %v3086
        %v3088 = vmul.f32 %v2943, %v3086
        %v3089 = vmul.f32 %v2944, %v3086
        %v3090 = vmul.f32 %v2945, %v3086
        %v3091 = vmul.f32 %v2946, %v3086
        %v3092 = vmul.f32 %v2947, %v3086
        %v3093 = vmul.f32 %v2948, %v3086
        %v3094 = vmul.f32 %v2949, %v3086
        %v3095 = vadd.f32 %v3078, %v3087
        %v3096 = vadd.f32 %v3079, %v3088
        %v3097 = vadd.f32 %v3080, %v3089
        %v3098 = vadd.f32 %v3081, %v3090
        %v3099 = vadd.f32 %v3082, %v3091
        %v3100 = vadd.f32 %v3083, %v3092
        %v3101 = vadd.f32 %v3084, %v3093
        %v3102 = vadd.f32 %v3085, %v3094
        %v3103 = vstv %s1362
        %v3104 = vadd.f32 %v3095, %v3103
        %v3105 = vadd.f32 %v3096, %v3103
        %v3106 = vadd.f32 %v3097, %v3103
        %v3107 = vadd.f32 %v3098, %v3103
        %v3108 = vadd.f32 %v3099, %v3103
        %v3109 = vadd.f32 %v3100, %v3103
        %v3110 = vadd.f32 %v3101, %v3103
        %v3111 = vadd.f32 %v3102, %v3103
        %v3112 = vxor.u32 %v3104, 2147483648
        %v3113 = vxor.u32 %v3105, 2147483648
        %v3114 = vxor.u32 %v3106, 2147483648
        %v3115 = vxor.u32 %v3107, 2147483648
        %v3116 = vxor.u32 %v3108, 2147483648
        %v3117 = vxor.u32 %v3109, 2147483648
        %v3118 = vxor.u32 %v3110, 2147483648
        %v3119 = vxor.u32 %v3111, 2147483648
        %v3120 = vmul.f32 %v3112, 1.442695
        %v3121 = vpow.pop %v3120
        %v3122 = vmul.f32 %v3113, 1.442695
        %v3123 = vpow.pop %v3122
        %v3124 = vmul.f32 %v3114, 1.442695
        %v3125 = vpow.pop %v3124
        %v3126 = vmul.f32 %v3115, 1.442695
        %v3127 = vpow.pop %v3126
        %v3128 = vmul.f32 %v3116, 1.442695
        %v3129 = vpow.pop %v3128
        %v3130 = vmul.f32 %v3117, 1.442695
        %v3131 = vpow.pop %v3130
        %v3132 = vmul.f32 %v3118, 1.442695
        %v3133 = vpow.pop %v3132
        %v3134 = vmul.f32 %v3119, 1.442695
        %v3135 = vpow.pop %v3134
        %v3136 = vadd.f32 %v3121, 1.0
        %v3137 = vadd.f32 %v3123, 1.0
        %v3138 = vadd.f32 %v3125, 1.0
        %v3139 = vadd.f32 %v3127, 1.0
        %v3140 = vadd.f32 %v3129, 1.0
        %v3141 = vadd.f32 %v3131, 1.0
        %v3142 = vadd.f32 %v3133, 1.0
        %v3143 = vadd.f32 %v3135, 1.0
        %v3144 = vrcp.pop %v3136
        %v3145 = vmul.f32 1.0, %v3144
        %v3146 = vrcp.pop %v3137
        %v3147 = vmul.f32 1.0, %v3146
        %v3148 = vrcp.pop %v3138
        %v3149 = vmul.f32 1.0, %v3148
        %v3150 = vrcp.pop %v3139
        %v3151 = vmul.f32 1.0, %v3150
        %v3152 = vrcp.pop %v3140
        %v3153 = vmul.f32 1.0, %v3152
        %v3154 = vrcp.pop %v3141
        %v3155 = vmul.f32 1.0, %v3154
        %v3156 = vrcp.pop %v3142
        %v3157 = vmul.f32 1.0, %v3156
        %v3158 = vrcp.pop %v3143
        %v3159 = vmul.f32 1.0, %v3158
        %3160 = vst [vmem:[%s427] sm:$0xff] %v3145
        %3161 = vst [vmem:[%s427 + $0x8] sm:$0xff] %v3147
        %3162 = vst [vmem:[%s427 + $0x10] sm:$0xff] %v3149
        %3163 = vst [vmem:[%s427 + $0x18] sm:$0xff] %v3151
        %3164 = vst [vmem:[%s427 + $0x20] sm:$0xff] %v3153
        %3165 = vst [vmem:[%s427 + $0x28] sm:$0xff] %v3155
        %3166 = vst [vmem:[%s427 + $0x30] sm:$0xff] %v3157
        %3167 = vst [vmem:[%s427 + $0x38] sm:$0xff] %v3159
        %v3168 = vmul.f32 %v428, -0.147
        %v3169 = vmul.f32 %v429, -0.147
        %v3170 = vmul.f32 %v430, -0.147
        %v3171 = vmul.f32 %v431, -0.147
        %v3172 = vmul.f32 %v432, -0.147
        %v3173 = vmul.f32 %v433, -0.147
        %v3174 = vmul.f32 %v434, -0.147
        %v3175 = vmul.f32 %v435, -0.147
        %v3176 = vmul.f32 %v437, 0.289
        %v3177 = vmul.f32 %v438, 0.289
        %v3178 = vmul.f32 %v439, 0.289
        %v3179 = vmul.f32 %v440, 0.289
        %v3180 = vmul.f32 %v441, 0.289
        %v3181 = vmul.f32 %v442, 0.289
        %v3182 = vmul.f32 %v443, 0.289
        %v3183 = vmul.f32 %v444, 0.289
        %v3184 = vsub.f32 %v3168, %v3176
        %v3185 = vsub.f32 %v3169, %v3177
        %v3186 = vsub.f32 %v3170, %v3178
        %v3187 = vsub.f32 %v3171, %v3179
        %v3188 = vsub.f32 %v3172, %v3180
        %v3189 = vsub.f32 %v3173, %v3181
        %v3190 = vsub.f32 %v3174, %v3182
        %v3191 = vsub.f32 %v3175, %v3183
        %v3192 = vmul.f32 %v446, 0.436
        %v3193 = vmul.f32 %v447, 0.436
        %v3194 = vmul.f32 %v448, 0.436
        %v3195 = vmul.f32 %v449, 0.436
        %v3196 = vmul.f32 %v450, 0.436
        %v3197 = vmul.f32 %v451, 0.436
        %v3198 = vmul.f32 %v452, 0.436
        %v3199 = vmul.f32 %v453, 0.436
        %v3200 = vadd.f32 %v3184, %v3192
        %v3201 = vadd.f32 %v3185, %v3193
        %v3202 = vadd.f32 %v3186, %v3194
        %v3203 = vadd.f32 %v3187, %v3195
        %v3204 = vadd.f32 %v3188, %v3196
        %v3205 = vadd.f32 %v3189, %v3197
        %v3206 = vadd.f32 %v3190, %v3198
        %v3207 = vadd.f32 %v3191, %v3199
        %v3208 = vmul.f32 %v428, 0.615
        %v3209 = vmul.f32 %v429, 0.615
        %v3210 = vmul.f32 %v430, 0.615
        %v3211 = vmul.f32 %v431, 0.615
        %v3212 = vmul.f32 %v432, 0.615
        %v3213 = vmul.f32 %v433, 0.615
        %v3214 = vmul.f32 %v434, 0.615
        %v3215 = vmul.f32 %v435, 0.615
        %v3216 = vmul.f32 %v437, 0.515
        %v3217 = vmul.f32 %v438, 0.515
        %v3218 = vmul.f32 %v439, 0.515
        %v3219 = vmul.f32 %v440, 0.515
        %v3220 = vmul.f32 %v441, 0.515
        %v3221 = vmul.f32 %v442, 0.515
        %v3222 = vmul.f32 %v443, 0.515
        %v3223 = vmul.f32 %v444, 0.515
        %v3224 = vsub.f32 %v3208, %v3216
        %v3225 = vsub.f32 %v3209, %v3217
        %v3226 = vsub.f32 %v3210, %v3218
        %v3227 = vsub.f32 %v3211, %v3219
        %v3228 = vsub.f32 %v3212, %v3220
        %v3229 = vsub.f32 %v3213, %v3221
        %v3230 = vsub.f32 %v3214, %v3222
        %v3231 = vsub.f32 %v3215, %v3223
        %v3232 = vmul.f32 %v446, 0.1
        %v3233 = vmul.f32 %v447, 0.1
        %v3234 = vmul.f32 %v448, 0.1
        %v3235 = vmul.f32 %v449, 0.1
        %v3236 = vmul.f32 %v450, 0.1
        %v3237 = vmul.f32 %v451, 0.1
        %v3238 = vmul.f32 %v452, 0.1
        %v3239 = vmul.f32 %v453, 0.1
        %v3240 = vsub.f32 %v3224, %v3232
        %v3241 = vsub.f32 %v3225, %v3233
        %v3242 = vsub.f32 %v3226, %v3234
        %v3243 = vsub.f32 %v3227, %v3235
        %v3244 = vsub.f32 %v3228, %v3236
        %v3245 = vsub.f32 %v3229, %v3237
        %v3246 = vsub.f32 %v3230, %v3238
        %v3247 = vsub.f32 %v3231, %v3239
        %v3248 = vadd.f32 %v497, %v498
        %v3249 = vadd.f32 %v3248, %v499
        %v3250 = vadd.f32 %v3249, %v500
        %v3251 = vadd.f32 %v3250, %v501
        %v3252 = vadd.f32 %v3251, %v502
        %v3253 = vadd.f32 %v3252, %v503
        %v3254 = vadd.f32 %v3253, %v504
        %3255 = vadd.xlane.f32.xlu0 %v3254
        %v3256 = vpop.xlane.xlu0 %3255
        %v3257 = vrot.slane %v3256, 4
        %v3258 = vadd.f32 %v3256, %v3257
        %v3259 = vrot.slane %v3258, 2
        %v3260 = vadd.f32 %v3258, %v3259
        %v3261 = vrot.slane %v3260, 1
        %v3262 = vadd.f32 %v3260, %v3261
        %s3263 = vtos %v3262
        %v3264 = vstv %s3263
        %v3265 = vrcp.pop 8192.0
        %v3266 = vmul.f32 %v3264, %v3265
        %v3267 = vadd.f32 %v3200, %v3201
        %v3268 = vadd.f32 %v3267, %v3202
        %v3269 = vadd.f32 %v3268, %v3203
        %v3270 = vadd.f32 %v3269, %v3204
        %v3271 = vadd.f32 %v3270, %v3205
        %v3272 = vadd.f32 %v3271, %v3206
        %v3273 = vadd.f32 %v3272, %v3207
        %3274 = vadd.xlane.f32.xlu0 %v3273
        %v3275 = vpop.xlane.xlu0 %3274
        %v3276 = vrot.slane %v3275, 4
        %v3277 = vadd.f32 %v3275, %v3276
        %v3278 = vrot.slane %v3277, 2
        %v3279 = vadd.f32 %v3277, %v3278
        %v3280 = vrot.slane %v3279, 1
        %v3281 = vadd.f32 %v3279, %v3280
        %s3282 = vtos %v3281
        %v3283 = vstv %s3282
        %v3284 = vmul.f32 %v3283, %v3265
        %v3285 = vadd.f32 %v3240, %v3241
        %v3286 = vadd.f32 %v3285, %v3242
        %v3287 = vadd.f32 %v3286, %v3243
        %v3288 = vadd.f32 %v3287, %v3244
        %v3289 = vadd.f32 %v3288, %v3245
        %v3290 = vadd.f32 %v3289, %v3246
        %v3291 = vadd.f32 %v3290, %v3247
        %3292 = vadd.xlane.f32.xlu0 %v3291
        %v3293 = vpop.xlane.xlu0 %3292
        %v3294 = vrot.slane %v3293, 4
        %v3295 = vadd.f32 %v3293, %v3294
        %v3296 = vrot.slane %v3295, 2
        %v3297 = vadd.f32 %v3295, %v3296
        %v3298 = vrot.slane %v3297, 1
        %v3299 = vadd.f32 %v3297, %v3298
        %s3300 = vtos %v3299
        %v3301 = vstv %s3300
        %v3302 = vmul.f32 %v3301, %v3265
        %s3303 = sld [smem:[#allocation9]]
        %s3304 = sld [smem:[#allocation9 + $0x1]]
        %s3305 = sld [smem:[#allocation9 + $0x2]]
        %s3306 = sld [smem:[#allocation9 + $0x3]]
        %s3307 = sld [smem:[#allocation9 + $0x4]]
        %s3308 = sld [smem:[#allocation9 + $0x5]]
        %s3309 = sld [smem:[#allocation9 + $0x6]]
        %s3310 = sld [smem:[#allocation9 + $0x7]]
        %s3311 = sld [smem:[#allocation9 + $0x8]]
        %s3312 = sld [smem:[#allocation9 + $0x9]]
        %s3313 = sld [smem:[#allocation9 + $0xa]]
        %s3314 = sld [smem:[#allocation9 + $0xb]]
        %s3315 = sld [smem:[#allocation9 + $0xc]]
        %s3316 = sld [smem:[#allocation9 + $0xd]]
        %s3317 = sld [smem:[#allocation9 + $0xe]]
        %s3318 = sld [smem:[#allocation9 + $0xf]]
        %s3319 = sld [smem:[#allocation9 + $0x10]]
        %s3320 = sld [smem:[#allocation9 + $0x11]]
        %s3321 = sld [smem:[#allocation9 + $0x12]]
        %s3322 = sld [smem:[#allocation9 + $0x13]]
        %s3323 = sld [smem:[#allocation9 + $0x14]]
        %s3324 = sld [smem:[#allocation9 + $0x15]]
        %s3325 = sld [smem:[#allocation9 + $0x16]]
        %s3326 = sld [smem:[#allocation9 + $0x17]]
        %v3327 = vstv %s3303
        %v3328 = vmul.f32 %v3266, %v3327
        %v3329 = vstv %s3306
        %v3330 = vmul.f32 %v3284, %v3329
        %v3331 = vadd.f32 %v3328, %v3330
        %v3332 = vstv %s3309
        %v3333 = vmul.f32 %v3302, %v3332
        %v3334 = vadd.f32 %v3331, %v3333
        %v3335 = vstv %s3312
        %v3336 = vadd.f32 %v3334, %v3335
        %v3337 = vmax.f32 %v3336, 0.0
        %v3338 = vstv %s3304
        %v3339 = vmul.f32 %v3266, %v3338
        %v3340 = vstv %s3307
        %v3341 = vmul.f32 %v3284, %v3340
        %v3342 = vadd.f32 %v3339, %v3341
        %v3343 = vstv %s3310
        %v3344 = vmul.f32 %v3302, %v3343
        %v3345 = vadd.f32 %v3342, %v3344
        %v3346 = vstv %s3313
        %v3347 = vadd.f32 %v3345, %v3346
        %v3348 = vmax.f32 %v3347, 0.0
        %v3349 = vstv %s3305
        %v3350 = vmul.f32 %v3266, %v3349
        %v3351 = vstv %s3308
        %v3352 = vmul.f32 %v3284, %v3351
        %v3353 = vadd.f32 %v3350, %v3352
        %v3354 = vstv %s3311
        %v3355 = vmul.f32 %v3302, %v3354
        %v3356 = vadd.f32 %v3353, %v3355
        %v3357 = vstv %s3314
        %v3358 = vadd.f32 %v3356, %v3357
        %v3359 = vmax.f32 %v3358, 0.0
        %v3360 = vstv %s3315
        %v3361 = vmul.f32 %v3337, %v3360
        %v3362 = vstv %s3318
        %v3363 = vmul.f32 %v3348, %v3362
        %v3364 = vadd.f32 %v3361, %v3363
        %v3365 = vstv %s3321
        %v3366 = vmul.f32 %v3359, %v3365
        %v3367 = vadd.f32 %v3364, %v3366
        %v3368 = vstv %s3324
        %v3369 = vadd.f32 %v3367, %v3368
        %v3370 = vxor.u32 %v3369, 2147483648
        %v3371 = vmul.f32 %v3370, 1.442695
        %v3372 = vpow.pop %v3371
        %v3373 = vadd.f32 %v3372, 1.0
        %v3374 = vrcp.pop %v3373
        %v3375 = vmul.f32 1.0, %v3374
        %v3376 = vstv %s3316
        %v3377 = vmul.f32 %v3337, %v3376
        %v3378 = vstv %s3319
        %v3379 = vmul.f32 %v3348, %v3378
        %v3380 = vadd.f32 %v3377, %v3379
        %v3381 = vstv %s3322
        %v3382 = vmul.f32 %v3359, %v3381
        %v3383 = vadd.f32 %v3380, %v3382
        %v3384 = vstv %s3325
        %v3385 = vadd.f32 %v3383, %v3384
        %v3386 = vxor.u32 %v3385, 2147483648
        %v3387 = vmul.f32 %v3386, 1.442695
        %v3388 = vpow.pop %v3387
        %v3389 = vadd.f32 %v3388, 1.0
        %v3390 = vrcp.pop %v3389
        %v3391 = vmul.f32 1.0, %v3390
        %v3392 = vstv %s3317
        %v3393 = vmul.f32 %v3337, %v3392
        %v3394 = vstv %s3320
        %v3395 = vmul.f32 %v3348, %v3394
        %v3396 = vadd.f32 %v3393, %v3395
        %v3397 = vstv %s3323
        %v3398 = vmul.f32 %v3359, %v3397
        %v3399 = vadd.f32 %v3396, %v3398
        %v3400 = vstv %s3326
        %v3401 = vadd.f32 %v3399, %v3400
        %v3402 = vxor.u32 %v3401, 2147483648
        %v3403 = vmul.f32 %v3402, 1.442695
        %v3404 = vpow.pop %v3403
        %v3405 = vadd.f32 %v3404, 1.0
        %v3406 = vrcp.pop %v3405
        %v3407 = vmul.f32 1.0, %v3406
        %v3408 = vmul.f32 %v497, %v3375
        %v3409 = vmul.f32 %v498, %v3375
        %v3410 = vmul.f32 %v499, %v3375
        %v3411 = vmul.f32 %v500, %v3375
        %v3412 = vmul.f32 %v501, %v3375
        %v3413 = vmul.f32 %v502, %v3375
        %v3414 = vmul.f32 %v503, %v3375
        %v3415 = vmul.f32 %v504, %v3375
        %v3416 = vmul.f32 %v3200, %v3391
        %v3417 = vmul.f32 %v3201, %v3391
        %v3418 = vmul.f32 %v3202, %v3391
        %v3419 = vmul.f32 %v3203, %v3391
        %v3420 = vmul.f32 %v3204, %v3391
        %v3421 = vmul.f32 %v3205, %v3391
        %v3422 = vmul.f32 %v3206, %v3391
        %v3423 = vmul.f32 %v3207, %v3391
        %v3424 = vmul.f32 %v3240, %v3407
        %v3425 = vmul.f32 %v3241, %v3407
        %v3426 = vmul.f32 %v3242, %v3407
        %v3427 = vmul.f32 %v3243, %v3407
        %v3428 = vmul.f32 %v3244, %v3407
        %v3429 = vmul.f32 %v3245, %v3407
        %v3430 = vmul.f32 %v3246, %v3407
        %v3431 = vmul.f32 %v3247, %v3407
        %v3432 = vld [vmem:[%s5] sm:$0xff]
        %vm3433 = vcmask 523264
        %v3435 = vsel %vm3433, %v3432, 0
        %3437 = vmatprep.subr.mxu0 0.0
        %3438 = vmatpush1.msra.mxu0 %v3145
        %3439 = vmatprep.subr.mxu0 0.0
        %3440 = vmatpush1.msra.mxu0 %v3147
        %3441 = vmatprep.subr.mxu0 0.0
        %3442 = vmatpush1.msra.mxu0 %v3149
        %3443 = vmatprep.subr.mxu0 0.0
        %3444 = vmatpush1.msra.mxu0 %v3151
        %3445 = vmatprep.subr.mxu0 0.0
        %3446 = vmatpush1.msra.mxu0 %v3153
        %3447 = vmatprep.subr.mxu0 0.0
        %3448 = vmatpush1.msra.mxu0 %v3155
        %3449 = vmatprep.subr.mxu0 0.0
        %3450 = vmatpush1.msra.mxu0 %v3157
        %3451 = vmatprep.subr.mxu0 0.0
        %3452 = vmatpush1.msra.mxu0 %v3159
        %3453 = vmatprep.subr.mxu0 0.0
        %3454 = vmatpush1.msra.mxu0 0.0
        %3455 = vmatprep.subr.mxu0 0.0
        %3456 = vmatpush1.msra.mxu0 0.0
        %3457 = vmatprep.subr.mxu0 0.0
        %3458 = vmatpush1.msra.mxu0 0.0
        %3459 = vmatprep.subr.mxu0 0.0
        %3460 = vmatpush1.msra.mxu0 0.0
        %3461 = vmatprep.subr.mxu0 0.0
        %3462 = vmatpush1.msra.mxu0 0.0
        %3463 = vmatprep.subr.mxu0 0.0
        %3464 = vmatpush1.msra.mxu0 0.0
        %3465 = vmatprep.subr.mxu0 0.0
        %3466 = vmatpush1.msra.mxu0 0.0
        %3467 = vmatprep.subr.mxu0 0.0
        %3468 = vmatpush1.msra.mxu0 0.0
        %3469 = vmatprep.subr.mxu0 0.0
        %3470 = vmatpush1.msra.mxu0 0.0
        %3471 = vmatprep.subr.mxu0 0.0
        %3472 = vmatpush1.msra.mxu0 0.0
        %3473 = vmatprep.subr.mxu0 0.0
        %3474 = vmatpush1.msra.mxu0 0.0
        %3475 = vmatprep.subr.mxu0 0.0
        %3476 = vmatpush1.msra.mxu0 0.0
        %3477 = vmatprep.subr.mxu0 0.0
        %3478 = vmatpush1.msra.mxu0 0.0
        %3479 = vmatprep.subr.mxu0 0.0
        %3480 = vmatpush1.msra.mxu0 0.0
        %3481 = vmatprep.subr.mxu0 0.0
        %3482 = vmatpush1.msra.mxu0 0.0
        %3483 = vmatprep.subr.mxu0 0.0
        %3484 = vmatpush1.msra.mxu0 0.0
        %3485 = vmatprep.subr.mxu0 0.0
        %3486 = vmatpush1.msra.mxu0 0.0
        %3487 = vmatprep.subr.mxu0 0.0
        %3488 = vmatpush1.msra.mxu0 0.0
        %3489 = vmatprep.subr.mxu0 0.0
        %3490 = vmatpush1.msra.mxu0 0.0
        %3491 = vmatprep.subr.mxu0 0.0
        %3492 = vmatpush1.msra.mxu0 0.0
        %3493 = vmatprep.subr.mxu0 0.0
        %3494 = vmatpush1.msra.mxu0 0.0
        %3495 = vmatprep.subr.mxu0 0.0
        %3496 = vmatpush1.msra.mxu0 0.0
        %3497 = vmatprep.subr.mxu0 0.0
        %3498 = vmatpush1.msra.mxu0 0.0
        %3499 = vmatprep.subr.mxu0 0.0
        %3500 = vmatpush1.msra.mxu0 0.0
        %3501 = vmatprep.mubr.f32.mxu0 0.0
        %3502 = vmatmul.mubr.f32.gmra.mrb[0].mxu0 %v3435
        %v3503 = vpop.f32.mrb[0].mxu0
        %v3504 = vadd.f32 0.0, %v3503
        %v3505 = vpop.f32.mrb[0].mxu0
        %3506 = vdwg.mxu0
        %v3507 = vld [vmem:[%s6] sm:$0xff]
        %v3508 = vld [vmem:[%s6 + $0x8] sm:$0xff]
        %v3509 = vld [vmem:[%s6 + $0x10] sm:$0xff]
        %v3510 = vld [vmem:[%s6 + $0x18] sm:$0xff]
        %v3511 = vld [vmem:[%s6 + $0x20] sm:$0xff]
        %v3512 = vld [vmem:[%s6 + $0x28] sm:$0xff]
        %v3513 = vld [vmem:[%s6 + $0x30] sm:$0xff]
        %v3514 = vld [vmem:[%s6 + $0x38] sm:$0xff]
        %v3515 = vld [vmem:[%s6 + $0x40] sm:$0xff]
        %v3516 = vld [vmem:[%s6 + $0x48] sm:$0xff]
        %v3517 = vld [vmem:[%s6 + $0x50] sm:$0xff]
        %v3518 = vld [vmem:[%s6 + $0x58] sm:$0xff]
        %v3519 = vld [vmem:[%s6 + $0x60] sm:$0xff]
        %v3520 = vld [vmem:[%s6 + $0x68] sm:$0xff]
        %v3521 = vld [vmem:[%s6 + $0x70] sm:$0xff]
        %v3522 = vld [vmem:[%s6 + $0x78] sm:$0xff]
        %3523 = vmatprep.subr.mxu0 0.0
        %3524 = vmatpush1.msra.mxu0 %v3507
        %3525 = vmatprep.subr.mxu0 0.0
        %3526 = vmatpush1.msra.mxu0 %v3508
        %3527 = vmatprep.subr.mxu0 0.0
        %3528 = vmatpush1.msra.mxu0 %v3509
        %3529 = vmatprep.subr.mxu0 0.0
        %3530 = vmatpush1.msra.mxu0 %v3510
        %3531 = vmatprep.subr.mxu0 0.0
        %3532 = vmatpush1.msra.mxu0 %v3511
        %3533 = vmatprep.subr.mxu0 0.0
        %3534 = vmatpush1.msra.mxu0 %v3512
        %3535 = vmatprep.subr.mxu0 0.0
        %3536 = vmatpush1.msra.mxu0 %v3513
        %3537 = vmatprep.subr.mxu0 0.0
        %3538 = vmatpush1.msra.mxu0 %v3514
        %3539 = vmatprep.subr.mxu0 0.0
        %3540 = vmatpush1.msra.mxu0 %v3515
        %3541 = vmatprep.subr.mxu0 0.0
        %3542 = vmatpush1.msra.mxu0 %v3516
        %3543 = vmatprep.subr.mxu0 0.0
        %3544 = vmatpush1.msra.mxu0 %v3517
        %3545 = vmatprep.subr.mxu0 0.0
        %3546 = vmatpush1.msra.mxu0 %v3518
        %3547 = vmatprep.subr.mxu0 0.0
        %3548 = vmatpush1.msra.mxu0 %v3519
        %3549 = vmatprep.subr.mxu0 0.0
        %3550 = vmatpush1.msra.mxu0 %v3520
        %3551 = vmatprep.subr.mxu0 0.0
        %3552 = vmatpush1.msra.mxu0 %v3521
        %3553 = vmatprep.subr.mxu0 0.0
        %3554 = vmatpush1.msra.mxu0 %v3522
        %3555 = vmatprep.subr.mxu0 0.0
        %3556 = vmatpush1.msra.mxu0 0.0
        %3557 = vmatprep.subr.mxu0 0.0
        %3558 = vmatpush1.msra.mxu0 0.0
        %3559 = vmatprep.subr.mxu0 0.0
        %3560 = vmatpush1.msra.mxu0 0.0
        %3561 = vmatprep.subr.mxu0 0.0
        %3562 = vmatpush1.msra.mxu0 0.0
        %3563 = vmatprep.subr.mxu0 0.0
        %3564 = vmatpush1.msra.mxu0 0.0
        %3565 = vmatprep.subr.mxu0 0.0
        %3566 = vmatpush1.msra.mxu0 0.0
        %3567 = vmatprep.subr.mxu0 0.0
        %3568 = vmatpush1.msra.mxu0 0.0
        %3569 = vmatprep.subr.mxu0 0.0
        %3570 = vmatpush1.msra.mxu0 0.0
        %3571 = vmatprep.subr.mxu0 0.0
        %3572 = vmatpush1.msra.mxu0 0.0
        %3573 = vmatprep.subr.mxu0 0.0
        %3574 = vmatpush1.msra.mxu0 0.0
        %3575 = vmatprep.subr.mxu0 0.0
        %3576 = vmatpush1.msra.mxu0 0.0
        %3577 = vmatprep.subr.mxu0 0.0
        %3578 = vmatpush1.msra.mxu0 0.0
        %3579 = vmatprep.subr.mxu0 0.0
        %3580 = vmatpush1.msra.mxu0 0.0
        %3581 = vmatprep.subr.mxu0 0.0
        %3582 = vmatpush1.msra.mxu0 0.0
        %3583 = vmatprep.subr.mxu0 0.0
        %3584 = vmatpush1.msra.mxu0 0.0
        %3585 = vmatprep.subr.mxu0 0.0
        %3586 = vmatpush1.msra.mxu0 0.0
        %3587 = vmatprep.mubr.f32.mxu0 0.0
        %3588 = vmatmul.mubr.f32.gmra.mrb[0].mxu0 %v3504
        %v3589 = vpop.f32.mrb[0].mxu0
        %v3590 = vadd.f32 0.0, %v3589
        %v3591 = vpop.f32.mrb[0].mxu0
        %3592 = vdwg.mxu0
        %s3593 = sld [smem:[#allocation6]]
        %s3594 = scvt.s32.f32 %s3593
        %s3595 = smul.f32 %s3594, 2.0
        %s3596 = ssub.f32 %s3595, 1.0
        %s3597 = sld [smem:[#allocation6 + $0x1]]
        %s3598 = scvt.s32.f32 %s3597
        %s3599 = smul.f32 %s3598, 2.0
        %s3600 = ssub.f32 %s3599, 1.0
        %s3601 = sld [smem:[#allocation6 + $0x2]]
        %s3602 = scvt.s32.f32 %s3601
        %s3603 = smul.f32 %s3602, 2.0
        %s3604 = ssub.f32 %s3603, 1.0
        %s3605 = sld [smem:[#allocation6 + $0x3]]
        %s3606 = scvt.s32.f32 %s3605
        %s3607 = smul.f32 %s3606, 2.0
        %s3608 = ssub.f32 %s3607, 1.0
        %s3609 = sld [smem:[#allocation6 + $0x4]]
        %s3610 = scvt.s32.f32 %s3609
        %s3611 = smul.f32 %s3610, 2.0
        %s3612 = ssub.f32 %s3611, 1.0
        %s3613 = sld [smem:[#allocation6 + $0x5]]
        %s3614 = scvt.s32.f32 %s3613
        %s3615 = smul.f32 %s3614, 2.0
        %s3616 = ssub.f32 %s3615, 1.0
        %s3617 = sld [smem:[#allocation6 + $0x6]]
        %s3618 = scvt.s32.f32 %s3617
        %s3619 = smul.f32 %s3618, 2.0
        %s3620 = ssub.f32 %s3619, 1.0
        %s3621 = sld [smem:[#allocation6 + $0x7]]
        %s3622 = scvt.s32.f32 %s3621
        %s3623 = smul.f32 %s3622, 2.0
        %s3624 = ssub.f32 %s3623, 1.0
        %v3625 = vld [vmem:[%s4] sm:$0xff]
        %vm3626 = vcmp.eq.s32.totalorder %v3625, 0
        %v3627 = vstv %s3596
        %v3628 = vsel %vm3626, %v3627, 0.0
        %v3629 = vadd.f32 %v3628, 0.0
        %vm3630 = vcmp.eq.s32.totalorder %v3625, 1
        %v3631 = vstv %s3600
        %v3632 = vsel %vm3630, %v3631, 0.0
        %v3633 = vadd.f32 %v3629, %v3632
        %vm3634 = vcmp.eq.s32.totalorder %v3625, 2
        %v3635 = vstv %s3604
        %v3636 = vsel %vm3634, %v3635, 0.0
        %v3637 = vadd.f32 %v3633, %v3636
        %vm3638 = vcmp.eq.s32.totalorder %v3625, 3
        %v3639 = vstv %s3608
        %v3640 = vsel %vm3638, %v3639, 0.0
        %v3641 = vadd.f32 %v3637, %v3640
        %vm3642 = vcmp.eq.s32.totalorder %v3625, 4
        %v3643 = vstv %s3612
        %v3644 = vsel %vm3642, %v3643, 0.0
        %v3645 = vadd.f32 %v3641, %v3644
        %vm3646 = vcmp.eq.s32.totalorder %v3625, 5
        %v3647 = vstv %s3616
        %v3648 = vsel %vm3646, %v3647, 0.0
        %v3649 = vadd.f32 %v3645, %v3648
        %vm3650 = vcmp.eq.s32.totalorder %v3625, 6
        %v3651 = vstv %s3620
        %v3652 = vsel %vm3650, %v3651, 0.0
        %v3653 = vadd.f32 %v3649, %v3652
        %vm3654 = vcmp.eq.s32.totalorder %v3625, 7
        %v3655 = vstv %s3624
        %v3656 = vsel %vm3654, %v3655, 0.0
        %v3657 = vadd.f32 %v3653, %v3656
        %v3658 = vmul.f32 %v3657, 10.0
        %v3659 = vmul.f32 %v3658, %v3590
        %v3660 = vld [vmem:[%s7] sm:$0xff]
        %v3661 = vld [vmem:[%s7 + $0x8] sm:$0xff]
        %v3662 = vld [vmem:[%s7 + $0x10] sm:$0xff]
        %v3663 = vld [vmem:[%s7 + $0x18] sm:$0xff]
        %v3664 = vld [vmem:[%s7 + $0x20] sm:$0xff]
        %v3665 = vld [vmem:[%s7 + $0x28] sm:$0xff]
        %v3666 = vld [vmem:[%s7 + $0x30] sm:$0xff]
        %v3667 = vld [vmem:[%s7 + $0x38] sm:$0xff]
        %vm3668 = vcmask 64512
        %v3670 = vsel %vm3668, %v3660, 0
        %v3673 = vsel %vm3668, %v3661, 0
        %v3676 = vsel %vm3668, %v3662, 0
        %v3679 = vsel %vm3668, %v3663, 0
        %v3682 = vsel %vm3668, %v3664, 0
        %v3685 = vsel %vm3668, %v3665, 0
        %v3688 = vsel %vm3668, %v3666, 0
        %v3691 = vsel %vm3668, %v3667, 0
        %3693 = vmatprep.subr.mxu0 0.0
        %3694 = vmatpush1.msra.mxu0 %v3659
        %3695 = vmatprep.subr.mxu0 0.0
        %3696 = vmatpush1.msra.mxu0 0.0
        %3697 = vmatprep.subr.mxu0 0.0
        %3698 = vmatpush1.msra.mxu0 0.0
        %3699 = vmatprep.subr.mxu0 0.0
        %3700 = vmatpush1.msra.mxu0 0.0
        %3701 = vmatprep.subr.mxu0 0.0
        %3702 = vmatpush1.msra.mxu0 0.0
        %3703 = vmatprep.subr.mxu0 0.0
        %3704 = vmatpush1.msra.mxu0 0.0
        %3705 = vmatprep.subr.mxu0 0.0
        %3706 = vmatpush1.msra.mxu0 0.0
        %3707 = vmatprep.subr.mxu0 0.0
        %3708 = vmatpush1.msra.mxu0 0.0
        %3709 = vmatprep.subr.mxu0 0.0
        %3710 = vmatpush1.msra.mxu0 0.0
        %3711 = vmatprep.subr.mxu0 0.0
        %3712 = vmatpush1.msra.mxu0 0.0
        %3713 = vmatprep.subr.mxu0 0.0
        %3714 = vmatpush1.msra.mxu0 0.0
        %3715 = vmatprep.subr.mxu0 0.0
        %3716 = vmatpush1.msra.mxu0 0.0
        %3717 = vmatprep.subr.mxu0 0.0
        %3718 = vmatpush1.msra.mxu0 0.0
        %3719 = vmatprep.subr.mxu0 0.0
        %3720 = vmatpush1.msra.mxu0 0.0
        %3721 = vmatprep.subr.mxu0 0.0
        %3722 = vmatpush1.msra.mxu0 0.0
        %3723 = vmatprep.subr.mxu0 0.0
        %3724 = vmatpush1.msra.mxu0 0.0
        %3725 = vmatprep.subr.mxu0 0.0
        %3726 = vmatpush1.msra.mxu0 0.0
        %3727 = vmatprep.subr.mxu0 0.0
        %3728 = vmatpush1.msra.mxu0 0.0
        %3729 = vmatprep.subr.mxu0 0.0
        %3730 = vmatpush1.msra.mxu0 0.0
        %3731 = vmatprep.subr.mxu0 0.0
        %3732 = vmatpush1.msra.mxu0 0.0
        %3733 = vmatprep.subr.mxu0 0.0
        %3734 = vmatpush1.msra.mxu0 0.0
        %3735 = vmatprep.subr.mxu0 0.0
        %3736 = vmatpush1.msra.mxu0 0.0
        %3737 = vmatprep.subr.mxu0 0.0
        %3738 = vmatpush1.msra.mxu0 0.0
        %3739 = vmatprep.subr.mxu0 0.0
        %3740 = vmatpush1.msra.mxu0 0.0
        %3741 = vmatprep.subr.mxu0 0.0
        %3742 = vmatpush1.msra.mxu0 0.0
        %3743 = vmatprep.subr.mxu0 0.0
        %3744 = vmatpush1.msra.mxu0 0.0
        %3745 = vmatprep.subr.mxu0 0.0
        %3746 = vmatpush1.msra.mxu0 0.0
        %3747 = vmatprep.subr.mxu0 0.0
        %3748 = vmatpush1.msra.mxu0 0.0
        %3749 = vmatprep.subr.mxu0 0.0
        %3750 = vmatpush1.msra.mxu0 0.0
        %3751 = vmatprep.subr.mxu0 0.0
        %3752 = vmatpush1.msra.mxu0 0.0
        %3753 = vmatprep.subr.mxu0 0.0
        %3754 = vmatpush1.msra.mxu0 0.0
        %3755 = vmatprep.subr.mxu0 0.0
        %3756 = vmatpush1.msra.mxu0 0.0
        %3757 = vmatprep.mubr.f32.mxu0 0.0
        %3758 = vmatmul.mubr.f32.gmra.mrb[0].mxu0 %v3670
        %v3759 = vpop.f32.mrb[0].mxu0
        %v3760 = vadd.f32 0.0, %v3759
        %v3761 = vpop.f32.mrb[0].mxu0
        %3762 = vmatprep.mubr.f32.mxu0 0.0
        %3763 = vmatmul.mubr.f32.gmra.mrb[0].mxu0 %v3673
        %v3764 = vpop.f32.mrb[0].mxu0
        %v3765 = vadd.f32 0.0, %v3764
        %v3766 = vpop.f32.mrb[0].mxu0
        %3767 = vmatprep.mubr.f32.mxu0 0.0
        %3768 = vmatmul.mubr.f32.gmra.mrb[0].mxu0 %v3676
        %v3769 = vpop.f32.mrb[0].mxu0
        %v3770 = vadd.f32 0.0, %v3769
        %v3771 = vpop.f32.mrb[0].mxu0
        %3772 = vmatprep.mubr.f32.mxu0 0.0
        %3773 = vmatmul.mubr.f32.gmra.mrb[0].mxu0 %v3679
        %v3774 = vpop.f32.mrb[0].mxu0
        %v3775 = vadd.f32 0.0, %v3774
        %v3776 = vpop.f32.mrb[0].mxu0
        %3777 = vmatprep.mubr.f32.mxu0 0.0
        %3778 = vmatmul.mubr.f32.gmra.mrb[0].mxu0 %v3682
        %v3779 = vpop.f32.mrb[0].mxu0
        %v3780 = vadd.f32 0.0, %v3779
        %v3781 = vpop.f32.mrb[0].mxu0
        %3782 = vmatprep.mubr.f32.mxu0 0.0
        %3783 = vmatmul.mubr.f32.gmra.mrb[0].mxu0 %v3685
        %v3784 = vpop.f32.mrb[0].mxu0
        %v3785 = vadd.f32 0.0, %v3784
        %v3786 = vpop.f32.mrb[0].mxu0
        %3787 = vmatprep.mubr.f32.mxu0 0.0
        %3788 = vmatmul.mubr.f32.gmra.mrb[0].mxu0 %v3688
        %v3789 = vpop.f32.mrb[0].mxu0
        %v3790 = vadd.f32 0.0, %v3789
        %v3791 = vpop.f32.mrb[0].mxu0
        %3792 = vmatprep.mubr.f32.mxu0 0.0
        %3793 = vmatmul.mubr.f32.gmra.mrb[0].mxu0 %v3691
        %v3794 = vpop.f32.mrb[0].mxu0
        %v3795 = vadd.f32 0.0, %v3794
        %v3796 = vpop.f32.mrb[0].mxu0
        %3797 = vdwg.mxu0
        %v3798 = vld [vmem:[%s8] sm:$0xff]
        %v3799 = vld [vmem:[%s8 + $0x8] sm:$0xff]
        %vm3800 = vcmask 130048
        %v3802 = vsel %vm3800, %v3760, 0
        %v3805 = vsel %vm3800, %v3765, 0
        %v3808 = vsel %vm3800, %v3770, 0
        %v3811 = vsel %vm3800, %v3775, 0
        %v3814 = vsel %vm3800, %v3780, 0
        %v3817 = vsel %vm3800, %v3785, 0
        %v3820 = vsel %vm3800, %v3790, 0
        %v3823 = vsel %vm3800, %v3795, 0
        %3825 = vmatprep.subr.mxu0 0.0
        %3826 = vmatpush1.msra.mxu0 %v3798
        %3827 = vmatprep.subr.mxu0 0.0
        %3828 = vmatpush1.msra.mxu0 %v3799
        %3829 = vmatprep.subr.mxu0 0.0
        %3830 = vmatpush1.msra.mxu0 0.0
        %3831 = vmatprep.subr.mxu0 0.0
        %3832 = vmatpush1.msra.mxu0 0.0
        %3833 = vmatprep.subr.mxu0 0.0
        %3834 = vmatpush1.msra.mxu0 0.0
        %3835 = vmatprep.subr.mxu0 0.0
        %3836 = vmatpush1.msra.mxu0 0.0
        %3837 = vmatprep.subr.mxu0 0.0
        %3838 = vmatpush1.msra.mxu0 0.0
        %3839 = vmatprep.subr.mxu0 0.0
        %3840 = vmatpush1.msra.mxu0 0.0
        %3841 = vmatprep.subr.mxu0 0.0
        %3842 = vmatpush1.msra.mxu0 0.0
        %3843 = vmatprep.subr.mxu0 0.0
        %3844 = vmatpush1.msra.mxu0 0.0
        %3845 = vmatprep.subr.mxu0 0.0
        %3846 = vmatpush1.msra.mxu0 0.0
        %3847 = vmatprep.subr.mxu0 0.0
        %3848 = vmatpush1.msra.mxu0 0.0
        %3849 = vmatprep.subr.mxu0 0.0
        %3850 = vmatpush1.msra.mxu0 0.0
        %3851 = vmatprep.subr.mxu0 0.0
        %3852 = vmatpush1.msra.mxu0 0.0
        %3853 = vmatprep.subr.mxu0 0.0
        %3854 = vmatpush1.msra.mxu0 0.0
        %3855 = vmatprep.subr.mxu0 0.0
        %3856 = vmatpush1.msra.mxu0 0.0
        %3857 = vmatprep.subr.mxu0 0.0
        %3858 = vmatpush1.msra.mxu0 0.0
        %3859 = vmatprep.subr.mxu0 0.0
        %3860 = vmatpush1.msra.mxu0 0.0
        %3861 = vmatprep.subr.mxu0 0.0
        %3862 = vmatpush1.msra.mxu0 0.0
        %3863 = vmatprep.subr.mxu0 0.0
        %3864 = vmatpush1.msra.mxu0 0.0
        %3865 = vmatprep.subr.mxu0 0.0
        %3866 = vmatpush1.msra.mxu0 0.0
        %3867 = vmatprep.subr.mxu0 0.0
        %3868 = vmatpush1.msra.mxu0 0.0
        %3869 = vmatprep.subr.mxu0 0.0
        %3870 = vmatpush1.msra.mxu0 0.0
        %3871 = vmatprep.subr.mxu0 0.0
        %3872 = vmatpush1.msra.mxu0 0.0
        %3873 = vmatprep.subr.mxu0 0.0
        %3874 = vmatpush1.msra.mxu0 0.0
        %3875 = vmatprep.subr.mxu0 0.0
        %3876 = vmatpush1.msra.mxu0 0.0
        %3877 = vmatprep.subr.mxu0 0.0
        %3878 = vmatpush1.msra.mxu0 0.0
        %3879 = vmatprep.subr.mxu0 0.0
        %3880 = vmatpush1.msra.mxu0 0.0
        %3881 = vmatprep.subr.mxu0 0.0
        %3882 = vmatpush1.msra.mxu0 0.0
        %3883 = vmatprep.subr.mxu0 0.0
        %3884 = vmatpush1.msra.mxu0 0.0
        %3885 = vmatprep.subr.mxu0 0.0
        %3886 = vmatpush1.msra.mxu0 0.0
        %3887 = vmatprep.subr.mxu0 0.0
        %3888 = vmatpush1.msra.mxu0 0.0
        %3889 = vmatprep.mubr.f32.mxu0 0.0
        %3890 = vmatmul.mubr.f32.gmra.mrb[0].mxu0 %v3802
        %v3891 = vpop.f32.mrb[0].mxu0
        %v3892 = vadd.f32 0.0, %v3891
        %v3893 = vpop.f32.mrb[0].mxu0
        %3894 = vmatprep.mubr.f32.mxu0 0.0
        %3895 = vmatmul.mubr.f32.gmra.mrb[0].mxu0 %v3805
        %v3896 = vpop.f32.mrb[0].mxu0
        %v3897 = vadd.f32 0.0, %v3896
        %v3898 = vpop.f32.mrb[0].mxu0
        %3899 = vmatprep.mubr.f32.mxu0 0.0
        %3900 = vmatmul.mubr.f32.gmra.mrb[0].mxu0 %v3808
        %v3901 = vpop.f32.mrb[0].mxu0
        %v3902 = vadd.f32 0.0, %v3901
        %v3903 = vpop.f32.mrb[0].mxu0
        %3904 = vmatprep.mubr.f32.mxu0 0.0
        %3905 = vmatmul.mubr.f32.gmra.mrb[0].mxu0 %v3811
        %v3906 = vpop.f32.mrb[0].mxu0
        %v3907 = vadd.f32 0.0, %v3906
        %v3908 = vpop.f32.mrb[0].mxu0
        %3909 = vmatprep.mubr.f32.mxu0 0.0
        %3910 = vmatmul.mubr.f32.gmra.mrb[0].mxu0 %v3814
        %v3911 = vpop.f32.mrb[0].mxu0
        %v3912 = vadd.f32 0.0, %v3911
        %v3913 = vpop.f32.mrb[0].mxu0
        %3914 = vmatprep.mubr.f32.mxu0 0.0
        %3915 = vmatmul.mubr.f32.gmra.mrb[0].mxu0 %v3817
        %v3916 = vpop.f32.mrb[0].mxu0
        %v3917 = vadd.f32 0.0, %v3916
        %v3918 = vpop.f32.mrb[0].mxu0
        %3919 = vmatprep.mubr.f32.mxu0 0.0
        %3920 = vmatmul.mubr.f32.gmra.mrb[0].mxu0 %v3820
        %v3921 = vpop.f32.mrb[0].mxu0
        %v3922 = vadd.f32 0.0, %v3921
        %v3923 = vpop.f32.mrb[0].mxu0
        %3924 = vmatprep.mubr.f32.mxu0 0.0
        %3925 = vmatmul.mubr.f32.gmra.mrb[0].mxu0 %v3823
        %v3926 = vpop.f32.mrb[0].mxu0
        %v3927 = vadd.f32 0.0, %v3926
        %v3928 = vpop.f32.mrb[0].mxu0
        %3929 = vdwg.mxu0
        %v3930 = vadd.f32 %v3408, %v3892
        %v3931 = vadd.f32 %v3409, %v3897
        %v3932 = vadd.f32 %v3410, %v3902
        %v3933 = vadd.f32 %v3411, %v3907
        %v3934 = vadd.f32 %v3412, %v3912
        %v3935 = vadd.f32 %v3413, %v3917
        %v3936 = vadd.f32 %v3414, %v3922
        %v3937 = vadd.f32 %v3415, %v3927
        %v3938 = vmul.f32 %v3424, 1.14
        %v3939 = vmul.f32 %v3425, 1.14
        %v3940 = vmul.f32 %v3426, 1.14
        %v3941 = vmul.f32 %v3427, 1.14
        %v3942 = vmul.f32 %v3428, 1.14
        %v3943 = vmul.f32 %v3429, 1.14
        %v3944 = vmul.f32 %v3430, 1.14
        %v3945 = vmul.f32 %v3431, 1.14
        %v3946 = vadd.f32 %v3930, %v3938
        %v3947 = vadd.f32 %v3931, %v3939
        %v3948 = vadd.f32 %v3932, %v3940
        %v3949 = vadd.f32 %v3933, %v3941
        %v3950 = vadd.f32 %v3934, %v3942
        %v3951 = vadd.f32 %v3935, %v3943
        %v3952 = vadd.f32 %v3936, %v3944
        %v3953 = vadd.f32 %v3937, %v3945
        %v3954 = vmax.f32 %v3946, 0.0
        %v3955 = vmax.f32 %v3947, 0.0
        %v3956 = vmax.f32 %v3948, 0.0
        %v3957 = vmax.f32 %v3949, 0.0
        %v3958 = vmax.f32 %v3950, 0.0
        %v3959 = vmax.f32 %v3951, 0.0
        %v3960 = vmax.f32 %v3952, 0.0
        %v3961 = vmax.f32 %v3953, 0.0
        %v3962 = vmin.f32 %v3954, 1.0
        %v3963 = vmin.f32 %v3955, 1.0
        %v3964 = vmin.f32 %v3956, 1.0
        %v3965 = vmin.f32 %v3957, 1.0
        %v3966 = vmin.f32 %v3958, 1.0
        %v3967 = vmin.f32 %v3959, 1.0
        %v3968 = vmin.f32 %v3960, 1.0
        %v3969 = vmin.f32 %v3961, 1.0
        %3970 = vst [vmem:[%s420] sm:$0xff] %v3962
        %3971 = vst [vmem:[%s420 + $0x8] sm:$0xff] %v3963
        %3972 = vst [vmem:[%s420 + $0x10] sm:$0xff] %v3964
        %3973 = vst [vmem:[%s420 + $0x18] sm:$0xff] %v3965
        %3974 = vst [vmem:[%s420 + $0x20] sm:$0xff] %v3966
        %3975 = vst [vmem:[%s420 + $0x28] sm:$0xff] %v3967
        %3976 = vst [vmem:[%s420 + $0x30] sm:$0xff] %v3968
        %3977 = vst [vmem:[%s420 + $0x38] sm:$0xff] %v3969
        %v3978 = vmul.f32 %v3416, 0.395
        %v3979 = vmul.f32 %v3417, 0.395
        %v3980 = vmul.f32 %v3418, 0.395
        %v3981 = vmul.f32 %v3419, 0.395
        %v3982 = vmul.f32 %v3420, 0.395
        %v3983 = vmul.f32 %v3421, 0.395
        %v3984 = vmul.f32 %v3422, 0.395
        %v3985 = vmul.f32 %v3423, 0.395
        %v3986 = vsub.f32 %v3930, %v3978
        %v3987 = vsub.f32 %v3931, %v3979
        %v3988 = vsub.f32 %v3932, %v3980
        %v3989 = vsub.f32 %v3933, %v3981
        %v3990 = vsub.f32 %v3934, %v3982
        %v3991 = vsub.f32 %v3935, %v3983
        %v3992 = vsub.f32 %v3936, %v3984
        %v3993 = vsub.f32 %v3937, %v3985
        %v3994 = vmul.f32 %v3424, 0.581
        %v3995 = vmul.f32 %v3425, 0.581
        %v3996 = vmul.f32 %v3426, 0.581
        %v3997 = vmul.f32 %v3427, 0.581
        %v3998 = vmul.f32 %v3428, 0.581
        %v3999 = vmul.f32 %v3429, 0.581
        %v4000 = vmul.f32 %v3430, 0.581
        %v4001 = vmul.f32 %v3431, 0.581
        %v4002 = vsub.f32 %v3986, %v3994
        %v4003 = vsub.f32 %v3987, %v3995
        %v4004 = vsub.f32 %v3988, %v3996
        %v4005 = vsub.f32 %v3989, %v3997
        %v4006 = vsub.f32 %v3990, %v3998
        %v4007 = vsub.f32 %v3991, %v3999
        %v4008 = vsub.f32 %v3992, %v4000
        %v4009 = vsub.f32 %v3993, %v4001
        %v4010 = vmax.f32 %v4002, 0.0
        %v4011 = vmax.f32 %v4003, 0.0
        %v4012 = vmax.f32 %v4004, 0.0
        %v4013 = vmax.f32 %v4005, 0.0
        %v4014 = vmax.f32 %v4006, 0.0
        %v4015 = vmax.f32 %v4007, 0.0
        %v4016 = vmax.f32 %v4008, 0.0
        %v4017 = vmax.f32 %v4009, 0.0
        %v4018 = vmin.f32 %v4010, 1.0
        %v4019 = vmin.f32 %v4011, 1.0
        %v4020 = vmin.f32 %v4012, 1.0
        %v4021 = vmin.f32 %v4013, 1.0
        %v4022 = vmin.f32 %v4014, 1.0
        %v4023 = vmin.f32 %v4015, 1.0
        %v4024 = vmin.f32 %v4016, 1.0
        %v4025 = vmin.f32 %v4017, 1.0
        %s4026 = scalar_lea.vmem %s420, 64 [#allocation10]
        %4027 = vst [vmem:[%s4026] sm:$0xff] %v4018
        %4028 = vst [vmem:[%s4026 + $0x8] sm:$0xff] %v4019
        %4029 = vst [vmem:[%s4026 + $0x10] sm:$0xff] %v4020
        %4030 = vst [vmem:[%s4026 + $0x18] sm:$0xff] %v4021
        %4031 = vst [vmem:[%s4026 + $0x20] sm:$0xff] %v4022
        %4032 = vst [vmem:[%s4026 + $0x28] sm:$0xff] %v4023
        %4033 = vst [vmem:[%s4026 + $0x30] sm:$0xff] %v4024
        %4034 = vst [vmem:[%s4026 + $0x38] sm:$0xff] %v4025
        %v4035 = vmul.f32 %v3416, 2.032
        %v4036 = vmul.f32 %v3417, 2.032
        %v4037 = vmul.f32 %v3418, 2.032
        %v4038 = vmul.f32 %v3419, 2.032
        %v4039 = vmul.f32 %v3420, 2.032
        %v4040 = vmul.f32 %v3421, 2.032
        %v4041 = vmul.f32 %v3422, 2.032
        %v4042 = vmul.f32 %v3423, 2.032
        %v4043 = vadd.f32 %v3930, %v4035
        %v4044 = vadd.f32 %v3931, %v4036
        %v4045 = vadd.f32 %v3932, %v4037
        %v4046 = vadd.f32 %v3933, %v4038
        %v4047 = vadd.f32 %v3934, %v4039
        %v4048 = vadd.f32 %v3935, %v4040
        %v4049 = vadd.f32 %v3936, %v4041
        %v4050 = vadd.f32 %v3937, %v4042
        %v4051 = vmax.f32 %v4043, 0.0
        %v4052 = vmax.f32 %v4044, 0.0
        %v4053 = vmax.f32 %v4045, 0.0
        %v4054 = vmax.f32 %v4046, 0.0
        %v4055 = vmax.f32 %v4047, 0.0
        %v4056 = vmax.f32 %v4048, 0.0
        %v4057 = vmax.f32 %v4049, 0.0
        %v4058 = vmax.f32 %v4050, 0.0
        %v4059 = vmin.f32 %v4051, 1.0
        %v4060 = vmin.f32 %v4052, 1.0
        %v4061 = vmin.f32 %v4053, 1.0
        %v4062 = vmin.f32 %v4054, 1.0
        %v4063 = vmin.f32 %v4055, 1.0
        %v4064 = vmin.f32 %v4056, 1.0
        %v4065 = vmin.f32 %v4057, 1.0
        %v4066 = vmin.f32 %v4058, 1.0
        %s4067 = scalar_lea.vmem %s420, 128 [#allocation10]
        %4068 = vst [vmem:[%s4067] sm:$0xff] %v4059
        %4069 = vst [vmem:[%s4067 + $0x8] sm:$0xff] %v4060
        %4070 = vst [vmem:[%s4067 + $0x10] sm:$0xff] %v4061
        %4071 = vst [vmem:[%s4067 + $0x18] sm:$0xff] %v4062
        %4072 = vst [vmem:[%s4067 + $0x20] sm:$0xff] %v4063
        %4073 = vst [vmem:[%s4067 + $0x28] sm:$0xff] %v4064
        %4074 = vst [vmem:[%s4067 + $0x30] sm:$0xff] %v4065
        %4075 = vst [vmem:[%s4067 + $0x38] sm:$0xff] %v4066
        %s4076 = sand.u32 %s235, 1
        %s4077 = scalar_lea.sflag [#allocation4], %s4076
        %s4078 = sand.u32 %s235, 1
        %s4079 = smul.addr %s4078, 192
        %s4080 = scalar_lea.vmem [#allocation10], %s4079
        %s4081 = sand.u32 %s261, 1
        %s4082 = scalar_lea.sflag [#allocation12], %s4081
        %s4083 = sand.u32 %s261, 1
        %s4084 = smul.addr %s4083, 64
        %s4085 = scalar_lea.vmem [#allocation11], %s4084
        // Predicated region
        $region73: #{tpu_custom_call.1} parent=55 // pred_check
          %p4086 = pneg %p245
        $region74: #{tpu_custom_call.1} parent=55 // pred_check_branch
          %4088 = sbr.rel (%p4086) target = $region76
        $region75: #{tpu_custom_call.1} parent=55 // pred_region
          %s4090 = ssub.s32 3072, 3072
          %4091 = vsyncadd %s4077, %s4090
          %s4092 = smul.addr %s33, 24
          %s4093 = smul.addr %s4092, 128
          %s4094 = scalar_lea.hbm %s9, %s4093
          %s4095 = sshll.u32 %s4080, 4
          %s4096 = int_to_ptr.vmem [resolvable:$true] %s4095
          %4101 = dma.vmem_to_hbm [thread:$0]  %s4096, 3072, %s4094, %s4077, 128, 128, 8
        $region76: #{tpu_custom_call.1} parent=55 // pred_fallthru
          _
        // Predicated region
        $region77: #{tpu_custom_call.1} parent=55 // pred_check
          %p4102 = pneg %p271
        $region78: #{tpu_custom_call.1} parent=55 // pred_check_branch
          %4104 = sbr.rel (%p4102) target = $region80
        $region79: #{tpu_custom_call.1} parent=55 // pred_region
          %s4106 = ssub.s32 1024, 1024
          %4107 = vsyncadd %s4082, %s4106
          %s4108 = smul.addr %s33, 8
          %s4109 = smul.addr %s4108, 128
          %s4110 = scalar_lea.hbm %s10, %s4109
          %s4111 = sshll.u32 %s4085, 4
          %s4112 = int_to_ptr.vmem [resolvable:$true] %s4111
          %4117 = dma.vmem_to_hbm [thread:$0]  %s4112, 1024, %s4110, %s4082, 128, 128, 8
        $region80: #{tpu_custom_call.1} parent=55 // pred_fallthru
          _
      $region56: #{tpu_custom_call.1} parent=5 // pred_fallthru
        _
      %p4118 = scmp.le.s32.totalorder 2, %s28
      // Predicated region
      $region81: #{tpu_custom_call.1} parent=5 // pred_check
        %p4119 = pneg %p4118
      $region82: #{tpu_custom_call.1} parent=5 // pred_check_branch
        %4121 = sbr.rel (%p4119) target = $region84
      $region83: #{tpu_custom_call.1} parent=5 // pred_region
        %s4122 = ssub.s32 %s28, 2
        // Predicated region
        $region85: #{tpu_custom_call.1} parent=83 // pred_check
          %p4123 = pneg %p251
        $region86: #{tpu_custom_call.1} parent=83 // pred_check_branch
          %4125 = sbr.rel (%p4123) target = $region88
        $region87: #{tpu_custom_call.1} parent=83 // pred_region
          %s4126 = sand.u32 %s236, 1
          %s4127 = scalar_lea.sflag [#allocation4], %s4126
          %s4128 = sand.u32 %s236, 1
          %s4129 = smul.addr %s4128, 192
          %s4130 = scalar_lea.vmem [#allocation10], %s4129
          %4131 = dma.done %s4127, 3072
        $region88: #{tpu_custom_call.1} parent=83 // pred_fallthru
          _
        // Predicated region
        $region89: #{tpu_custom_call.1} parent=83 // pred_check
          %p4132 = pneg %p277
        $region90: #{tpu_custom_call.1} parent=83 // pred_check_branch
          %4134 = sbr.rel (%p4132) target = $region92
        $region91: #{tpu_custom_call.1} parent=83 // pred_region
          %s4135 = sand.u32 %s262, 1
          %s4136 = scalar_lea.sflag [#allocation12], %s4135
          %s4137 = sand.u32 %s262, 1
          %s4138 = smul.addr %s4137, 64
          %s4139 = scalar_lea.vmem [#allocation11], %s4138
          %4140 = dma.done %s4136, 1024
        $region92: #{tpu_custom_call.1} parent=83 // pred_fallthru
          _
      $region84: #{tpu_custom_call.1} parent=5 // pred_fallthru
        _
    $region6: #{tpu_custom_call.1} parent=1 // loop_footer
      %s32 = sadd.s32 1, %s28
    $region7: #{tpu_custom_call.1} parent=1 // loop_footer_branch
      %27 = sbr.rel target = $region3
    $region8: #{tpu_custom_call.1} parent=1 // loop_exit
      _
    %4141 = vsyncpa [#allocation3], 1
    %s4142 = scalar_lea.sflag [#allocation3], 1
    %4143 = vsyncpa %s4142, 1
    %4144 = vsyncpa [#allocation4], 1
    %s4145 = scalar_lea.sflag [#allocation4], 1
    %4146 = vsyncpa %s4145, 1
    %4147 = vsyncpa [#allocation12], 1
    %s4148 = scalar_lea.sflag [#allocation12], 1
    %4149 = vsyncpa %s4148, 1
    %4150 = vsyncpa [#allocation5], 1
    %s4151 = scalar_lea.sflag [#allocation5], 1
    %4152 = vsyncpa %s4151, 1
    %4153 = vsyncpa [#allocation8], 1

</llo_original>
